<compile_context>
chip_gen: v7x
topology: tpu7x:2x2x1
jax: 0.10.0
libtpu: 0.0.40
codegen_flags: <defaults>
</compile_context>

<pallas_src>
import jax
import jax.numpy as jnp
from jax import lax
from jax.experimental import pallas as pl
from jax.experimental.pallas import tpu as pltpu

EPS = 1e-5          # nn.BatchNorm2d default eps
NEG_SLOPE = 0.01    # nn.LeakyReLU(0.01)


# ----------------------------- kernel helpers -----------------------------

def _zero_halo(pad_ref, H, W, C):
    """Zero only the 1-wide halo ring of an (H+2, W+2, C) padded VMEM scratch."""
    zrow = jnp.zeros((1, W + 2, C), jnp.float32)
    pad_ref[0:1, :, :] = zrow
    pad_ref[H + 1:H + 2, :, :] = zrow
    zcol = jnp.zeros((H, 1, C), jnp.float32)
    pad_ref[1:H + 1, 0:1, :] = zcol
    pad_ref[1:H + 1, W + 1:W + 2, :] = zcol


def _conv3x3_from_pad(pad_ref, w_ref, H, W, Cin, Cout):
    """3x3 conv as 9 shifted matmuls; patches read straight off the padded ref."""
    acc = jnp.zeros((H * W, Cout), jnp.float32)
    for dy in range(3):
        for dx in range(3):
            patch = pad_ref[dy:dy + H, dx:dx + W, :].reshape(H * W, Cin)
            acc = acc + jnp.dot(patch, w_ref[dy, dx].astype(jnp.float32),
                                preferred_element_type=jnp.float32)
    return acc


def _write_stats(st_ref, acc):
    """One-pass BN partial stats for this image: per-channel sum and sum-of-squares."""
    st_ref[0, 0:1, :] = jnp.sum(acc, axis=0, keepdims=True)
    st_ref[0, 1:2, :] = jnp.sum(acc * acc, axis=0, keepdims=True)


# ------------------------------- kernels ----------------------------------

def _conv1_stats_kernel(x_ref, w_ref, y_ref, st_ref, xpad_ref):
    # x_ref: (1,H,W,Cin) NHWC block; w_ref: (3,3,Cin,Cout); y_ref: (1,H,W,Cout) f32
    _, H, W, Cin = x_ref.shape
    Cout = y_ref.shape[3]
    xpad_ref[1:H + 1, 1:W + 1, :] = x_ref[0].astype(jnp.float32)
    _zero_halo(xpad_ref, H, W, Cin)
    acc = _conv3x3_from_pad(xpad_ref, w_ref, H, W, Cin, Cout)
    y_ref[...] = acc.reshape(1, H, W, Cout)
    _write_stats(st_ref, acc)


def _bn_lrelu_conv2_kernel(y1_ref, s_ref, t_ref, w_ref, y2_ref, st_ref, hpad_ref):
    # y1_ref: (1,H,W,C) pre-BN conv1 output; s/t_ref: (1,C) folded BN1 scale/shift
    _, H, W, C = y1_ref.shape
    Cout = y2_ref.shape[3]
    h = y1_ref[0] * s_ref[0] + t_ref[0]            # BN1 (global batch stats, folded affine)
    h = jnp.where(h >= 0, h, NEG_SLOPE * h)        # LeakyReLU(0.01)
    hpad_ref[1:H + 1, 1:W + 1, :] = h
    _zero_halo(hpad_ref, H, W, C)
    acc = _conv3x3_from_pad(hpad_ref, w_ref, H, W, C, Cout)
    y2_ref[...] = acc.reshape(1, H, W, Cout)
    _write_stats(st_ref, acc)


def _bn_lrelu_out_kernel(y2_ref, s_ref, t_ref, o_ref):
    # o_ref: (1, H, W*C) -- lane-dense output block (unmasked stores)
    _, H, W, C = y2_ref.shape
    z = y2_ref[0] * s_ref[0] + t_ref[0]            # BN2
    z = jnp.where(z >= 0, z, NEG_SLOPE * z)        # LeakyReLU(0.01)
    o_ref[...] = z.reshape(1, H, W * C).astype(o_ref.dtype)


# ------------------------------- wrapper -----------------------------------

def _bn_affine(stats, gamma, beta, count):
    """Fold global train-mode BN stats into per-channel (scale, shift)."""
    mean = jnp.sum(stats[:, 0, :], axis=0) / count
    ex2 = jnp.sum(stats[:, 1, :], axis=0) / count
    var = ex2 - mean * mean
    scale = gamma * lax.rsqrt(var + EPS)
    shift = beta - mean * scale
    return scale.reshape(1, -1), shift.reshape(1, -1)


def double_conv(x_nchw, params):
    """NCHW in / NCHW out, matching the PyTorch module (dropout=False path)."""
    w1, _b1, g1, be1, w2, _b2, g2, be2 = params   # conv biases cancel under train-mode BN
    N, Cin, H, W = x_nchw.shape
    Cout = w1.shape[-1]
    x_nhwc = jnp.transpose(x_nchw, (0, 2, 3, 1))

    cparams = pltpu.CompilerParams(
        dimension_semantics=("parallel",),         # split batch across TCs on v7x
        vmem_limit_bytes=32 * 1024 * 1024)

    # ---- pass 1: conv1 (no bias) + per-image BN1 partial stats ----
    y1, st1 = pl.pallas_call(
        _conv1_stats_kernel,
        grid=(N,),
        in_specs=[pl.BlockSpec((1, H, W, Cin), lambda n: (n, 0, 0, 0)),
                  pl.BlockSpec((3, 3, Cin, Cout), lambda n: (0, 0, 0, 0))],
        out_specs=[pl.BlockSpec((1, H, W, Cout), lambda n: (n, 0, 0, 0)),
                   pl.BlockSpec((1, 2, Cout), lambda n: (n, 0, 0))],
        out_shape=[jax.ShapeDtypeStruct((N, H, W, Cout), jnp.float32),
                   jax.ShapeDtypeStruct((N, 2, Cout), jnp.float32)],
        scratch_shapes=[pltpu.VMEM((H + 2, W + 2, Cin), jnp.float32)],
        compiler_params=cparams,
    )(x_nhwc, w1)

    # ---- pass 2: BN1 + LeakyReLU + conv2 (no bias) + per-image BN2 partial stats ----
    s1, t1 = _bn_affine(st1, g1, be1, N * H * W)
    y2, st2 = pl.pallas_call(
        _bn_lrelu_conv2_kernel,
        grid=(N,),
        in_specs=[pl.BlockSpec((1, H, W, Cout), lambda n: (n, 0, 0, 0)),
                  pl.BlockSpec((1, Cout), lambda n: (0, 0)),
                  pl.BlockSpec((1, Cout), lambda n: (0, 0)),
                  pl.BlockSpec((3, 3, Cout, Cout), lambda n: (0, 0, 0, 0))],
        out_specs=[pl.BlockSpec((1, H, W, Cout), lambda n: (n, 0, 0, 0)),
                   pl.BlockSpec((1, 2, Cout), lambda n: (n, 0, 0))],
        out_shape=[jax.ShapeDtypeStruct((N, H, W, Cout), jnp.float32),
                   jax.ShapeDtypeStruct((N, 2, Cout), jnp.float32)],
        scratch_shapes=[pltpu.VMEM((H + 2, W + 2, Cout), jnp.float32)],
        compiler_params=cparams,
    )(y1, s1, t1, w2)

    # ---- pass 3: BN2 + LeakyReLU, lane-dense output ----
    s2, t2 = _bn_affine(st2, g2, be2, N * H * W)
    out_flat = pl.pallas_call(
        _bn_lrelu_out_kernel,
        grid=(N,),
        in_specs=[pl.BlockSpec((1, H, W, Cout), lambda n: (n, 0, 0, 0)),
                  pl.BlockSpec((1, Cout), lambda n: (0, 0)),
                  pl.BlockSpec((1, Cout), lambda n: (0, 0))],
        out_specs=pl.BlockSpec((1, H, W * Cout), lambda n: (n, 0, 0)),
        out_shape=jax.ShapeDtypeStruct((N, H, W * Cout), x_nchw.dtype),
        compiler_params=cparams,
    )(y2, s2, t2)

    out_nhwc = out_flat.reshape(N, H, W, Cout)     # free metadata reshape
    return jnp.transpose(out_nhwc, (0, 3, 1, 2))   # back to NCHW for module parity


# --------------------------- reference & setup ------------------------------

def ref_double_conv(x_nchw, params):
    """Plain-JAX reference (full PyTorch semantics, including conv biases)."""
    w1, b1, g1, be1, w2, b2, g2, be2 = params

    def conv(x, w, b):
        y = lax.conv_general_dilated(x, w, (1, 1), "SAME",
                                     dimension_numbers=("NHWC", "HWIO", "NHWC"))
        return y + b

    def bn_lrelu(y, g, be):
        mean = jnp.mean(y, axis=(0, 1, 2), keepdims=True)
        var = jnp.mean((y - mean) ** 2, axis=(0, 1, 2), keepdims=True)
        y = (y - mean) * lax.rsqrt(var + EPS) * g + be
        return jnp.where(y >= 0, y, NEG_SLOPE * y)

    x = jnp.transpose(x_nchw, (0, 2, 3, 1)).astype(jnp.float32)
    y = bn_lrelu(conv(x, w1, b1), g1, be1)
    z = bn_lrelu(conv(y, w2, b2), g2, be2)
    return jnp.transpose(z, (0, 3, 1, 2)).astype(x_nchw.dtype)


def init_params(key, cin, cout):
    ks = jax.random.split(key, 8)
    # Conv weights created in PyTorch OIHW then transposed to HWIO for the kernel.
    w1 = jax.random.normal(ks[0], (cout, cin, 3, 3), jnp.float32) * 0.2
    w2 = jax.random.normal(ks[1], (cout, cout, 3, 3), jnp.float32) * 0.2
    b1 = jax.random.normal(ks[2], (cout,), jnp.float32) * 0.1
    b2 = jax.random.normal(ks[3], (cout,), jnp.float32) * 0.1
    g1 = 1.0 + 0.1 * jax.random.normal(ks[4], (cout,), jnp.float32)
    g2 = 1.0 + 0.1 * jax.random.normal(ks[5], (cout,), jnp.float32)
    be1 = 0.1 * jax.random.normal(ks[6], (cout,), jnp.float32)
    be2 = 0.1 * jax.random.normal(ks[7], (cout,), jnp.float32)
    w1 = jnp.transpose(w1, (2, 3, 1, 0))  # -> (3,3,Cin,Cout) HWIO
    w2 = jnp.transpose(w2, (2, 3, 1, 0))
    return (w1, b1, g1, be1, w2, b2, g2, be2)


if __name__ == "__main__":
    key = jax.random.PRNGKey(0)
    k_x, k_p = jax.random.split(key)

    N, Cin, Cout, H, W = 2, 4, 8, 16, 16
    x = jax.random.normal(k_x, (N, Cin, H, W), jnp.float32)
    params = init_params(k_p, Cin, Cout)

    out = jax.block_until_ready(double_conv(x, params))
    ref = jax.block_until_ready(ref_double_conv(x, params))

    assert out.shape == (N, Cout, H, W), out.shape
    assert jnp.allclose(out, ref, rtol=1e-4, atol=1e-4), float(jnp.max(jnp.abs(out - ref)))

    print("KERNEL_OK")
</pallas_src>

<mosaic_0001>
module attributes {stable_mosaic.version = 11 : i64} {
  func.func @_conv1_stats_kernel(%arg0: i32, %arg1: memref<1x16x16x4xf32, #tpu.memory_space<vmem>>, %arg2: memref<3x3x4x8xf32, #tpu.memory_space<vmem>>, %arg3: memref<1x16x16x8xf32, #tpu.memory_space<vmem>>, %arg4: memref<1x2x8xf32, #tpu.memory_space<vmem>>, %arg5: memref<18x18x4xf32, #tpu.memory_space<vmem>>) attributes {dimension_semantics = [#tpu.dimension_semantics<parallel>], iteration_bounds = array<i64: 2>, scalar_prefetch = 0 : i64, scratch_operands = 1 : i64, tpu.core_type = #tpu.core_type<tc>, window_params = [{transform_indices = @transform_0, window_bounds = array<i64: 1, 16, 16, 4>}, {pipeline_mode = #tpu.pipeline_mode<synchronous>, transform_indices = @transform_1, window_bounds = array<i64: 3, 3, 4, 8>}, {transform_indices = @transform_2, window_bounds = array<i64: 1, 16, 16, 8>}, {transform_indices = @transform_3, window_bounds = array<i64: 1, 2, 8>}]} {
    %c0 = arith.constant 0 : index
    %c0_0 = arith.constant 0 : index
    %c0_1 = arith.constant 0 : index
    %c0_2 = arith.constant 0 : index
    %0 = vector.load %arg1[%c0, %c0_0, %c0_1, %c0_2] : memref<1x16x16x4xf32, #tpu.memory_space<vmem>>, vector<1x16x16x4xf32>
    %1 = vector.shape_cast %0 : vector<1x16x16x4xf32> to vector<16x16x4xf32>
    %c1 = arith.constant 1 : index
    %c1_3 = arith.constant 1 : index
    %c0_4 = arith.constant 0 : index
    %2 = vector.load %arg5[%c1, %c1_3, %c0_4] : memref<18x18x4xf32, #tpu.memory_space<vmem>>, vector<16x16x4xf32>
    tpu.vector_store %arg5[%c1, %c1_3, %c0_4], %1 {strides = array<i32>} : memref<18x18x4xf32, #tpu.memory_space<vmem>>, vector<16x16x4xf32>,
    %cst = arith.constant 0.000000e+00 : f32
    %3 = vector.broadcast %cst : f32 to vector<1x18x4xf32>
    %c0_5 = arith.constant 0 : index
    %c0_6 = arith.constant 0 : index
    %c0_7 = arith.constant 0 : index
    %4 = vector.load %arg5[%c0_5, %c0_6, %c0_7] : memref<18x18x4xf32, #tpu.memory_space<vmem>>, vector<1x18x4xf32>
    tpu.vector_store %arg5[%c0_5, %c0_6, %c0_7], %3 {strides = array<i32>} : memref<18x18x4xf32, #tpu.memory_space<vmem>>, vector<1x18x4xf32>,
    %c17 = arith.constant 17 : index
    %c0_8 = arith.constant 0 : index
    %c0_9 = arith.constant 0 : index
    %5 = vector.load %arg5[%c17, %c0_8, %c0_9] : memref<18x18x4xf32, #tpu.memory_space<vmem>>, vector<1x18x4xf32>
    tpu.vector_store %arg5[%c17, %c0_8, %c0_9], %3 {strides = array<i32>} : memref<18x18x4xf32, #tpu.memory_space<vmem>>, vector<1x18x4xf32>,
    %cst_10 = arith.constant 0.000000e+00 : f32
    %6 = vector.broadcast %cst_10 : f32 to vector<16x1x4xf32>
    %c1_11 = arith.constant 1 : index
    %c0_12 = arith.constant 0 : index
    %c0_13 = arith.constant 0 : index
    %7 = vector.load %arg5[%c1_11, %c0_12, %c0_13] : memref<18x18x4xf32, #tpu.memory_space<vmem>>, vector<16x1x4xf32>
    tpu.vector_store %arg5[%c1_11, %c0_12, %c0_13], %6 {strides = array<i32>} : memref<18x18x4xf32, #tpu.memory_space<vmem>>, vector<16x1x4xf32>,
    %c1_14 = arith.constant 1 : index
    %c17_15 = arith.constant 17 : index
    %c0_16 = arith.constant 0 : index
    %8 = vector.load %arg5[%c1_14, %c17_15, %c0_16] : memref<18x18x4xf32, #tpu.memory_space<vmem>>, vector<16x1x4xf32>
    tpu.vector_store %arg5[%c1_14, %c17_15, %c0_16], %6 {strides = array<i32>} : memref<18x18x4xf32, #tpu.memory_space<vmem>>, vector<16x1x4xf32>,
    %cst_17 = arith.constant 0.000000e+00 : f32
    %9 = vector.broadcast %cst_17 : f32 to vector<256x8xf32>
    %c0_18 = arith.constant 0 : index
    %c0_19 = arith.constant 0 : index
    %c0_20 = arith.constant 0 : index
    %10 = vector.load %arg5[%c0_18, %c0_19, %c0_20] : memref<18x18x4xf32, #tpu.memory_space<vmem>>, vector<16x16x4xf32>
    %11 = vector.shape_cast %10 : vector<16x16x4xf32> to vector<256x4xf32>
    %c0_21 = arith.constant 0 : index
    %c0_22 = arith.constant 0 : index
    %c0_23 = arith.constant 0 : index
    %c0_24 = arith.constant 0 : index
    %12 = vector.load %arg2[%c0_21, %c0_22, %c0_23, %c0_24] : memref<3x3x4x8xf32, #tpu.memory_space<vmem>>, vector<1x1x4x8xf32>
    %13 = vector.shape_cast %12 : vector<1x1x4x8xf32> to vector<4x8xf32>
    %cst_25 = arith.constant dense<0.000000e+00> : vector<256x8xf32>
    %14 = tpu.matmul %11, %13, %cst_25 {dimension_numbers = #tpu.dot_dimension_numbers<[1], [0], [0], [1], [0, 0, 1, 1], [], []>} : vector<256x4xf32>, vector<4x8xf32>, vector<256x8xf32> -> vector<256x8xf32>
    %15 = arith.addf %9, %14 : vector<256x8xf32>
    %c0_26 = arith.constant 0 : index
    %c1_27 = arith.constant 1 : index
    %c0_28 = arith.constant 0 : index
    %16 = vector.load %arg5[%c0_26, %c1_27, %c0_28] : memref<18x18x4xf32, #tpu.memory_space<vmem>>, vector<16x16x4xf32>
    %17 = vector.shape_cast %16 : vector<16x16x4xf32> to vector<256x4xf32>
    %c0_29 = arith.constant 0 : index
    %c1_30 = arith.constant 1 : index
    %c0_31 = arith.constant 0 : index
    %c0_32 = arith.constant 0 : index
    %18 = vector.load %arg2[%c0_29, %c1_30, %c0_31, %c0_32] : memref<3x3x4x8xf32, #tpu.memory_space<vmem>>, vector<1x1x4x8xf32>
    %19 = vector.shape_cast %18 : vector<1x1x4x8xf32> to vector<4x8xf32>
    %cst_33 = arith.constant dense<0.000000e+00> : vector<256x8xf32>
    %20 = tpu.matmul %17, %19, %cst_33 {dimension_numbers = #tpu.dot_dimension_numbers<[1], [0], [0], [1], [0, 0, 1, 1], [], []>} : vector<256x4xf32>, vector<4x8xf32>, vector<256x8xf32> -> vector<256x8xf32>
    %21 = arith.addf %15, %20 : vector<256x8xf32>
    %c0_34 = arith.constant 0 : index
    %c2 = arith.constant 2 : index
    %c0_35 = arith.constant 0 : index
    %22 = vector.load %arg5[%c0_34, %c2, %c0_35] : memref<18x18x4xf32, #tpu.memory_space<vmem>>, vector<16x16x4xf32>
    %23 = vector.shape_cast %22 : vector<16x16x4xf32> to vector<256x4xf32>
    %c0_36 = arith.constant 0 : index
    %c2_37 = arith.constant 2 : index
    %c0_38 = arith.constant 0 : index
    %c0_39 = arith.constant 0 : index
    %24 = vector.load %arg2[%c0_36, %c2_37, %c0_38, %c0_39] : memref<3x3x4x8xf32, #tpu.memory_space<vmem>>, vector<1x1x4x8xf32>
    %25 = vector.shape_cast %24 : vector<1x1x4x8xf32> to vector<4x8xf32>
    %cst_40 = arith.constant dense<0.000000e+00> : vector<256x8xf32>
    %26 = tpu.matmul %23, %25, %cst_40 {dimension_numbers = #tpu.dot_dimension_numbers<[1], [0], [0], [1], [0, 0, 1, 1], [], []>} : vector<256x4xf32>, vector<4x8xf32>, vector<256x8xf32> -> vector<256x8xf32>
    %27 = arith.addf %21, %26 : vector<256x8xf32>
    %c1_41 = arith.constant 1 : index
    %c0_42 = arith.constant 0 : index
    %c0_43 = arith.constant 0 : index
    %28 = vector.load %arg5[%c1_41, %c0_42, %c0_43] : memref<18x18x4xf32, #tpu.memory_space<vmem>>, vector<16x16x4xf32>
    %29 = vector.shape_cast %28 : vector<16x16x4xf32> to vector<256x4xf32>
    %c1_44 = arith.constant 1 : index
    %c0_45 = arith.constant 0 : index
    %c0_46 = arith.constant 0 : index
    %c0_47 = arith.constant 0 : index
    %30 = vector.load %arg2[%c1_44, %c0_45, %c0_46, %c0_47] : memref<3x3x4x8xf32, #tpu.memory_space<vmem>>, vector<1x1x4x8xf32>
    %31 = vector.shape_cast %30 : vector<1x1x4x8xf32> to vector<4x8xf32>
    %cst_48 = arith.constant dense<0.000000e+00> : vector<256x8xf32>
    %32 = tpu.matmul %29, %31, %cst_48 {dimension_numbers = #tpu.dot_dimension_numbers<[1], [0], [0], [1], [0, 0, 1, 1], [], []>} : vector<256x4xf32>, vector<4x8xf32>, vector<256x8xf32> -> vector<256x8xf32>
    %33 = arith.addf %27, %32 : vector<256x8xf32>
    %c1_49 = arith.constant 1 : index
    %c1_50 = arith.constant 1 : index
    %c0_51 = arith.constant 0 : index
    %34 = vector.load %arg5[%c1_49, %c1_50, %c0_51] : memref<18x18x4xf32, #tpu.memory_space<vmem>>, vector<16x16x4xf32>
    %35 = vector.shape_cast %34 : vector<16x16x4xf32> to vector<256x4xf32>
    %c1_52 = arith.constant 1 : index
    %c1_53 = arith.constant 1 : index
    %c0_54 = arith.constant 0 : index
    %c0_55 = arith.constant 0 : index
    %36 = vector.load %arg2[%c1_52, %c1_53, %c0_54, %c0_55] : memref<3x3x4x8xf32, #tpu.memory_space<vmem>>, vector<1x1x4x8xf32>
    %37 = vector.shape_cast %36 : vector<1x1x4x8xf32> to vector<4x8xf32>
    %cst_56 = arith.constant dense<0.000000e+00> : vector<256x8xf32>
    %38 = tpu.matmul %35, %37, %cst_56 {dimension_numbers = #tpu.dot_dimension_numbers<[1], [0], [0], [1], [0, 0, 1, 1], [], []>} : vector<256x4xf32>, vector<4x8xf32>, vector<256x8xf32> -> vector<256x8xf32>
    %39 = arith.addf %33, %38 : vector<256x8xf32>
    %c1_57 = arith.constant 1 : index
    %c2_58 = arith.constant 2 : index
    %c0_59 = arith.constant 0 : index
    %40 = vector.load %arg5[%c1_57, %c2_58, %c0_59] : memref<18x18x4xf32, #tpu.memory_space<vmem>>, vector<16x16x4xf32>
    %41 = vector.shape_cast %40 : vector<16x16x4xf32> to vector<256x4xf32>
    %c1_60 = arith.constant 1 : index
    %c2_61 = arith.constant 2 : index
    %c0_62 = arith.constant 0 : index
    %c0_63 = arith.constant 0 : index
    %42 = vector.load %arg2[%c1_60, %c2_61, %c0_62, %c0_63] : memref<3x3x4x8xf32, #tpu.memory_space<vmem>>, vector<1x1x4x8xf32>
    %43 = vector.shape_cast %42 : vector<1x1x4x8xf32> to vector<4x8xf32>
    %cst_64 = arith.constant dense<0.000000e+00> : vector<256x8xf32>
    %44 = tpu.matmul %41, %43, %cst_64 {dimension_numbers = #tpu.dot_dimension_numbers<[1], [0], [0], [1], [0, 0, 1, 1], [], []>} : vector<256x4xf32>, vector<4x8xf32>, vector<256x8xf32> -> vector<256x8xf32>
    %45 = arith.addf %39, %44 : vector<256x8xf32>
    %c2_65 = arith.constant 2 : index
    %c0_66 = arith.constant 0 : index
    %c0_67 = arith.constant 0 : index
    %46 = vector.load %arg5[%c2_65, %c0_66, %c0_67] : memref<18x18x4xf32, #tpu.memory_space<vmem>>, vector<16x16x4xf32>
    %47 = vector.shape_cast %46 : vector<16x16x4xf32> to vector<256x4xf32>
    %c2_68 = arith.constant 2 : index
    %c0_69 = arith.constant 0 : index
    %c0_70 = arith.constant 0 : index
    %c0_71 = arith.constant 0 : index
    %48 = vector.load %arg2[%c2_68, %c0_69, %c0_70, %c0_71] : memref<3x3x4x8xf32, #tpu.memory_space<vmem>>, vector<1x1x4x8xf32>
    %49 = vector.shape_cast %48 : vector<1x1x4x8xf32> to vector<4x8xf32>
    %cst_72 = arith.constant dense<0.000000e+00> : vector<256x8xf32>
    %50 = tpu.matmul %47, %49, %cst_72 {dimension_numbers = #tpu.dot_dimension_numbers<[1], [0], [0], [1], [0, 0, 1, 1], [], []>} : vector<256x4xf32>, vector<4x8xf32>, vector<256x8xf32> -> vector<256x8xf32>
    %51 = arith.addf %45, %50 : vector<256x8xf32>
    %c2_73 = arith.constant 2 : index
    %c1_74 = arith.constant 1 : index
    %c0_75 = arith.constant 0 : index
    %52 = vector.load %arg5[%c2_73, %c1_74, %c0_75] : memref<18x18x4xf32, #tpu.memory_space<vmem>>, vector<16x16x4xf32>
    %53 = vector.shape_cast %52 : vector<16x16x4xf32> to vector<256x4xf32>
    %c2_76 = arith.constant 2 : index
    %c1_77 = arith.constant 1 : index
    %c0_78 = arith.constant 0 : index
    %c0_79 = arith.constant 0 : index
    %54 = vector.load %arg2[%c2_76, %c1_77, %c0_78, %c0_79] : memref<3x3x4x8xf32, #tpu.memory_space<vmem>>, vector<1x1x4x8xf32>
    %55 = vector.shape_cast %54 : vector<1x1x4x8xf32> to vector<4x8xf32>
    %cst_80 = arith.constant dense<0.000000e+00> : vector<256x8xf32>
    %56 = tpu.matmul %53, %55, %cst_80 {dimension_numbers = #tpu.dot_dimension_numbers<[1], [0], [0], [1], [0, 0, 1, 1], [], []>} : vector<256x4xf32>, vector<4x8xf32>, vector<256x8xf32> -> vector<256x8xf32>
    %57 = arith.addf %51, %56 : vector<256x8xf32>
    %c2_81 = arith.constant 2 : index
    %c2_82 = arith.constant 2 : index
    %c0_83 = arith.constant 0 : index
    %58 = vector.load %arg5[%c2_81, %c2_82, %c0_83] : memref<18x18x4xf32, #tpu.memory_space<vmem>>, vector<16x16x4xf32>
    %59 = vector.shape_cast %58 : vector<16x16x4xf32> to vector<256x4xf32>
    %c2_84 = arith.constant 2 : index
    %c2_85 = arith.constant 2 : index
    %c0_86 = arith.constant 0 : index
    %c0_87 = arith.constant 0 : index
    %60 = vector.load %arg2[%c2_84, %c2_85, %c0_86, %c0_87] : memref<3x3x4x8xf32, #tpu.memory_space<vmem>>, vector<1x1x4x8xf32>
    %61 = vector.shape_cast %60 : vector<1x1x4x8xf32> to vector<4x8xf32>
    %cst_88 = arith.constant dense<0.000000e+00> : vector<256x8xf32>
    %62 = tpu.matmul %59, %61, %cst_88 {dimension_numbers = #tpu.dot_dimension_numbers<[1], [0], [0], [1], [0, 0, 1, 1], [], []>} : vector<256x4xf32>, vector<4x8xf32>, vector<256x8xf32> -> vector<256x8xf32>
    %63 = arith.addf %57, %62 : vector<256x8xf32>
    %64 = vector.shape_cast %63 : vector<256x8xf32> to vector<1x16x16x8xf32>
    %c0_89 = arith.constant 0 : index
    %c0_90 = arith.constant 0 : index
    %c0_91 = arith.constant 0 : index
    %c0_92 = arith.constant 0 : index
    %65 = vector.load %arg3[%c0_89, %c0_90, %c0_91, %c0_92] : memref<1x16x16x8xf32, #tpu.memory_space<vmem>>, vector<1x16x16x8xf32>
    tpu.vector_store %arg3[%c0_89, %c0_90, %c0_91, %c0_92], %64 {strides = array<i32>} : memref<1x16x16x8xf32, #tpu.memory_space<vmem>>, vector<1x16x16x8xf32>,
    %cst_93 = arith.constant dense<0.000000e+00> : vector<8xf32>
    %66 = vector.multi_reduction <add>, %63, %cst_93 [0] : vector<256x8xf32> to vector<8xf32>
    %67 = vector.shape_cast %66 : vector<8xf32> to vector<1x8xf32>
    %c0_94 = arith.constant 0 : index
    %c0_95 = arith.constant 0 : index
    %c0_96 = arith.constant 0 : index
    %68 = vector.load %arg4[%c0_94, %c0_95, %c0_96] : memref<1x2x8xf32, #tpu.memory_space<vmem>>, vector<1x1x8xf32>
    %69 = vector.shape_cast %68 : vector<1x1x8xf32> to vector<1x8xf32>
    %70 = vector.shape_cast %67 : vector<1x8xf32> to vector<1x1x8xf32>
    tpu.vector_store %arg4[%c0_94, %c0_95, %c0_96], %70 {strides = array<i32>} : memref<1x2x8xf32, #tpu.memory_space<vmem>>, vector<1x1x8xf32>,
    %71 = arith.mulf %63, %63 : vector<256x8xf32>
    %cst_97 = arith.constant dense<0.000000e+00> : vector<8xf32>
    %72 = vector.multi_reduction <add>, %71, %cst_97 [0] : vector<256x8xf32> to vector<8xf32>
    %73 = vector.shape_cast %72 : vector<8xf32> to vector<1x8xf32>
    %c0_98 = arith.constant 0 : index
    %c1_99 = arith.constant 1 : index
    %c0_100 = arith.constant 0 : index
    %74 = vector.load %arg4[%c0_98, %c1_99, %c0_100] : memref<1x2x8xf32, #tpu.memory_space<vmem>>, vector<1x1x8xf32>
    %75 = vector.shape_cast %74 : vector<1x1x8xf32> to vector<1x8xf32>
    %76 = vector.shape_cast %73 : vector<1x8xf32> to vector<1x1x8xf32>
    tpu.vector_store %arg4[%c0_98, %c1_99, %c0_100], %76 {strides = array<i32>} : memref<1x2x8xf32, #tpu.memory_space<vmem>>, vector<1x1x8xf32>,
    return
  }
  func.func @transform_0(%arg0: i32) -> (i32, i32, i32, i32) {
    %c0_i32 = arith.constant 0 : i32
    %c0_i32_0 = arith.constant 0 : i32
    %c0_i32_1 = arith.constant 0 : i32
    %c0_i32_2 = arith.constant 0 : i32
    return %arg0, %c0_i32, %c0_i32_0, %c0_i32_1 : i32, i32, i32, i32
  }
  func.func @transform_1(%arg0: i32) -> (i32, i32, i32, i32) {
    %c0_i32 = arith.constant 0 : i32
    %c0_i32_0 = arith.constant 0 : i32
    %c0_i32_1 = arith.constant 0 : i32
    %c0_i32_2 = arith.constant 0 : i32
    %c0_i32_3 = arith.constant 0 : i32
    return %c0_i32, %c0_i32_0, %c0_i32_1, %c0_i32_2 : i32, i32, i32, i32
  }
  func.func @transform_2(%arg0: i32) -> (i32, i32, i32, i32) {
    %c0_i32 = arith.constant 0 : i32
    %c0_i32_0 = arith.constant 0 : i32
    %c0_i32_1 = arith.constant 0 : i32
    %c0_i32_2 = arith.constant 0 : i32
    return %arg0, %c0_i32, %c0_i32_0, %c0_i32_1 : i32, i32, i32, i32
  }
  func.func @transform_3(%arg0: i32) -> (i32, i32, i32) {
    %c0_i32 = arith.constant 0 : i32
    %c0_i32_0 = arith.constant 0 : i32
    %c0_i32_1 = arith.constant 0 : i32
    return %arg0, %c0_i32, %c0_i32_0 : i32, i32, i32
  }
}

</mosaic_0001>

<llo_original>
// kernel: tpu_custom_call.1
$region0: #{tpu_custom_call.1}
  #allocation0 [shape = 'u32[]', space=smem, size = 0x4, offset = 0x4, fixed_abs, tag = 'smem constant byte address 0x4 - core index']
  #allocation1 [shape = 'u32[144,128]{1,0:T(1,128)}', space=vmem, size = 0x12000, scoped, tag = 'internal scratch']
  #allocation2 [shape = 'f32[18,18,4]{2,1,0:T(8,128)}', space=vmem, size = 0x36000, scoped, tag = 'scratch operand']
  %s0 = inlined_call_operand.vmem [shape: f32[2,16,16,4], index: 0, kind: input, shape index: {}]
  %s1 = inlined_call_operand.vmem [shape: f32[3,3,4,8], index: 1, kind: input, shape index: {}]
  %s2 = inlined_call_operand.vmem [shape: f32[2,16,16,8], index: 2, kind: output, shape index: {0}]
  %s3 = inlined_call_operand.hbm [shape: f32[2,2,8], index: 3, kind: output, shape index: {1}]
  %4 = xla_tuple %s2, %s3
  %s5 = sld [smem:[#allocation0]]
  $region49: #{tpu_custom_call.1} parent=0
    _
  %s7 = ssub.s32 1, %s5
  %s8 = scalar_select 0, %s7, %s5
  $region1: #{tpu_custom_call.1} parent=0
    #allocation3 [shape = 'u8[2048]{0}', space=vmem, size = 0x800, scoped, tag = 'output window, operand 1']
    #allocation4 [shape = 's32[2]{0}', space=sflag, size = 0x8, scoped, tag = 'scoped memory for tpu_custom_call.1']
    %9 = vsyncpa [#allocation4], 0
    %s10 = scalar_lea.sflag [#allocation4], 1
    %11 = vsyncpa %s10, 0
    loop: start=0, step=1, limit=4
    $region2: #{tpu_custom_call.1} parent=1 // loop_pre_header
      _
    $region3: #{tpu_custom_call.1} parent=1 // loop_header
      %s13 = sphi 0, %s17
      %p14 = scmp.ge.s32.totalorder %s13, 4
      %s23 = sphi 0, %s25
      %s26 = sphi 0, %s23
      %s27 = sphi 0, %s26
      %s43 = sphi 0, %s27
      %s47 = sphi 0, %s47
      %s49 = sphi 0, %s47
      %s50 = sphi 0, %s49
      %s64 = sphi 0, %s50
      %s70 = sphi 0, %s72
      %s73 = sphi 0, %s70
      %s74 = sphi 0, %s73
      %s90 = sphi 0, %s74
      %s96 = sphi 0, %s98
      %s99 = sphi 0, %s96
      %s100 = sphi 0, %s99
      %s116 = sphi 0, %s100
    $region4: #{tpu_custom_call.1} parent=1 // loop_header_branch
      %16 = sbr.rel (%p14) target = $region8
    $region5: #{tpu_custom_call.1} parent=1 // loop_body
      %s18 = ssub.s32 %s13, 1
      %s19 = ssub.s32 %s13, 2
      %s20 = sadd.s32 %s13, 1
      %s21 = ssub.s32 %s13, %s20
      %p22 = scmp.eq.s32.totalorder %s21, 0
      %s24 = sadd.s32 %s23, 1
      %s25 = scalar_select %p22, %s23, %s24
      %p28 = pneg %p22
      %p29 = scmp.eq.s32.totalorder %s13, 1
      %p30 = por %p28, %p29
      %p31 = scmp.ne.s32.totalorder %s23, %s26
      %p32 = scmp.eq.s32.totalorder %s13, 0
      %p33 = por %p31, %p32
      %p34 = scmp.ne.s32.totalorder %s23, %s26
      %p35 = scmp.eq.s32.totalorder %s18, 1
      %p36 = por %p34, %p35
      %p37 = scmp.ne.s32.totalorder %s26, %s27
      %p38 = scmp.eq.s32.totalorder %s18, 0
      %p39 = por %p37, %p38
      %p40 = scmp.ne.s32.totalorder %s26, %s27
      %p41 = scmp.eq.s32.totalorder %s19, 1
      %p42 = por %p40, %p41
      %p44 = scmp.ne.s32.totalorder %s27, %s43
      %p45 = scmp.eq.s32.totalorder %s19, 0
      %p46 = por %p44, %p45
      %s48 = sadd.s32 %s47, 1
      %p51 = scmp.eq.s32.totalorder %s13, 1
      %p52 = scmp.ne.s32.totalorder %s47, %s49
      %p53 = scmp.eq.s32.totalorder %s13, 0
      %p54 = por %p52, %p53
      %p55 = scmp.ne.s32.totalorder %s47, %s49
      %p56 = scmp.eq.s32.totalorder %s18, 1
      %p57 = por %p55, %p56
      %p58 = scmp.ne.s32.totalorder %s49, %s50
      %p59 = scmp.eq.s32.totalorder %s18, 0
      %p60 = por %p58, %p59
      %p61 = scmp.ne.s32.totalorder %s49, %s50
      %p62 = scmp.eq.s32.totalorder %s19, 1
      %p63 = por %p61, %p62
      %p65 = scmp.ne.s32.totalorder %s50, %s64
      %p66 = scmp.eq.s32.totalorder %s19, 0
      %p67 = por %p65, %p66
      %s68 = ssub.s32 %s13, %s20
      %p69 = scmp.eq.s32.totalorder %s68, 0
      %s71 = sadd.s32 %s70, 1
      %s72 = scalar_select %p69, %s70, %s71
      %p75 = pneg %p69
      %p76 = scmp.eq.s32.totalorder %s13, 1
      %p77 = por %p75, %p76
      %p78 = scmp.ne.s32.totalorder %s70, %s73
      %p79 = scmp.eq.s32.totalorder %s13, 0
      %p80 = por %p78, %p79
      %p81 = scmp.ne.s32.totalorder %s70, %s73
      %p82 = scmp.eq.s32.totalorder %s18, 1
      %p83 = por %p81, %p82
      %p84 = scmp.ne.s32.totalorder %s73, %s74
      %p85 = scmp.eq.s32.totalorder %s18, 0
      %p86 = por %p84, %p85
      %p87 = scmp.ne.s32.totalorder %s73, %s74
      %p88 = scmp.eq.s32.totalorder %s19, 1
      %p89 = por %p87, %p88
      %p91 = scmp.ne.s32.totalorder %s74, %s90
      %p92 = scmp.eq.s32.totalorder %s19, 0
      %p93 = por %p91, %p92
      %s94 = ssub.s32 %s13, %s20
      %p95 = scmp.eq.s32.totalorder %s94, 0
      %s97 = sadd.s32 %s96, 1
      %s98 = scalar_select %p95, %s96, %s97
      %p101 = pneg %p95
      %p102 = scmp.eq.s32.totalorder %s13, 1
      %p103 = por %p101, %p102
      %p104 = scmp.ne.s32.totalorder %s96, %s99
      %p105 = scmp.eq.s32.totalorder %s13, 0
      %p106 = por %p104, %p105
      %p107 = scmp.ne.s32.totalorder %s96, %s99
      %p108 = scmp.eq.s32.totalorder %s18, 1
      %p109 = por %p107, %p108
      %p110 = scmp.ne.s32.totalorder %s99, %s100
      %p111 = scmp.eq.s32.totalorder %s18, 0
      %p112 = por %p110, %p111
      %p113 = scmp.ne.s32.totalorder %s99, %s100
      %p114 = scmp.eq.s32.totalorder %s19, 1
      %p115 = por %p113, %p114
      %p117 = scmp.ne.s32.totalorder %s100, %s116
      %p118 = scmp.eq.s32.totalorder %s19, 0
      %p119 = por %p117, %p118
      %p120 = scmp.le.s32.totalorder 1, %s13
      %p121 = scmp.lt.s32.totalorder %s13, 3
      %p122 = pnand %p120, %p121
      %p123 = pneg %p122
      // Predicated region
      $region9: #{tpu_custom_call.1} parent=5 // pred_check
        _
      $region10: #{tpu_custom_call.1} parent=5 // pred_check_branch
        %125 = sbr.rel (%p122) target = $region12
      $region11: #{tpu_custom_call.1} parent=5 // pred_region
        %s126 = ssub.s32 %s13, 1
        // Predicated region
        $region13: #{tpu_custom_call.1} parent=11 // pred_check
          %p127 = pneg %p60
        $region14: #{tpu_custom_call.1} parent=11 // pred_check_branch
          %129 = sbr.rel (%p127) target = $region16
        $region15: #{tpu_custom_call.1} parent=11 // pred_region
          _
        $region16: #{tpu_custom_call.1} parent=11 // pred_fallthru
          _
      $region12: #{tpu_custom_call.1} parent=5 // pred_fallthru
        _
      %p130 = scmp.lt.s32.totalorder %s13, 2
      // Predicated region
      $region17: #{tpu_custom_call.1} parent=5 // pred_check
        %p131 = pneg %p130
      $region18: #{tpu_custom_call.1} parent=5 // pred_check_branch
        %133 = sbr.rel (%p131) target = $region20
      $region19: #{tpu_custom_call.1} parent=5 // pred_region
        // Predicated region
        $region21: #{tpu_custom_call.1} parent=19 // pred_check
          %p134 = pneg %p33
        $region22: #{tpu_custom_call.1} parent=19 // pred_check_branch
          %136 = sbr.rel (%p134) target = $region24
        $region23: #{tpu_custom_call.1} parent=19 // pred_region
          %p137 = scmp.lt.s32.totalorder %s13, 1
          %s138 = scalar_select %p137, %s13, 1
          %s139 = smul.addr %s138, 32
          %s140 = smul.addr %s139, 8
          %s141 = scalar_lea.vmem %s0, %s140
        $region24: #{tpu_custom_call.1} parent=19 // pred_fallthru
          _
      $region20: #{tpu_custom_call.1} parent=5 // pred_fallthru
        _
      %p142 = scmp.le.s32.totalorder 1, %s13
      %p143 = scmp.lt.s32.totalorder %s13, 3
      %p144 = pnand %p142, %p143
      %p145 = pneg %p144
      // Predicated region
      $region25: #{tpu_custom_call.1} parent=5 // pred_check
        _
      $region26: #{tpu_custom_call.1} parent=5 // pred_check_branch
        %147 = sbr.rel (%p144) target = $region28
      $region27: #{tpu_custom_call.1} parent=5 // pred_region
        %s148 = ssub.s32 %s13, 1
        %p149 = scmp.lt.s32.totalorder %s18, 1
        %s150 = scalar_select %p149, %s18, 1
        %s151 = smul.addr %s150, 32
        %s152 = smul.addr %s151, 8
        %s153 = scalar_lea.vmem %s0, %s152
        %p154 = pneg %p39
        %p155 = pneg %p36
        %p156 = pneg %p60
        %p157 = pneg %p57
        %p158 = pneg %p86
        %p159 = pneg %p83
        %p160 = scmp.lt.s32.totalorder %s18, 1
        %s161 = scalar_select %p160, %s18, 1
        %s162 = smul.addr %s161, 32
        %s163 = smul.addr %s162, 8
        %s164 = scalar_lea.vmem %s2, %s163
        %p165 = pneg %p112
        %p166 = pneg %p109
        %s167 = sand.u32 %s99, 1
        %s168 = scalar_lea.sflag [#allocation4], %s167
        %s169 = sand.u32 %s99, 1
        %s170 = smul.addr %s169, 2
        %s171 = scalar_lea.vmem [#allocation3], %s170
        %p172 = scmp.lt.s32.totalorder %s18, 1
        %s173 = scalar_select %p172, %s18, 1
        %s174 = smul.addr %s173, 32
        %s175 = smul.addr %s174, 8
        %s176 = scalar_lea.vmem %s0, %s175
        %p177 = scmp.lt.s32.totalorder %s18, 1
        %s178 = scalar_select %p177, %s18, 1
        %s179 = smul.addr %s178, 32
        %s180 = smul.addr %s179, 8
        %s181 = scalar_lea.vmem %s2, %s180
        %v182 = vld [vmem:[%s176] sm:$0xff]
        %v183 = vld [vmem:[%s176 + $0x8] sm:$0xff]
        %v184 = vld [vmem:[%s176 + $0x10] sm:$0xff]
        %v185 = vld [vmem:[%s176 + $0x18] sm:$0xff]
        %v186 = vld [vmem:[%s176 + $0x20] sm:$0xff]
        %v187 = vld [vmem:[%s176 + $0x28] sm:$0xff]
        %v188 = vld [vmem:[%s176 + $0x30] sm:$0xff]
        %v189 = vld [vmem:[%s176 + $0x38] sm:$0xff]
        %v190 = vld [vmem:[%s176 + $0x40] sm:$0xff]
        %v191 = vld [vmem:[%s176 + $0x48] sm:$0xff]
        %v192 = vld [vmem:[%s176 + $0x50] sm:$0xff]
        %v193 = vld [vmem:[%s176 + $0x58] sm:$0xff]
        %v194 = vld [vmem:[%s176 + $0x60] sm:$0xff]
        %v195 = vld [vmem:[%s176 + $0x68] sm:$0xff]
        %v196 = vld [vmem:[%s176 + $0x70] sm:$0xff]
        %v197 = vld [vmem:[%s176 + $0x78] sm:$0xff]
        %v198 = vld [vmem:[%s176 + $0x80] sm:$0xff]
        %v199 = vld [vmem:[%s176 + $0x88] sm:$0xff]
        %v200 = vld [vmem:[%s176 + $0x90] sm:$0xff]
        %v201 = vld [vmem:[%s176 + $0x98] sm:$0xff]
        %v202 = vld [vmem:[%s176 + $0xa0] sm:$0xff]
        %v203 = vld [vmem:[%s176 + $0xa8] sm:$0xff]
        %v204 = vld [vmem:[%s176 + $0xb0] sm:$0xff]
        %v205 = vld [vmem:[%s176 + $0xb8] sm:$0xff]
        %v206 = vld [vmem:[%s176 + $0xc0] sm:$0xff]
        %v207 = vld [vmem:[%s176 + $0xc8] sm:$0xff]
        %v208 = vld [vmem:[%s176 + $0xd0] sm:$0xff]
        %v209 = vld [vmem:[%s176 + $0xd8] sm:$0xff]
        %v210 = vld [vmem:[%s176 + $0xe0] sm:$0xff]
        %v211 = vld [vmem:[%s176 + $0xe8] sm:$0xff]
        %v212 = vld [vmem:[%s176 + $0xf0] sm:$0xff]
        %v213 = vld [vmem:[%s176 + $0xf8] sm:$0xff]
        %s214 = scalar_lea.vmem [#allocation2], 24
        %vm215 = vcmask 31744
        %216 = vst.msk [vmem:[%s214 + $0x1] sm:$0xff] %vm215, %v182
        %217 = vst.msk [vmem:[%s214 + $0x9] sm:$0xff] %vm215, %v183
        %218 = vst.msk [vmem:[%s214 + $0x19] sm:$0xff] %vm215, %v184
        %219 = vst.msk [vmem:[%s214 + $0x21] sm:$0xff] %vm215, %v185
        %220 = vst.msk [vmem:[%s214 + $0x31] sm:$0xff] %vm215, %v186
        %221 = vst.msk [vmem:[%s214 + $0x39] sm:$0xff] %vm215, %v187
        %222 = vst.msk [vmem:[%s214 + $0x49] sm:$0xff] %vm215, %v188
        %223 = vst.msk [vmem:[%s214 + $0x51] sm:$0xff] %vm215, %v189
        %224 = vst.msk [vmem:[%s214 + $0x61] sm:$0xff] %vm215, %v190
        %225 = vst.msk [vmem:[%s214 + $0x69] sm:$0xff] %vm215, %v191
        %226 = vst.msk [vmem:[%s214 + $0x79] sm:$0xff] %vm215, %v192
        %227 = vst.msk [vmem:[%s214 + $0x81] sm:$0xff] %vm215, %v193
        %228 = vst.msk [vmem:[%s214 + $0x91] sm:$0xff] %vm215, %v194
        %229 = vst.msk [vmem:[%s214 + $0x99] sm:$0xff] %vm215, %v195
        %230 = vst.msk [vmem:[%s214 + $0xa9] sm:$0xff] %vm215, %v196
        %231 = vst.msk [vmem:[%s214 + $0xb1] sm:$0xff] %vm215, %v197
        %232 = vst.msk [vmem:[%s214 + $0xc1] sm:$0xff] %vm215, %v198
        %233 = vst.msk [vmem:[%s214 + $0xc9] sm:$0xff] %vm215, %v199
        %234 = vst.msk [vmem:[%s214 + $0xd9] sm:$0xff] %vm215, %v200
        %235 = vst.msk [vmem:[%s214 + $0xe1] sm:$0xff] %vm215, %v201
        %236 = vst.msk [vmem:[%s214 + $0xf1] sm:$0xff] %vm215, %v202
        %237 = vst.msk [vmem:[%s214 + $0xf9] sm:$0xff] %vm215, %v203
        %238 = vst.msk [vmem:[%s214 + $0x109] sm:$0xff] %vm215, %v204
        %239 = vst.msk [vmem:[%s214 + $0x111] sm:$0xff] %vm215, %v205
        %240 = vst.msk [vmem:[%s214 + $0x121] sm:$0xff] %vm215, %v206
        %241 = vst.msk [vmem:[%s214 + $0x129] sm:$0xff] %vm215, %v207
        %242 = vst.msk [vmem:[%s214 + $0x139] sm:$0xff] %vm215, %v208
        %243 = vst.msk [vmem:[%s214 + $0x141] sm:$0xff] %vm215, %v209
        %244 = vst.msk [vmem:[%s214 + $0x151] sm:$0xff] %vm215, %v210
        %245 = vst.msk [vmem:[%s214 + $0x159] sm:$0xff] %vm215, %v211
        %246 = vst.msk [vmem:[%s214 + $0x169] sm:$0xff] %vm215, %v212
        %247 = vst.msk [vmem:[%s214 + $0x171] sm:$0xff] %vm215, %v213
        %248 = vst.msk [vmem:[#allocation2] sm:$0xff] %vm215, 0.0
        %249 = vst.msk [vmem:[#allocation2 + $0x8] sm:$0xff] %vm215, 0.0
        %vm250 = vcmask 25600
        %251 = vst.msk [vmem:[#allocation2 + $0x10] sm:$0x3] %vm250, 0.0
        %s252 = scalar_lea.vmem [#allocation2], 408
        %253 = vst.msk [vmem:[%s252] sm:$0xff] %vm215, 0.0
        %254 = vst.msk [vmem:[%s252 + $0x8] sm:$0xff] %vm215, 0.0
        %255 = vst.msk [vmem:[%s252 + $0x10] sm:$0x3] %vm250, 0.0
        %vm256 = vcmask 24576
        %257 = vst.msk [vmem:[%s214] sm:$0x1] %vm256, 0.0
        %258 = vst.msk [vmem:[%s214 + $0x18] sm:$0x1] %vm256, 0.0
        %259 = vst.msk [vmem:[%s214 + $0x30] sm:$0x1] %vm256, 0.0
        %260 = vst.msk [vmem:[%s214 + $0x48] sm:$0x1] %vm256, 0.0
        %261 = vst.msk [vmem:[%s214 + $0x60] sm:$0x1] %vm256, 0.0
        %262 = vst.msk [vmem:[%s214 + $0x78] sm:$0x1] %vm256, 0.0
        %263 = vst.msk [vmem:[%s214 + $0x90] sm:$0x1] %vm256, 0.0
        %264 = vst.msk [vmem:[%s214 + $0xa8] sm:$0x1] %vm256, 0.0
        %265 = vst.msk [vmem:[%s214 + $0xc0] sm:$0x1] %vm256, 0.0
        %266 = vst.msk [vmem:[%s214 + $0xd8] sm:$0x1] %vm256, 0.0
        %267 = vst.msk [vmem:[%s214 + $0xf0] sm:$0x1] %vm256, 0.0
        %268 = vst.msk [vmem:[%s214 + $0x108] sm:$0x1] %vm256, 0.0
        %269 = vst.msk [vmem:[%s214 + $0x120] sm:$0x1] %vm256, 0.0
        %270 = vst.msk [vmem:[%s214 + $0x138] sm:$0x1] %vm256, 0.0
        %271 = vst.msk [vmem:[%s214 + $0x150] sm:$0x1] %vm256, 0.0
        %272 = vst.msk [vmem:[%s214 + $0x168] sm:$0x1] %vm256, 0.0
        %273 = vst.msk [vmem:[%s214 + $0x11] sm:$0x1] %vm256, 0.0
        %274 = vst.msk [vmem:[%s214 + $0x29] sm:$0x1] %vm256, 0.0
        %275 = vst.msk [vmem:[%s214 + $0x41] sm:$0x1] %vm256, 0.0
        %276 = vst.msk [vmem:[%s214 + $0x59] sm:$0x1] %vm256, 0.0
        %277 = vst.msk [vmem:[%s214 + $0x71] sm:$0x1] %vm256, 0.0
        %278 = vst.msk [vmem:[%s214 + $0x89] sm:$0x1] %vm256, 0.0
        %279 = vst.msk [vmem:[%s214 + $0xa1] sm:$0x1] %vm256, 0.0
        %280 = vst.msk [vmem:[%s214 + $0xb9] sm:$0x1] %vm256, 0.0
        %281 = vst.msk [vmem:[%s214 + $0xd1] sm:$0x1] %vm256, 0.0
        %282 = vst.msk [vmem:[%s214 + $0xe9] sm:$0x1] %vm256, 0.0
        %283 = vst.msk [vmem:[%s214 + $0x101] sm:$0x1] %vm256, 0.0
        %284 = vst.msk [vmem:[%s214 + $0x119] sm:$0x1] %vm256, 0.0
        %285 = vst.msk [vmem:[%s214 + $0x131] sm:$0x1] %vm256, 0.0
        %286 = vst.msk [vmem:[%s214 + $0x149] sm:$0x1] %vm256, 0.0
        %287 = vst.msk [vmem:[%s214 + $0x161] sm:$0x1] %vm256, 0.0
        %288 = vst.msk [vmem:[%s214 + $0x179] sm:$0x1] %vm256, 0.0
        %v289 = vld [vmem:[#allocation2] sm:$0xff]
        %v290 = vld [vmem:[#allocation2 + $0x8] sm:$0xff]
        %v291 = vld [vmem:[#allocation2 + $0x18] sm:$0xff]
        %v292 = vld [vmem:[#allocation2 + $0x20] sm:$0xff]
        %v293 = vld [vmem:[#allocation2 + $0x30] sm:$0xff]
        %v294 = vld [vmem:[#allocation2 + $0x38] sm:$0xff]
        %v295 = vld [vmem:[#allocation2 + $0x48] sm:$0xff]
        %v296 = vld [vmem:[#allocation2 + $0x50] sm:$0xff]
        %v297 = vld [vmem:[#allocation2 + $0x60] sm:$0xff]
        %v298 = vld [vmem:[#allocation2 + $0x68] sm:$0xff]
        %v299 = vld [vmem:[#allocation2 + $0x78] sm:$0xff]
        %v300 = vld [vmem:[#allocation2 + $0x80] sm:$0xff]
        %v301 = vld [vmem:[#allocation2 + $0x90] sm:$0xff]
        %v302 = vld [vmem:[#allocation2 + $0x98] sm:$0xff]
        %v303 = vld [vmem:[#allocation2 + $0xa8] sm:$0xff]
        %v304 = vld [vmem:[#allocation2 + $0xb0] sm:$0xff]
        %v305 = vld [vmem:[#allocation2 + $0xc0] sm:$0xff]
        %v306 = vld [vmem:[#allocation2 + $0xc8] sm:$0xff]
        %v307 = vld [vmem:[#allocation2 + $0xd8] sm:$0xff]
        %v308 = vld [vmem:[#allocation2 + $0xe0] sm:$0xff]
        %v309 = vld [vmem:[#allocation2 + $0xf0] sm:$0xff]
        %v310 = vld [vmem:[#allocation2 + $0xf8] sm:$0xff]
        %v311 = vld [vmem:[#allocation2 + $0x108] sm:$0xff]
        %v312 = vld [vmem:[#allocation2 + $0x110] sm:$0xff]
        %v313 = vld [vmem:[#allocation2 + $0x120] sm:$0xff]
        %v314 = vld [vmem:[#allocation2 + $0x128] sm:$0xff]
        %v315 = vld [vmem:[#allocation2 + $0x138] sm:$0xff]
        %v316 = vld [vmem:[#allocation2 + $0x140] sm:$0xff]
        %v317 = vld [vmem:[#allocation2 + $0x150] sm:$0xff]
        %v318 = vld [vmem:[#allocation2 + $0x158] sm:$0xff]
        %v319 = vld [vmem:[#allocation2 + $0x168] sm:$0xff]
        %v320 = vld [vmem:[#allocation2 + $0x170] sm:$0xff]
        %v321 = vld [vmem:[%s1] sm:$0xf]
        %v322 = vld [vmem:[#allocation2 + $0x1] sm:$0xff]
        %v323 = vld [vmem:[#allocation2 + $0x9] sm:$0xff]
        %v324 = vld [vmem:[#allocation2 + $0x19] sm:$0xff]
        %v325 = vld [vmem:[#allocation2 + $0x21] sm:$0xff]
        %v326 = vld [vmem:[#allocation2 + $0x31] sm:$0xff]
        %v327 = vld [vmem:[#allocation2 + $0x39] sm:$0xff]
        %v328 = vld [vmem:[#allocation2 + $0x49] sm:$0xff]
        %v329 = vld [vmem:[#allocation2 + $0x51] sm:$0xff]
        %v330 = vld [vmem:[#allocation2 + $0x61] sm:$0xff]
        %v331 = vld [vmem:[#allocation2 + $0x69] sm:$0xff]
        %v332 = vld [vmem:[#allocation2 + $0x79] sm:$0xff]
        %v333 = vld [vmem:[#allocation2 + $0x81] sm:$0xff]
        %v334 = vld [vmem:[#allocation2 + $0x91] sm:$0xff]
        %v335 = vld [vmem:[#allocation2 + $0x99] sm:$0xff]
        %v336 = vld [vmem:[#allocation2 + $0xa9] sm:$0xff]
        %v337 = vld [vmem:[#allocation2 + $0xb1] sm:$0xff]
        %v338 = vld [vmem:[#allocation2 + $0xc1] sm:$0xff]
        %v339 = vld [vmem:[#allocation2 + $0xc9] sm:$0xff]
        %v340 = vld [vmem:[#allocation2 + $0xd9] sm:$0xff]
        %v341 = vld [vmem:[#allocation2 + $0xe1] sm:$0xff]
        %v342 = vld [vmem:[#allocation2 + $0xf1] sm:$0xff]
        %v343 = vld [vmem:[#allocation2 + $0xf9] sm:$0xff]
        %v344 = vld [vmem:[#allocation2 + $0x109] sm:$0xff]
        %v345 = vld [vmem:[#allocation2 + $0x111] sm:$0xff]
        %v346 = vld [vmem:[#allocation2 + $0x121] sm:$0xff]
        %v347 = vld [vmem:[#allocation2 + $0x129] sm:$0xff]
        %v348 = vld [vmem:[#allocation2 + $0x139] sm:$0xff]
        %v349 = vld [vmem:[#allocation2 + $0x141] sm:$0xff]
        %v350 = vld [vmem:[#allocation2 + $0x151] sm:$0xff]
        %v351 = vld [vmem:[#allocation2 + $0x159] sm:$0xff]
        %v352 = vld [vmem:[#allocation2 + $0x169] sm:$0xff]
        %v353 = vld [vmem:[#allocation2 + $0x171] sm:$0xff]
        %s354 = scalar_lea.vmem %s1, 4
        %v355 = vld [vmem:[%s354] sm:$0xf]
        %v357 = vsel %vm215, %v322, 0
        %v360 = vsel %vm215, %v323, 0
        %v363 = vsel %vm215, %v324, 0
        %v366 = vsel %vm215, %v325, 0
        %v369 = vsel %vm215, %v326, 0
        %v372 = vsel %vm215, %v327, 0
        %v375 = vsel %vm215, %v328, 0
        %v378 = vsel %vm215, %v329, 0
        %v381 = vsel %vm215, %v330, 0
        %v384 = vsel %vm215, %v331, 0
        %v387 = vsel %vm215, %v332, 0
        %v390 = vsel %vm215, %v333, 0
        %v393 = vsel %vm215, %v334, 0
        %v396 = vsel %vm215, %v335, 0
        %v399 = vsel %vm215, %v336, 0
        %v402 = vsel %vm215, %v337, 0
        %v405 = vsel %vm215, %v338, 0
        %v408 = vsel %vm215, %v339, 0
        %v411 = vsel %vm215, %v340, 0
        %v414 = vsel %vm215, %v341, 0
        %v417 = vsel %vm215, %v342, 0
        %v420 = vsel %vm215, %v343, 0
        %v423 = vsel %vm215, %v344, 0
        %v426 = vsel %vm215, %v345, 0
        %v429 = vsel %vm215, %v346, 0
        %v432 = vsel %vm215, %v347, 0
        %v435 = vsel %vm215, %v348, 0
        %v438 = vsel %vm215, %v349, 0
        %v441 = vsel %vm215, %v350, 0
        %v444 = vsel %vm215, %v351, 0
        %v447 = vsel %vm215, %v352, 0
        %v450 = vsel %vm215, %v353, 0
        %vm452 = vcmask 1043456
        %v454 = vsel %vm452, %v355, 0
        %456 = vmatprep.subr.mxu0 0.0
        %457 = vmatpush1.msra.mxu0 %v454
        %458 = vmatprep.subr.mxu0 0.0
        %459 = vmatpush1.msra.mxu0 0.0
        %460 = vmatprep.subr.mxu0 0.0
        %461 = vmatpush1.msra.mxu0 0.0
        %462 = vmatprep.subr.mxu0 0.0
        %463 = vmatpush1.msra.mxu0 0.0
        %464 = vmatprep.subr.mxu0 0.0
        %465 = vmatpush1.msra.mxu0 0.0
        %466 = vmatprep.subr.mxu0 0.0
        %467 = vmatpush1.msra.mxu0 0.0
        %468 = vmatprep.subr.mxu0 0.0
        %469 = vmatpush1.msra.mxu0 0.0
        %470 = vmatprep.subr.mxu0 0.0
        %471 = vmatpush1.msra.mxu0 0.0
        %472 = vmatprep.subr.mxu0 0.0
        %473 = vmatpush1.msra.mxu0 0.0
        %474 = vmatprep.subr.mxu0 0.0
        %475 = vmatpush1.msra.mxu0 0.0
        %476 = vmatprep.subr.mxu0 0.0
        %477 = vmatpush1.msra.mxu0 0.0
        %478 = vmatprep.subr.mxu0 0.0
        %479 = vmatpush1.msra.mxu0 0.0
        %480 = vmatprep.subr.mxu0 0.0
        %481 = vmatpush1.msra.mxu0 0.0
        %482 = vmatprep.subr.mxu0 0.0
        %483 = vmatpush1.msra.mxu0 0.0
        %484 = vmatprep.subr.mxu0 0.0
        %485 = vmatpush1.msra.mxu0 0.0
        %486 = vmatprep.subr.mxu0 0.0
        %487 = vmatpush1.msra.mxu0 0.0
        %488 = vmatprep.subr.mxu0 0.0
        %489 = vmatpush1.msra.mxu0 0.0
        %490 = vmatprep.subr.mxu0 0.0
        %491 = vmatpush1.msra.mxu0 0.0
        %492 = vmatprep.subr.mxu0 0.0
        %493 = vmatpush1.msra.mxu0 0.0
        %494 = vmatprep.subr.mxu0 0.0
        %495 = vmatpush1.msra.mxu0 0.0
        %496 = vmatprep.subr.mxu0 0.0
        %497 = vmatpush1.msra.mxu0 0.0
        %498 = vmatprep.subr.mxu0 0.0
        %499 = vmatpush1.msra.mxu0 0.0
        %500 = vmatprep.subr.mxu0 0.0
        %501 = vmatpush1.msra.mxu0 0.0
        %502 = vmatprep.subr.mxu0 0.0
        %503 = vmatpush1.msra.mxu0 0.0
        %504 = vmatprep.subr.mxu0 0.0
        %505 = vmatpush1.msra.mxu0 0.0
        %506 = vmatprep.subr.mxu0 0.0
        %507 = vmatpush1.msra.mxu0 0.0
        %508 = vmatprep.subr.mxu0 0.0
        %509 = vmatpush1.msra.mxu0 0.0
        %510 = vmatprep.subr.mxu0 0.0
        %511 = vmatpush1.msra.mxu0 0.0
        %512 = vmatprep.subr.mxu0 0.0
        %513 = vmatpush1.msra.mxu0 0.0
        %514 = vmatprep.subr.mxu0 0.0
        %515 = vmatpush1.msra.mxu0 0.0
        %516 = vmatprep.subr.mxu0 0.0
        %517 = vmatpush1.msra.mxu0 0.0
        %518 = vmatprep.subr.mxu0 0.0
        %519 = vmatpush1.msra.mxu0 0.0
        %520 = vmatprep.mubr.f32.mxu0 0.0
        %521 = vmatmul.mubr.f32.gmra.mrb[0].mxu0 %v357
        %v522 = vpop.f32.mrb[0].mxu0
        %v523 = vadd.f32 0.0, %v522
        %v524 = vpop.f32.mrb[0].mxu0
        %525 = vmatprep.mubr.f32.mxu0 0.0
        %526 = vmatmul.mubr.f32.gmra.mrb[0].mxu0 %v360
        %v527 = vpop.f32.mrb[0].mxu0
        %v528 = vadd.f32 0.0, %v527
        %v529 = vpop.f32.mrb[0].mxu0
        %530 = vmatprep.mubr.f32.mxu0 0.0
        %531 = vmatmul.mubr.f32.gmra.mrb[0].mxu0 %v363
        %v532 = vpop.f32.mrb[0].mxu0
        %v533 = vadd.f32 0.0, %v532
        %v534 = vpop.f32.mrb[0].mxu0
        %535 = vmatprep.mubr.f32.mxu0 0.0
        %536 = vmatmul.mubr.f32.gmra.mrb[0].mxu0 %v366
        %v537 = vpop.f32.mrb[0].mxu0
        %v538 = vadd.f32 0.0, %v537
        %v539 = vpop.f32.mrb[0].mxu0
        %540 = vmatprep.mubr.f32.mxu0 0.0
        %541 = vmatmul.mubr.f32.gmra.mrb[0].mxu0 %v369
        %v542 = vpop.f32.mrb[0].mxu0
        %v543 = vadd.f32 0.0, %v542
        %v544 = vpop.f32.mrb[0].mxu0
        %545 = vmatprep.mubr.f32.mxu0 0.0
        %546 = vmatmul.mubr.f32.gmra.mrb[0].mxu0 %v372
        %v547 = vpop.f32.mrb[0].mxu0
        %v548 = vadd.f32 0.0, %v547
        %v549 = vpop.f32.mrb[0].mxu0
        %550 = vmatprep.mubr.f32.mxu0 0.0
        %551 = vmatmul.mubr.f32.gmra.mrb[0].mxu0 %v375
        %v552 = vpop.f32.mrb[0].mxu0
        %v553 = vadd.f32 0.0, %v552
        %v554 = vpop.f32.mrb[0].mxu0
        %555 = vmatprep.mubr.f32.mxu0 0.0
        %556 = vmatmul.mubr.f32.gmra.mrb[0].mxu0 %v378
        %v557 = vpop.f32.mrb[0].mxu0
        %v558 = vadd.f32 0.0, %v557
        %v559 = vpop.f32.mrb[0].mxu0
        %560 = vmatprep.mubr.f32.mxu0 0.0
        %561 = vmatmul.mubr.f32.gmra.mrb[0].mxu0 %v381
        %v562 = vpop.f32.mrb[0].mxu0
        %v563 = vadd.f32 0.0, %v562
        %v564 = vpop.f32.mrb[0].mxu0
        %565 = vmatprep.mubr.f32.mxu0 0.0
        %566 = vmatmul.mubr.f32.gmra.mrb[0].mxu0 %v384
        %v567 = vpop.f32.mrb[0].mxu0
        %v568 = vadd.f32 0.0, %v567
        %v569 = vpop.f32.mrb[0].mxu0
        %570 = vmatprep.mubr.f32.mxu0 0.0
        %571 = vmatmul.mubr.f32.gmra.mrb[0].mxu0 %v387
        %v572 = vpop.f32.mrb[0].mxu0
        %v573 = vadd.f32 0.0, %v572
        %v574 = vpop.f32.mrb[0].mxu0
        %575 = vmatprep.mubr.f32.mxu0 0.0
        %576 = vmatmul.mubr.f32.gmra.mrb[0].mxu0 %v390
        %v577 = vpop.f32.mrb[0].mxu0
        %v578 = vadd.f32 0.0, %v577
        %v579 = vpop.f32.mrb[0].mxu0
        %580 = vmatprep.mubr.f32.mxu0 0.0
        %581 = vmatmul.mubr.f32.gmra.mrb[0].mxu0 %v393
        %v582 = vpop.f32.mrb[0].mxu0
        %v583 = vadd.f32 0.0, %v582
        %v584 = vpop.f32.mrb[0].mxu0
        %585 = vmatprep.mubr.f32.mxu0 0.0
        %586 = vmatmul.mubr.f32.gmra.mrb[0].mxu0 %v396
        %v587 = vpop.f32.mrb[0].mxu0
        %v588 = vadd.f32 0.0, %v587
        %v589 = vpop.f32.mrb[0].mxu0
        %590 = vmatprep.mubr.f32.mxu0 0.0
        %591 = vmatmul.mubr.f32.gmra.mrb[0].mxu0 %v399
        %v592 = vpop.f32.mrb[0].mxu0
        %v593 = vadd.f32 0.0, %v592
        %v594 = vpop.f32.mrb[0].mxu0
        %595 = vmatprep.mubr.f32.mxu0 0.0
        %596 = vmatmul.mubr.f32.gmra.mrb[0].mxu0 %v402
        %v597 = vpop.f32.mrb[0].mxu0
        %v598 = vadd.f32 0.0, %v597
        %v599 = vpop.f32.mrb[0].mxu0
        %600 = vmatprep.mubr.f32.mxu0 0.0
        %601 = vmatmul.mubr.f32.gmra.mrb[0].mxu0 %v405
        %v602 = vpop.f32.mrb[0].mxu0
        %v603 = vadd.f32 0.0, %v602
        %v604 = vpop.f32.mrb[0].mxu0
        %605 = vmatprep.mubr.f32.mxu0 0.0
        %606 = vmatmul.mubr.f32.gmra.mrb[0].mxu0 %v408
        %v607 = vpop.f32.mrb[0].mxu0
        %v608 = vadd.f32 0.0, %v607
        %v609 = vpop.f32.mrb[0].mxu0
        %610 = vmatprep.mubr.f32.mxu0 0.0
        %611 = vmatmul.mubr.f32.gmra.mrb[0].mxu0 %v411
        %v612 = vpop.f32.mrb[0].mxu0
        %v613 = vadd.f32 0.0, %v612
        %v614 = vpop.f32.mrb[0].mxu0
        %615 = vmatprep.mubr.f32.mxu0 0.0
        %616 = vmatmul.mubr.f32.gmra.mrb[0].mxu0 %v414
        %v617 = vpop.f32.mrb[0].mxu0
        %v618 = vadd.f32 0.0, %v617
        %v619 = vpop.f32.mrb[0].mxu0
        %620 = vmatprep.mubr.f32.mxu0 0.0
        %621 = vmatmul.mubr.f32.gmra.mrb[0].mxu0 %v417
        %v622 = vpop.f32.mrb[0].mxu0
        %v623 = vadd.f32 0.0, %v622
        %v624 = vpop.f32.mrb[0].mxu0
        %625 = vmatprep.mubr.f32.mxu0 0.0
        %626 = vmatmul.mubr.f32.gmra.mrb[0].mxu0 %v420
        %v627 = vpop.f32.mrb[0].mxu0
        %v628 = vadd.f32 0.0, %v627
        %v629 = vpop.f32.mrb[0].mxu0
        %630 = vmatprep.mubr.f32.mxu0 0.0
        %631 = vmatmul.mubr.f32.gmra.mrb[0].mxu0 %v423
        %v632 = vpop.f32.mrb[0].mxu0
        %v633 = vadd.f32 0.0, %v632
        %v634 = vpop.f32.mrb[0].mxu0
        %635 = vmatprep.mubr.f32.mxu0 0.0
        %636 = vmatmul.mubr.f32.gmra.mrb[0].mxu0 %v426
        %v637 = vpop.f32.mrb[0].mxu0
        %v638 = vadd.f32 0.0, %v637
        %v639 = vpop.f32.mrb[0].mxu0
        %640 = vmatprep.mubr.f32.mxu0 0.0
        %641 = vmatmul.mubr.f32.gmra.mrb[0].mxu0 %v429
        %v642 = vpop.f32.mrb[0].mxu0
        %v643 = vadd.f32 0.0, %v642
        %v644 = vpop.f32.mrb[0].mxu0
        %645 = vmatprep.mubr.f32.mxu0 0.0
        %646 = vmatmul.mubr.f32.gmra.mrb[0].mxu0 %v432
        %v647 = vpop.f32.mrb[0].mxu0
        %v648 = vadd.f32 0.0, %v647
        %v649 = vpop.f32.mrb[0].mxu0
        %650 = vmatprep.mubr.f32.mxu0 0.0
        %651 = vmatmul.mubr.f32.gmra.mrb[0].mxu0 %v435
        %v652 = vpop.f32.mrb[0].mxu0
        %v653 = vadd.f32 0.0, %v652
        %v654 = vpop.f32.mrb[0].mxu0
        %655 = vmatprep.mubr.f32.mxu0 0.0
        %656 = vmatmul.mubr.f32.gmra.mrb[0].mxu0 %v438
        %v657 = vpop.f32.mrb[0].mxu0
        %v658 = vadd.f32 0.0, %v657
        %v659 = vpop.f32.mrb[0].mxu0
        %660 = vmatprep.mubr.f32.mxu0 0.0
        %661 = vmatmul.mubr.f32.gmra.mrb[0].mxu0 %v441
        %v662 = vpop.f32.mrb[0].mxu0
        %v663 = vadd.f32 0.0, %v662
        %v664 = vpop.f32.mrb[0].mxu0
        %665 = vmatprep.mubr.f32.mxu0 0.0
        %666 = vmatmul.mubr.f32.gmra.mrb[0].mxu0 %v444
        %v667 = vpop.f32.mrb[0].mxu0
        %v668 = vadd.f32 0.0, %v667
        %v669 = vpop.f32.mrb[0].mxu0
        %670 = vmatprep.mubr.f32.mxu0 0.0
        %671 = vmatmul.mubr.f32.gmra.mrb[0].mxu0 %v447
        %v672 = vpop.f32.mrb[0].mxu0
        %v673 = vadd.f32 0.0, %v672
        %v674 = vpop.f32.mrb[0].mxu0
        %675 = vmatprep.mubr.f32.mxu0 0.0
        %676 = vmatmul.mubr.f32.gmra.mrb[0].mxu0 %v450
        %v677 = vpop.f32.mrb[0].mxu0
        %v678 = vadd.f32 0.0, %v677
        %v679 = vpop.f32.mrb[0].mxu0
        %680 = vdwg.mxu0
        %v682 = vsel %vm215, %v289, 0
        %v685 = vsel %vm215, %v290, 0
        %v688 = vsel %vm215, %v291, 0
        %v691 = vsel %vm215, %v292, 0
        %v694 = vsel %vm215, %v293, 0
        %v697 = vsel %vm215, %v294, 0
        %v700 = vsel %vm215, %v295, 0
        %v703 = vsel %vm215, %v296, 0
        %v706 = vsel %vm215, %v297, 0
        %v709 = vsel %vm215, %v298, 0
        %v712 = vsel %vm215, %v299, 0
        %v715 = vsel %vm215, %v300, 0
        %v718 = vsel %vm215, %v301, 0
        %v721 = vsel %vm215, %v302, 0
        %v724 = vsel %vm215, %v303, 0
        %v727 = vsel %vm215, %v304, 0
        %v730 = vsel %vm215, %v305, 0
        %v733 = vsel %vm215, %v306, 0
        %v736 = vsel %vm215, %v307, 0
        %v739 = vsel %vm215, %v308, 0
        %v742 = vsel %vm215, %v309, 0
        %v745 = vsel %vm215, %v310, 0
        %v748 = vsel %vm215, %v311, 0
        %v751 = vsel %vm215, %v312, 0
        %v754 = vsel %vm215, %v313, 0
        %v757 = vsel %vm215, %v314, 0
        %v760 = vsel %vm215, %v315, 0
        %v763 = vsel %vm215, %v316, 0
        %v766 = vsel %vm215, %v317, 0
        %v769 = vsel %vm215, %v318, 0
        %v772 = vsel %vm215, %v319, 0
        %v775 = vsel %vm215, %v320, 0
        %v778 = vsel %vm452, %v321, 0
        %780 = vmatprep.subr.mxu0 0.0
        %781 = vmatpush1.msra.mxu0 %v778
        %782 = vmatprep.subr.mxu0 0.0
        %783 = vmatpush1.msra.mxu0 0.0
        %784 = vmatprep.subr.mxu0 0.0
        %785 = vmatpush1.msra.mxu0 0.0
        %786 = vmatprep.subr.mxu0 0.0
        %787 = vmatpush1.msra.mxu0 0.0
        %788 = vmatprep.subr.mxu0 0.0
        %789 = vmatpush1.msra.mxu0 0.0
        %790 = vmatprep.subr.mxu0 0.0
        %791 = vmatpush1.msra.mxu0 0.0
        %792 = vmatprep.subr.mxu0 0.0
        %793 = vmatpush1.msra.mxu0 0.0
        %794 = vmatprep.subr.mxu0 0.0
        %795 = vmatpush1.msra.mxu0 0.0
        %796 = vmatprep.subr.mxu0 0.0
        %797 = vmatpush1.msra.mxu0 0.0
        %798 = vmatprep.subr.mxu0 0.0
        %799 = vmatpush1.msra.mxu0 0.0
        %800 = vmatprep.subr.mxu0 0.0
        %801 = vmatpush1.msra.mxu0 0.0
        %802 = vmatprep.subr.mxu0 0.0
        %803 = vmatpush1.msra.mxu0 0.0
        %804 = vmatprep.subr.mxu0 0.0
        %805 = vmatpush1.msra.mxu0 0.0
        %806 = vmatprep.subr.mxu0 0.0
        %807 = vmatpush1.msra.mxu0 0.0
        %808 = vmatprep.subr.mxu0 0.0
        %809 = vmatpush1.msra.mxu0 0.0
        %810 = vmatprep.subr.mxu0 0.0
        %811 = vmatpush1.msra.mxu0 0.0
        %812 = vmatprep.subr.mxu0 0.0
        %813 = vmatpush1.msra.mxu0 0.0
        %814 = vmatprep.subr.mxu0 0.0
        %815 = vmatpush1.msra.mxu0 0.0
        %816 = vmatprep.subr.mxu0 0.0
        %817 = vmatpush1.msra.mxu0 0.0
        %818 = vmatprep.subr.mxu0 0.0
        %819 = vmatpush1.msra.mxu0 0.0
        %820 = vmatprep.subr.mxu0 0.0
        %821 = vmatpush1.msra.mxu0 0.0
        %822 = vmatprep.subr.mxu0 0.0
        %823 = vmatpush1.msra.mxu0 0.0
        %824 = vmatprep.subr.mxu0 0.0
        %825 = vmatpush1.msra.mxu0 0.0
        %826 = vmatprep.subr.mxu0 0.0
        %827 = vmatpush1.msra.mxu0 0.0
        %828 = vmatprep.subr.mxu0 0.0
        %829 = vmatpush1.msra.mxu0 0.0
        %830 = vmatprep.subr.mxu0 0.0
        %831 = vmatpush1.msra.mxu0 0.0
        %832 = vmatprep.subr.mxu0 0.0
        %833 = vmatpush1.msra.mxu0 0.0
        %834 = vmatprep.subr.mxu0 0.0
        %835 = vmatpush1.msra.mxu0 0.0
        %836 = vmatprep.subr.mxu0 0.0
        %837 = vmatpush1.msra.mxu0 0.0
        %838 = vmatprep.subr.mxu0 0.0
        %839 = vmatpush1.msra.mxu0 0.0
        %840 = vmatprep.subr.mxu0 0.0
        %841 = vmatpush1.msra.mxu0 0.0
        %842 = vmatprep.subr.mxu0 0.0
        %843 = vmatpush1.msra.mxu0 0.0
        %844 = vmatprep.mubr.f32.mxu0 0.0
        %845 = vmatmul.mubr.f32.gmra.mrb[0].mxu0 %v682
        %v846 = vpop.f32.mrb[0].mxu0
        %v847 = vadd.f32 %v523, %v846
        %v848 = vpop.f32.mrb[0].mxu0
        %849 = vmatprep.mubr.f32.mxu0 0.0
        %850 = vmatmul.mubr.f32.gmra.mrb[0].mxu0 %v685
        %v851 = vpop.f32.mrb[0].mxu0
        %v852 = vadd.f32 %v528, %v851
        %v853 = vpop.f32.mrb[0].mxu0
        %854 = vmatprep.mubr.f32.mxu0 0.0
        %855 = vmatmul.mubr.f32.gmra.mrb[0].mxu0 %v688
        %v856 = vpop.f32.mrb[0].mxu0
        %v857 = vadd.f32 %v533, %v856
        %v858 = vpop.f32.mrb[0].mxu0
        %859 = vmatprep.mubr.f32.mxu0 0.0
        %860 = vmatmul.mubr.f32.gmra.mrb[0].mxu0 %v691
        %v861 = vpop.f32.mrb[0].mxu0
        %v862 = vadd.f32 %v538, %v861
        %v863 = vpop.f32.mrb[0].mxu0
        %864 = vmatprep.mubr.f32.mxu0 0.0
        %865 = vmatmul.mubr.f32.gmra.mrb[0].mxu0 %v694
        %v866 = vpop.f32.mrb[0].mxu0
        %v867 = vadd.f32 %v543, %v866
        %v868 = vpop.f32.mrb[0].mxu0
        %869 = vmatprep.mubr.f32.mxu0 0.0
        %870 = vmatmul.mubr.f32.gmra.mrb[0].mxu0 %v697
        %v871 = vpop.f32.mrb[0].mxu0
        %v872 = vadd.f32 %v548, %v871
        %v873 = vpop.f32.mrb[0].mxu0
        %874 = vmatprep.mubr.f32.mxu0 0.0
        %875 = vmatmul.mubr.f32.gmra.mrb[0].mxu0 %v700
        %v876 = vpop.f32.mrb[0].mxu0
        %v877 = vadd.f32 %v553, %v876
        %v878 = vpop.f32.mrb[0].mxu0
        %879 = vmatprep.mubr.f32.mxu0 0.0
        %880 = vmatmul.mubr.f32.gmra.mrb[0].mxu0 %v703
        %v881 = vpop.f32.mrb[0].mxu0
        %v882 = vadd.f32 %v558, %v881
        %v883 = vpop.f32.mrb[0].mxu0
        %884 = vmatprep.mubr.f32.mxu0 0.0
        %885 = vmatmul.mubr.f32.gmra.mrb[0].mxu0 %v706
        %v886 = vpop.f32.mrb[0].mxu0
        %v887 = vadd.f32 %v563, %v886
        %v888 = vpop.f32.mrb[0].mxu0
        %889 = vmatprep.mubr.f32.mxu0 0.0
        %890 = vmatmul.mubr.f32.gmra.mrb[0].mxu0 %v709
        %v891 = vpop.f32.mrb[0].mxu0
        %v892 = vadd.f32 %v568, %v891
        %v893 = vpop.f32.mrb[0].mxu0
        %894 = vmatprep.mubr.f32.mxu0 0.0
        %895 = vmatmul.mubr.f32.gmra.mrb[0].mxu0 %v712
        %v896 = vpop.f32.mrb[0].mxu0
        %v897 = vadd.f32 %v573, %v896
        %v898 = vpop.f32.mrb[0].mxu0
        %899 = vmatprep.mubr.f32.mxu0 0.0
        %900 = vmatmul.mubr.f32.gmra.mrb[0].mxu0 %v715
        %v901 = vpop.f32.mrb[0].mxu0
        %v902 = vadd.f32 %v578, %v901
        %v903 = vpop.f32.mrb[0].mxu0
        %904 = vmatprep.mubr.f32.mxu0 0.0
        %905 = vmatmul.mubr.f32.gmra.mrb[0].mxu0 %v718
        %v906 = vpop.f32.mrb[0].mxu0
        %v907 = vadd.f32 %v583, %v906
        %v908 = vpop.f32.mrb[0].mxu0
        %909 = vmatprep.mubr.f32.mxu0 0.0
        %910 = vmatmul.mubr.f32.gmra.mrb[0].mxu0 %v721
        %v911 = vpop.f32.mrb[0].mxu0
        %v912 = vadd.f32 %v588, %v911
        %v913 = vpop.f32.mrb[0].mxu0
        %914 = vmatprep.mubr.f32.mxu0 0.0
        %915 = vmatmul.mubr.f32.gmra.mrb[0].mxu0 %v724
        %v916 = vpop.f32.mrb[0].mxu0
        %v917 = vadd.f32 %v593, %v916
        %v918 = vpop.f32.mrb[0].mxu0
        %919 = vmatprep.mubr.f32.mxu0 0.0
        %920 = vmatmul.mubr.f32.gmra.mrb[0].mxu0 %v727
        %v921 = vpop.f32.mrb[0].mxu0
        %v922 = vadd.f32 %v598, %v921
        %v923 = vpop.f32.mrb[0].mxu0
        %924 = vmatprep.mubr.f32.mxu0 0.0
        %925 = vmatmul.mubr.f32.gmra.mrb[0].mxu0 %v730
        %v926 = vpop.f32.mrb[0].mxu0
        %v927 = vadd.f32 %v603, %v926
        %v928 = vpop.f32.mrb[0].mxu0
        %929 = vmatprep.mubr.f32.mxu0 0.0
        %930 = vmatmul.mubr.f32.gmra.mrb[0].mxu0 %v733
        %v931 = vpop.f32.mrb[0].mxu0
        %v932 = vadd.f32 %v608, %v931
        %v933 = vpop.f32.mrb[0].mxu0
        %934 = vmatprep.mubr.f32.mxu0 0.0
        %935 = vmatmul.mubr.f32.gmra.mrb[0].mxu0 %v736
        %v936 = vpop.f32.mrb[0].mxu0
        %v937 = vadd.f32 %v613, %v936
        %v938 = vpop.f32.mrb[0].mxu0
        %939 = vmatprep.mubr.f32.mxu0 0.0
        %940 = vmatmul.mubr.f32.gmra.mrb[0].mxu0 %v739
        %v941 = vpop.f32.mrb[0].mxu0
        %v942 = vadd.f32 %v618, %v941
        %v943 = vpop.f32.mrb[0].mxu0
        %944 = vmatprep.mubr.f32.mxu0 0.0
        %945 = vmatmul.mubr.f32.gmra.mrb[0].mxu0 %v742
        %v946 = vpop.f32.mrb[0].mxu0
        %v947 = vadd.f32 %v623, %v946
        %v948 = vpop.f32.mrb[0].mxu0
        %949 = vmatprep.mubr.f32.mxu0 0.0
        %950 = vmatmul.mubr.f32.gmra.mrb[0].mxu0 %v745
        %v951 = vpop.f32.mrb[0].mxu0
        %v952 = vadd.f32 %v628, %v951
        %v953 = vpop.f32.mrb[0].mxu0
        %954 = vmatprep.mubr.f32.mxu0 0.0
        %955 = vmatmul.mubr.f32.gmra.mrb[0].mxu0 %v748
        %v956 = vpop.f32.mrb[0].mxu0
        %v957 = vadd.f32 %v633, %v956
        %v958 = vpop.f32.mrb[0].mxu0
        %959 = vmatprep.mubr.f32.mxu0 0.0
        %960 = vmatmul.mubr.f32.gmra.mrb[0].mxu0 %v751
        %v961 = vpop.f32.mrb[0].mxu0
        %v962 = vadd.f32 %v638, %v961
        %v963 = vpop.f32.mrb[0].mxu0
        %964 = vmatprep.mubr.f32.mxu0 0.0
        %965 = vmatmul.mubr.f32.gmra.mrb[0].mxu0 %v754
        %v966 = vpop.f32.mrb[0].mxu0
        %v967 = vadd.f32 %v643, %v966
        %v968 = vpop.f32.mrb[0].mxu0
        %969 = vmatprep.mubr.f32.mxu0 0.0
        %970 = vmatmul.mubr.f32.gmra.mrb[0].mxu0 %v757
        %v971 = vpop.f32.mrb[0].mxu0
        %v972 = vadd.f32 %v648, %v971
        %v973 = vpop.f32.mrb[0].mxu0
        %974 = vmatprep.mubr.f32.mxu0 0.0
        %975 = vmatmul.mubr.f32.gmra.mrb[0].mxu0 %v760
        %v976 = vpop.f32.mrb[0].mxu0
        %v977 = vadd.f32 %v653, %v976
        %v978 = vpop.f32.mrb[0].mxu0
        %979 = vmatprep.mubr.f32.mxu0 0.0
        %980 = vmatmul.mubr.f32.gmra.mrb[0].mxu0 %v763
        %v981 = vpop.f32.mrb[0].mxu0
        %v982 = vadd.f32 %v658, %v981
        %v983 = vpop.f32.mrb[0].mxu0
        %984 = vmatprep.mubr.f32.mxu0 0.0
        %985 = vmatmul.mubr.f32.gmra.mrb[0].mxu0 %v766
        %v986 = vpop.f32.mrb[0].mxu0
        %v987 = vadd.f32 %v663, %v986
        %v988 = vpop.f32.mrb[0].mxu0
        %989 = vmatprep.mubr.f32.mxu0 0.0
        %990 = vmatmul.mubr.f32.gmra.mrb[0].mxu0 %v769
        %v991 = vpop.f32.mrb[0].mxu0
        %v992 = vadd.f32 %v668, %v991
        %v993 = vpop.f32.mrb[0].mxu0
        %994 = vmatprep.mubr.f32.mxu0 0.0
        %995 = vmatmul.mubr.f32.gmra.mrb[0].mxu0 %v772
        %v996 = vpop.f32.mrb[0].mxu0
        %v997 = vadd.f32 %v673, %v996
        %v998 = vpop.f32.mrb[0].mxu0
        %999 = vmatprep.mubr.f32.mxu0 0.0
        %1000 = vmatmul.mubr.f32.gmra.mrb[0].mxu0 %v775
        %v1001 = vpop.f32.mrb[0].mxu0
        %v1002 = vadd.f32 %v678, %v1001
        %v1003 = vpop.f32.mrb[0].mxu0
        %1004 = vdwg.mxu0
        %v1005 = vld [vmem:[#allocation2 + $0x2] sm:$0xff]
        %v1006 = vld [vmem:[#allocation2 + $0xa] sm:$0xff]
        %v1007 = vld [vmem:[#allocation2 + $0x1a] sm:$0xff]
        %v1008 = vld [vmem:[#allocation2 + $0x22] sm:$0xff]
        %v1009 = vld [vmem:[#allocation2 + $0x32] sm:$0xff]
        %v1010 = vld [vmem:[#allocation2 + $0x3a] sm:$0xff]
        %v1011 = vld [vmem:[#allocation2 + $0x4a] sm:$0xff]
        %v1012 = vld [vmem:[#allocation2 + $0x52] sm:$0xff]
        %v1013 = vld [vmem:[#allocation2 + $0x62] sm:$0xff]
        %v1014 = vld [vmem:[#allocation2 + $0x6a] sm:$0xff]
        %v1015 = vld [vmem:[#allocation2 + $0x7a] sm:$0xff]
        %v1016 = vld [vmem:[#allocation2 + $0x82] sm:$0xff]
        %v1017 = vld [vmem:[#allocation2 + $0x92] sm:$0xff]
        %v1018 = vld [vmem:[#allocation2 + $0x9a] sm:$0xff]
        %v1019 = vld [vmem:[#allocation2 + $0xaa] sm:$0xff]
        %v1020 = vld [vmem:[#allocation2 + $0xb2] sm:$0xff]
        %v1021 = vld [vmem:[#allocation2 + $0xc2] sm:$0xff]
        %v1022 = vld [vmem:[#allocation2 + $0xca] sm:$0xff]
        %v1023 = vld [vmem:[#allocation2 + $0xda] sm:$0xff]
        %v1024 = vld [vmem:[#allocation2 + $0xe2] sm:$0xff]
        %v1025 = vld [vmem:[#allocation2 + $0xf2] sm:$0xff]
        %v1026 = vld [vmem:[#allocation2 + $0xfa] sm:$0xff]
        %v1027 = vld [vmem:[#allocation2 + $0x10a] sm:$0xff]
        %v1028 = vld [vmem:[#allocation2 + $0x112] sm:$0xff]
        %v1029 = vld [vmem:[#allocation2 + $0x122] sm:$0xff]
        %v1030 = vld [vmem:[#allocation2 + $0x12a] sm:$0xff]
        %v1031 = vld [vmem:[#allocation2 + $0x13a] sm:$0xff]
        %v1032 = vld [vmem:[#allocation2 + $0x142] sm:$0xff]
        %v1033 = vld [vmem:[#allocation2 + $0x152] sm:$0xff]
        %v1034 = vld [vmem:[#allocation2 + $0x15a] sm:$0xff]
        %v1035 = vld [vmem:[#allocation2 + $0x16a] sm:$0xff]
        %v1036 = vld [vmem:[#allocation2 + $0x172] sm:$0xff]
        %s1037 = scalar_lea.vmem %s1, 8
        %v1038 = vld [vmem:[%s1037] sm:$0xf]
        %v1040 = vsel %vm215, %v1005, 0
        %v1043 = vsel %vm215, %v1006, 0
        %v1046 = vsel %vm215, %v1007, 0
        %v1049 = vsel %vm215, %v1008, 0
        %v1052 = vsel %vm215, %v1009, 0
        %v1055 = vsel %vm215, %v1010, 0
        %v1058 = vsel %vm215, %v1011, 0
        %v1061 = vsel %vm215, %v1012, 0
        %v1064 = vsel %vm215, %v1013, 0
        %v1067 = vsel %vm215, %v1014, 0
        %v1070 = vsel %vm215, %v1015, 0
        %v1073 = vsel %vm215, %v1016, 0
        %v1076 = vsel %vm215, %v1017, 0
        %v1079 = vsel %vm215, %v1018, 0
        %v1082 = vsel %vm215, %v1019, 0
        %v1085 = vsel %vm215, %v1020, 0
        %v1088 = vsel %vm215, %v1021, 0
        %v1091 = vsel %vm215, %v1022, 0
        %v1094 = vsel %vm215, %v1023, 0
        %v1097 = vsel %vm215, %v1024, 0
        %v1100 = vsel %vm215, %v1025, 0
        %v1103 = vsel %vm215, %v1026, 0
        %v1106 = vsel %vm215, %v1027, 0
        %v1109 = vsel %vm215, %v1028, 0
        %v1112 = vsel %vm215, %v1029, 0
        %v1115 = vsel %vm215, %v1030, 0
        %v1118 = vsel %vm215, %v1031, 0
        %v1121 = vsel %vm215, %v1032, 0
        %v1124 = vsel %vm215, %v1033, 0
        %v1127 = vsel %vm215, %v1034, 0
        %v1130 = vsel %vm215, %v1035, 0
        %v1133 = vsel %vm215, %v1036, 0
        %v1136 = vsel %vm452, %v1038, 0
        %1138 = vmatprep.subr.mxu0 0.0
        %1139 = vmatpush1.msra.mxu0 %v1136
        %1140 = vmatprep.subr.mxu0 0.0
        %1141 = vmatpush1.msra.mxu0 0.0
        %1142 = vmatprep.subr.mxu0 0.0
        %1143 = vmatpush1.msra.mxu0 0.0
        %1144 = vmatprep.subr.mxu0 0.0
        %1145 = vmatpush1.msra.mxu0 0.0
        %1146 = vmatprep.subr.mxu0 0.0
        %1147 = vmatpush1.msra.mxu0 0.0
        %1148 = vmatprep.subr.mxu0 0.0
        %1149 = vmatpush1.msra.mxu0 0.0
        %1150 = vmatprep.subr.mxu0 0.0
        %1151 = vmatpush1.msra.mxu0 0.0
        %1152 = vmatprep.subr.mxu0 0.0
        %1153 = vmatpush1.msra.mxu0 0.0
        %1154 = vmatprep.subr.mxu0 0.0
        %1155 = vmatpush1.msra.mxu0 0.0
        %1156 = vmatprep.subr.mxu0 0.0
        %1157 = vmatpush1.msra.mxu0 0.0
        %1158 = vmatprep.subr.mxu0 0.0
        %1159 = vmatpush1.msra.mxu0 0.0
        %1160 = vmatprep.subr.mxu0 0.0
        %1161 = vmatpush1.msra.mxu0 0.0
        %1162 = vmatprep.subr.mxu0 0.0
        %1163 = vmatpush1.msra.mxu0 0.0
        %1164 = vmatprep.subr.mxu0 0.0
        %1165 = vmatpush1.msra.mxu0 0.0
        %1166 = vmatprep.subr.mxu0 0.0
        %1167 = vmatpush1.msra.mxu0 0.0
        %1168 = vmatprep.subr.mxu0 0.0
        %1169 = vmatpush1.msra.mxu0 0.0
        %1170 = vmatprep.subr.mxu0 0.0
        %1171 = vmatpush1.msra.mxu0 0.0
        %1172 = vmatprep.subr.mxu0 0.0
        %1173 = vmatpush1.msra.mxu0 0.0
        %1174 = vmatprep.subr.mxu0 0.0
        %1175 = vmatpush1.msra.mxu0 0.0
        %1176 = vmatprep.subr.mxu0 0.0
        %1177 = vmatpush1.msra.mxu0 0.0
        %1178 = vmatprep.subr.mxu0 0.0
        %1179 = vmatpush1.msra.mxu0 0.0
        %1180 = vmatprep.subr.mxu0 0.0
        %1181 = vmatpush1.msra.mxu0 0.0
        %1182 = vmatprep.subr.mxu0 0.0
        %1183 = vmatpush1.msra.mxu0 0.0
        %1184 = vmatprep.subr.mxu0 0.0
        %1185 = vmatpush1.msra.mxu0 0.0
        %1186 = vmatprep.subr.mxu0 0.0
        %1187 = vmatpush1.msra.mxu0 0.0
        %1188 = vmatprep.subr.mxu0 0.0
        %1189 = vmatpush1.msra.mxu0 0.0
        %1190 = vmatprep.subr.mxu0 0.0
        %1191 = vmatpush1.msra.mxu0 0.0
        %1192 = vmatprep.subr.mxu0 0.0
        %1193 = vmatpush1.msra.mxu0 0.0
        %1194 = vmatprep.subr.mxu0 0.0
        %1195 = vmatpush1.msra.mxu0 0.0
        %1196 = vmatprep.subr.mxu0 0.0
        %1197 = vmatpush1.msra.mxu0 0.0
        %1198 = vmatprep.subr.mxu0 0.0
        %1199 = vmatpush1.msra.mxu0 0.0
        %1200 = vmatprep.subr.mxu0 0.0
        %1201 = vmatpush1.msra.mxu0 0.0
        %1202 = vmatprep.mubr.f32.mxu0 0.0
        %1203 = vmatmul.mubr.f32.gmra.mrb[0].mxu0 %v1040
        %v1204 = vpop.f32.mrb[0].mxu0
        %v1205 = vadd.f32 0.0, %v1204
        %v1206 = vpop.f32.mrb[0].mxu0
        %1207 = vmatprep.mubr.f32.mxu0 0.0
        %1208 = vmatmul.mubr.f32.gmra.mrb[0].mxu0 %v1043
        %v1209 = vpop.f32.mrb[0].mxu0
        %v1210 = vadd.f32 0.0, %v1209
        %v1211 = vpop.f32.mrb[0].mxu0
        %1212 = vmatprep.mubr.f32.mxu0 0.0
        %1213 = vmatmul.mubr.f32.gmra.mrb[0].mxu0 %v1046
        %v1214 = vpop.f32.mrb[0].mxu0
        %v1215 = vadd.f32 0.0, %v1214
        %v1216 = vpop.f32.mrb[0].mxu0
        %1217 = vmatprep.mubr.f32.mxu0 0.0
        %1218 = vmatmul.mubr.f32.gmra.mrb[0].mxu0 %v1049
        %v1219 = vpop.f32.mrb[0].mxu0
        %v1220 = vadd.f32 0.0, %v1219
        %v1221 = vpop.f32.mrb[0].mxu0
        %1222 = vmatprep.mubr.f32.mxu0 0.0
        %1223 = vmatmul.mubr.f32.gmra.mrb[0].mxu0 %v1052
        %v1224 = vpop.f32.mrb[0].mxu0
        %v1225 = vadd.f32 0.0, %v1224
        %v1226 = vpop.f32.mrb[0].mxu0
        %1227 = vmatprep.mubr.f32.mxu0 0.0
        %1228 = vmatmul.mubr.f32.gmra.mrb[0].mxu0 %v1055
        %v1229 = vpop.f32.mrb[0].mxu0
        %v1230 = vadd.f32 0.0, %v1229
        %v1231 = vpop.f32.mrb[0].mxu0
        %1232 = vmatprep.mubr.f32.mxu0 0.0
        %1233 = vmatmul.mubr.f32.gmra.mrb[0].mxu0 %v1058
        %v1234 = vpop.f32.mrb[0].mxu0
        %v1235 = vadd.f32 0.0, %v1234
        %v1236 = vpop.f32.mrb[0].mxu0
        %1237 = vmatprep.mubr.f32.mxu0 0.0
        %1238 = vmatmul.mubr.f32.gmra.mrb[0].mxu0 %v1061
        %v1239 = vpop.f32.mrb[0].mxu0
        %v1240 = vadd.f32 0.0, %v1239
        %v1241 = vpop.f32.mrb[0].mxu0
        %1242 = vmatprep.mubr.f32.mxu0 0.0
        %1243 = vmatmul.mubr.f32.gmra.mrb[0].mxu0 %v1064
        %v1244 = vpop.f32.mrb[0].mxu0
        %v1245 = vadd.f32 0.0, %v1244
        %v1246 = vpop.f32.mrb[0].mxu0
        %1247 = vmatprep.mubr.f32.mxu0 0.0
        %1248 = vmatmul.mubr.f32.gmra.mrb[0].mxu0 %v1067
        %v1249 = vpop.f32.mrb[0].mxu0
        %v1250 = vadd.f32 0.0, %v1249
        %v1251 = vpop.f32.mrb[0].mxu0
        %1252 = vmatprep.mubr.f32.mxu0 0.0
        %1253 = vmatmul.mubr.f32.gmra.mrb[0].mxu0 %v1070
        %v1254 = vpop.f32.mrb[0].mxu0
        %v1255 = vadd.f32 0.0, %v1254
        %v1256 = vpop.f32.mrb[0].mxu0
        %1257 = vmatprep.mubr.f32.mxu0 0.0
        %1258 = vmatmul.mubr.f32.gmra.mrb[0].mxu0 %v1073
        %v1259 = vpop.f32.mrb[0].mxu0
        %v1260 = vadd.f32 0.0, %v1259
        %v1261 = vpop.f32.mrb[0].mxu0
        %1262 = vmatprep.mubr.f32.mxu0 0.0
        %1263 = vmatmul.mubr.f32.gmra.mrb[0].mxu0 %v1076
        %v1264 = vpop.f32.mrb[0].mxu0
        %v1265 = vadd.f32 0.0, %v1264
        %v1266 = vpop.f32.mrb[0].mxu0
        %1267 = vmatprep.mubr.f32.mxu0 0.0
        %1268 = vmatmul.mubr.f32.gmra.mrb[0].mxu0 %v1079
        %v1269 = vpop.f32.mrb[0].mxu0
        %v1270 = vadd.f32 0.0, %v1269
        %v1271 = vpop.f32.mrb[0].mxu0
        %1272 = vmatprep.mubr.f32.mxu0 0.0
        %1273 = vmatmul.mubr.f32.gmra.mrb[0].mxu0 %v1082
        %v1274 = vpop.f32.mrb[0].mxu0
        %v1275 = vadd.f32 0.0, %v1274
        %v1276 = vpop.f32.mrb[0].mxu0
        %1277 = vmatprep.mubr.f32.mxu0 0.0
        %1278 = vmatmul.mubr.f32.gmra.mrb[0].mxu0 %v1085
        %v1279 = vpop.f32.mrb[0].mxu0
        %v1280 = vadd.f32 0.0, %v1279
        %v1281 = vpop.f32.mrb[0].mxu0
        %1282 = vmatprep.mubr.f32.mxu0 0.0
        %1283 = vmatmul.mubr.f32.gmra.mrb[0].mxu0 %v1088
        %v1284 = vpop.f32.mrb[0].mxu0
        %v1285 = vadd.f32 0.0, %v1284
        %v1286 = vpop.f32.mrb[0].mxu0
        %1287 = vmatprep.mubr.f32.mxu0 0.0
        %1288 = vmatmul.mubr.f32.gmra.mrb[0].mxu0 %v1091
        %v1289 = vpop.f32.mrb[0].mxu0
        %v1290 = vadd.f32 0.0, %v1289
        %v1291 = vpop.f32.mrb[0].mxu0
        %1292 = vmatprep.mubr.f32.mxu0 0.0
        %1293 = vmatmul.mubr.f32.gmra.mrb[0].mxu0 %v1094
        %v1294 = vpop.f32.mrb[0].mxu0
        %v1295 = vadd.f32 0.0, %v1294
        %v1296 = vpop.f32.mrb[0].mxu0
        %1297 = vmatprep.mubr.f32.mxu0 0.0
        %1298 = vmatmul.mubr.f32.gmra.mrb[0].mxu0 %v1097
        %v1299 = vpop.f32.mrb[0].mxu0
        %v1300 = vadd.f32 0.0, %v1299
        %v1301 = vpop.f32.mrb[0].mxu0
        %1302 = vmatprep.mubr.f32.mxu0 0.0
        %1303 = vmatmul.mubr.f32.gmra.mrb[0].mxu0 %v1100
        %v1304 = vpop.f32.mrb[0].mxu0
        %v1305 = vadd.f32 0.0, %v1304
        %v1306 = vpop.f32.mrb[0].mxu0
        %1307 = vmatprep.mubr.f32.mxu0 0.0
        %1308 = vmatmul.mubr.f32.gmra.mrb[0].mxu0 %v1103
        %v1309 = vpop.f32.mrb[0].mxu0
        %v1310 = vadd.f32 0.0, %v1309
        %v1311 = vpop.f32.mrb[0].mxu0
        %1312 = vmatprep.mubr.f32.mxu0 0.0
        %1313 = vmatmul.mubr.f32.gmra.mrb[0].mxu0 %v1106
        %v1314 = vpop.f32.mrb[0].mxu0
        %v1315 = vadd.f32 0.0, %v1314
        %v1316 = vpop.f32.mrb[0].mxu0
        %1317 = vmatprep.mubr.f32.mxu0 0.0
        %1318 = vmatmul.mubr.f32.gmra.mrb[0].mxu0 %v1109
        %v1319 = vpop.f32.mrb[0].mxu0
        %v1320 = vadd.f32 0.0, %v1319
        %v1321 = vpop.f32.mrb[0].mxu0
        %1322 = vmatprep.mubr.f32.mxu0 0.0
        %1323 = vmatmul.mubr.f32.gmra.mrb[0].mxu0 %v1112
        %v1324 = vpop.f32.mrb[0].mxu0
        %v1325 = vadd.f32 0.0, %v1324
        %v1326 = vpop.f32.mrb[0].mxu0
        %1327 = vmatprep.mubr.f32.mxu0 0.0
        %1328 = vmatmul.mubr.f32.gmra.mrb[0].mxu0 %v1115
        %v1329 = vpop.f32.mrb[0].mxu0
        %v1330 = vadd.f32 0.0, %v1329
        %v1331 = vpop.f32.mrb[0].mxu0
        %1332 = vmatprep.mubr.f32.mxu0 0.0
        %1333 = vmatmul.mubr.f32.gmra.mrb[0].mxu0 %v1118
        %v1334 = vpop.f32.mrb[0].mxu0
        %v1335 = vadd.f32 0.0, %v1334
        %v1336 = vpop.f32.mrb[0].mxu0
        %1337 = vmatprep.mubr.f32.mxu0 0.0
        %1338 = vmatmul.mubr.f32.gmra.mrb[0].mxu0 %v1121
        %v1339 = vpop.f32.mrb[0].mxu0
        %v1340 = vadd.f32 0.0, %v1339
        %v1341 = vpop.f32.mrb[0].mxu0
        %1342 = vmatprep.mubr.f32.mxu0 0.0
        %1343 = vmatmul.mubr.f32.gmra.mrb[0].mxu0 %v1124
        %v1344 = vpop.f32.mrb[0].mxu0
        %v1345 = vadd.f32 0.0, %v1344
        %v1346 = vpop.f32.mrb[0].mxu0
        %1347 = vmatprep.mubr.f32.mxu0 0.0
        %1348 = vmatmul.mubr.f32.gmra.mrb[0].mxu0 %v1127
        %v1349 = vpop.f32.mrb[0].mxu0
        %v1350 = vadd.f32 0.0, %v1349
        %v1351 = vpop.f32.mrb[0].mxu0
        %1352 = vmatprep.mubr.f32.mxu0 0.0
        %1353 = vmatmul.mubr.f32.gmra.mrb[0].mxu0 %v1130
        %v1354 = vpop.f32.mrb[0].mxu0
        %v1355 = vadd.f32 0.0, %v1354
        %v1356 = vpop.f32.mrb[0].mxu0
        %1357 = vmatprep.mubr.f32.mxu0 0.0
        %1358 = vmatmul.mubr.f32.gmra.mrb[0].mxu0 %v1133
        %v1359 = vpop.f32.mrb[0].mxu0
        %v1360 = vadd.f32 0.0, %v1359
        %v1361 = vpop.f32.mrb[0].mxu0
        %1362 = vdwg.mxu0
        %v1363 = vadd.f32 %v847, %v1205
        %v1364 = vadd.f32 %v852, %v1210
        %v1365 = vadd.f32 %v857, %v1215
        %v1366 = vadd.f32 %v862, %v1220
        %v1367 = vadd.f32 %v867, %v1225
        %v1368 = vadd.f32 %v872, %v1230
        %v1369 = vadd.f32 %v877, %v1235
        %v1370 = vadd.f32 %v882, %v1240
        %v1371 = vadd.f32 %v887, %v1245
        %v1372 = vadd.f32 %v892, %v1250
        %v1373 = vadd.f32 %v897, %v1255
        %v1374 = vadd.f32 %v902, %v1260
        %v1375 = vadd.f32 %v907, %v1265
        %v1376 = vadd.f32 %v912, %v1270
        %v1377 = vadd.f32 %v917, %v1275
        %v1378 = vadd.f32 %v922, %v1280
        %v1379 = vadd.f32 %v927, %v1285
        %v1380 = vadd.f32 %v932, %v1290
        %v1381 = vadd.f32 %v937, %v1295
        %v1382 = vadd.f32 %v942, %v1300
        %v1383 = vadd.f32 %v947, %v1305
        %v1384 = vadd.f32 %v952, %v1310
        %v1385 = vadd.f32 %v957, %v1315
        %v1386 = vadd.f32 %v962, %v1320
        %v1387 = vadd.f32 %v967, %v1325
        %v1388 = vadd.f32 %v972, %v1330
        %v1389 = vadd.f32 %v977, %v1335
        %v1390 = vadd.f32 %v982, %v1340
        %v1391 = vadd.f32 %v987, %v1345
        %v1392 = vadd.f32 %v992, %v1350
        %v1393 = vadd.f32 %v997, %v1355
        %v1394 = vadd.f32 %v1002, %v1360
        %v1395 = vld [vmem:[%s214] sm:$0xff]
        %v1396 = vld [vmem:[%s214 + $0x8] sm:$0xff]
        %v1397 = vld [vmem:[%s214 + $0x18] sm:$0xff]
        %v1398 = vld [vmem:[%s214 + $0x20] sm:$0xff]
        %v1399 = vld [vmem:[%s214 + $0x30] sm:$0xff]
        %v1400 = vld [vmem:[%s214 + $0x38] sm:$0xff]
        %v1401 = vld [vmem:[%s214 + $0x48] sm:$0xff]
        %v1402 = vld [vmem:[%s214 + $0x50] sm:$0xff]
        %v1403 = vld [vmem:[%s214 + $0x60] sm:$0xff]
        %v1404 = vld [vmem:[%s214 + $0x68] sm:$0xff]
        %v1405 = vld [vmem:[%s214 + $0x78] sm:$0xff]
        %v1406 = vld [vmem:[%s214 + $0x80] sm:$0xff]
        %v1407 = vld [vmem:[%s214 + $0x90] sm:$0xff]
        %v1408 = vld [vmem:[%s214 + $0x98] sm:$0xff]
        %v1409 = vld [vmem:[%s214 + $0xa8] sm:$0xff]
        %v1410 = vld [vmem:[%s214 + $0xb0] sm:$0xff]
        %v1411 = vld [vmem:[%s214 + $0xc0] sm:$0xff]
        %v1412 = vld [vmem:[%s214 + $0xc8] sm:$0xff]
        %v1413 = vld [vmem:[%s214 + $0xd8] sm:$0xff]
        %v1414 = vld [vmem:[%s214 + $0xe0] sm:$0xff]
        %v1415 = vld [vmem:[%s214 + $0xf0] sm:$0xff]
        %v1416 = vld [vmem:[%s214 + $0xf8] sm:$0xff]
        %v1417 = vld [vmem:[%s214 + $0x108] sm:$0xff]
        %v1418 = vld [vmem:[%s214 + $0x110] sm:$0xff]
        %v1419 = vld [vmem:[%s214 + $0x120] sm:$0xff]
        %v1420 = vld [vmem:[%s214 + $0x128] sm:$0xff]
        %v1421 = vld [vmem:[%s214 + $0x138] sm:$0xff]
        %v1422 = vld [vmem:[%s214 + $0x140] sm:$0xff]
        %v1423 = vld [vmem:[%s214 + $0x150] sm:$0xff]
        %v1424 = vld [vmem:[%s214 + $0x158] sm:$0xff]
        %v1425 = vld [vmem:[%s214 + $0x168] sm:$0xff]
        %v1426 = vld [vmem:[%s214 + $0x170] sm:$0xff]
        %s1427 = scalar_lea.vmem %s1, 12
        %v1428 = vld [vmem:[%s1427] sm:$0xf]
        %v1430 = vsel %vm215, %v1395, 0
        %v1433 = vsel %vm215, %v1396, 0
        %v1436 = vsel %vm215, %v1397, 0
        %v1439 = vsel %vm215, %v1398, 0
        %v1442 = vsel %vm215, %v1399, 0
        %v1445 = vsel %vm215, %v1400, 0
        %v1448 = vsel %vm215, %v1401, 0
        %v1451 = vsel %vm215, %v1402, 0
        %v1454 = vsel %vm215, %v1403, 0
        %v1457 = vsel %vm215, %v1404, 0
        %v1460 = vsel %vm215, %v1405, 0
        %v1463 = vsel %vm215, %v1406, 0
        %v1466 = vsel %vm215, %v1407, 0
        %v1469 = vsel %vm215, %v1408, 0
        %v1472 = vsel %vm215, %v1409, 0
        %v1475 = vsel %vm215, %v1410, 0
        %v1478 = vsel %vm215, %v1411, 0
        %v1481 = vsel %vm215, %v1412, 0
        %v1484 = vsel %vm215, %v1413, 0
        %v1487 = vsel %vm215, %v1414, 0
        %v1490 = vsel %vm215, %v1415, 0
        %v1493 = vsel %vm215, %v1416, 0
        %v1496 = vsel %vm215, %v1417, 0
        %v1499 = vsel %vm215, %v1418, 0
        %v1502 = vsel %vm215, %v1419, 0
        %v1505 = vsel %vm215, %v1420, 0
        %v1508 = vsel %vm215, %v1421, 0
        %v1511 = vsel %vm215, %v1422, 0
        %v1514 = vsel %vm215, %v1423, 0
        %v1517 = vsel %vm215, %v1424, 0
        %v1520 = vsel %vm215, %v1425, 0
        %v1523 = vsel %vm215, %v1426, 0
        %v1526 = vsel %vm452, %v1428, 0
        %1528 = vmatprep.subr.mxu0 0.0
        %1529 = vmatpush1.msra.mxu0 %v1526
        %1530 = vmatprep.subr.mxu0 0.0
        %1531 = vmatpush1.msra.mxu0 0.0
        %1532 = vmatprep.subr.mxu0 0.0
        %1533 = vmatpush1.msra.mxu0 0.0
        %1534 = vmatprep.subr.mxu0 0.0
        %1535 = vmatpush1.msra.mxu0 0.0
        %1536 = vmatprep.subr.mxu0 0.0
        %1537 = vmatpush1.msra.mxu0 0.0
        %1538 = vmatprep.subr.mxu0 0.0
        %1539 = vmatpush1.msra.mxu0 0.0
        %1540 = vmatprep.subr.mxu0 0.0
        %1541 = vmatpush1.msra.mxu0 0.0
        %1542 = vmatprep.subr.mxu0 0.0
        %1543 = vmatpush1.msra.mxu0 0.0
        %1544 = vmatprep.subr.mxu0 0.0
        %1545 = vmatpush1.msra.mxu0 0.0
        %1546 = vmatprep.subr.mxu0 0.0
        %1547 = vmatpush1.msra.mxu0 0.0
        %1548 = vmatprep.subr.mxu0 0.0
        %1549 = vmatpush1.msra.mxu0 0.0
        %1550 = vmatprep.subr.mxu0 0.0
        %1551 = vmatpush1.msra.mxu0 0.0
        %1552 = vmatprep.subr.mxu0 0.0
        %1553 = vmatpush1.msra.mxu0 0.0
        %1554 = vmatprep.subr.mxu0 0.0
        %1555 = vmatpush1.msra.mxu0 0.0
        %1556 = vmatprep.subr.mxu0 0.0
        %1557 = vmatpush1.msra.mxu0 0.0
        %1558 = vmatprep.subr.mxu0 0.0
        %1559 = vmatpush1.msra.mxu0 0.0
        %1560 = vmatprep.subr.mxu0 0.0
        %1561 = vmatpush1.msra.mxu0 0.0
        %1562 = vmatprep.subr.mxu0 0.0
        %1563 = vmatpush1.msra.mxu0 0.0
        %1564 = vmatprep.subr.mxu0 0.0
        %1565 = vmatpush1.msra.mxu0 0.0
        %1566 = vmatprep.subr.mxu0 0.0
        %1567 = vmatpush1.msra.mxu0 0.0
        %1568 = vmatprep.subr.mxu0 0.0
        %1569 = vmatpush1.msra.mxu0 0.0
        %1570 = vmatprep.subr.mxu0 0.0
        %1571 = vmatpush1.msra.mxu0 0.0
        %1572 = vmatprep.subr.mxu0 0.0
        %1573 = vmatpush1.msra.mxu0 0.0
        %1574 = vmatprep.subr.mxu0 0.0
        %1575 = vmatpush1.msra.mxu0 0.0
        %1576 = vmatprep.subr.mxu0 0.0
        %1577 = vmatpush1.msra.mxu0 0.0
        %1578 = vmatprep.subr.mxu0 0.0
        %1579 = vmatpush1.msra.mxu0 0.0
        %1580 = vmatprep.subr.mxu0 0.0
        %1581 = vmatpush1.msra.mxu0 0.0
        %1582 = vmatprep.subr.mxu0 0.0
        %1583 = vmatpush1.msra.mxu0 0.0
        %1584 = vmatprep.subr.mxu0 0.0
        %1585 = vmatpush1.msra.mxu0 0.0
        %1586 = vmatprep.subr.mxu0 0.0
        %1587 = vmatpush1.msra.mxu0 0.0
        %1588 = vmatprep.subr.mxu0 0.0
        %1589 = vmatpush1.msra.mxu0 0.0
        %1590 = vmatprep.subr.mxu0 0.0
        %1591 = vmatpush1.msra.mxu0 0.0
        %1592 = vmatprep.mubr.f32.mxu0 0.0
        %1593 = vmatmul.mubr.f32.gmra.mrb[0].mxu0 %v1430
        %v1594 = vpop.f32.mrb[0].mxu0
        %v1595 = vadd.f32 0.0, %v1594
        %v1596 = vpop.f32.mrb[0].mxu0
        %1597 = vmatprep.mubr.f32.mxu0 0.0
        %1598 = vmatmul.mubr.f32.gmra.mrb[0].mxu0 %v1433
        %v1599 = vpop.f32.mrb[0].mxu0
        %v1600 = vadd.f32 0.0, %v1599
        %v1601 = vpop.f32.mrb[0].mxu0
        %1602 = vmatprep.mubr.f32.mxu0 0.0
        %1603 = vmatmul.mubr.f32.gmra.mrb[0].mxu0 %v1436
        %v1604 = vpop.f32.mrb[0].mxu0
        %v1605 = vadd.f32 0.0, %v1604
        %v1606 = vpop.f32.mrb[0].mxu0
        %1607 = vmatprep.mubr.f32.mxu0 0.0
        %1608 = vmatmul.mubr.f32.gmra.mrb[0].mxu0 %v1439
        %v1609 = vpop.f32.mrb[0].mxu0
        %v1610 = vadd.f32 0.0, %v1609
        %v1611 = vpop.f32.mrb[0].mxu0
        %1612 = vmatprep.mubr.f32.mxu0 0.0
        %1613 = vmatmul.mubr.f32.gmra.mrb[0].mxu0 %v1442
        %v1614 = vpop.f32.mrb[0].mxu0
        %v1615 = vadd.f32 0.0, %v1614
        %v1616 = vpop.f32.mrb[0].mxu0
        %1617 = vmatprep.mubr.f32.mxu0 0.0
        %1618 = vmatmul.mubr.f32.gmra.mrb[0].mxu0 %v1445
        %v1619 = vpop.f32.mrb[0].mxu0
        %v1620 = vadd.f32 0.0, %v1619
        %v1621 = vpop.f32.mrb[0].mxu0
        %1622 = vmatprep.mubr.f32.mxu0 0.0
        %1623 = vmatmul.mubr.f32.gmra.mrb[0].mxu0 %v1448
        %v1624 = vpop.f32.mrb[0].mxu0
        %v1625 = vadd.f32 0.0, %v1624
        %v1626 = vpop.f32.mrb[0].mxu0
        %1627 = vmatprep.mubr.f32.mxu0 0.0
        %1628 = vmatmul.mubr.f32.gmra.mrb[0].mxu0 %v1451
        %v1629 = vpop.f32.mrb[0].mxu0
        %v1630 = vadd.f32 0.0, %v1629
        %v1631 = vpop.f32.mrb[0].mxu0
        %1632 = vmatprep.mubr.f32.mxu0 0.0
        %1633 = vmatmul.mubr.f32.gmra.mrb[0].mxu0 %v1454
        %v1634 = vpop.f32.mrb[0].mxu0
        %v1635 = vadd.f32 0.0, %v1634
        %v1636 = vpop.f32.mrb[0].mxu0
        %1637 = vmatprep.mubr.f32.mxu0 0.0
        %1638 = vmatmul.mubr.f32.gmra.mrb[0].mxu0 %v1457
        %v1639 = vpop.f32.mrb[0].mxu0
        %v1640 = vadd.f32 0.0, %v1639
        %v1641 = vpop.f32.mrb[0].mxu0
        %1642 = vmatprep.mubr.f32.mxu0 0.0
        %1643 = vmatmul.mubr.f32.gmra.mrb[0].mxu0 %v1460
        %v1644 = vpop.f32.mrb[0].mxu0
        %v1645 = vadd.f32 0.0, %v1644
        %v1646 = vpop.f32.mrb[0].mxu0
        %1647 = vmatprep.mubr.f32.mxu0 0.0
        %1648 = vmatmul.mubr.f32.gmra.mrb[0].mxu0 %v1463
        %v1649 = vpop.f32.mrb[0].mxu0
        %v1650 = vadd.f32 0.0, %v1649
        %v1651 = vpop.f32.mrb[0].mxu0
        %1652 = vmatprep.mubr.f32.mxu0 0.0
        %1653 = vmatmul.mubr.f32.gmra.mrb[0].mxu0 %v1466
        %v1654 = vpop.f32.mrb[0].mxu0
        %v1655 = vadd.f32 0.0, %v1654
        %v1656 = vpop.f32.mrb[0].mxu0
        %1657 = vmatprep.mubr.f32.mxu0 0.0
        %1658 = vmatmul.mubr.f32.gmra.mrb[0].mxu0 %v1469
        %v1659 = vpop.f32.mrb[0].mxu0
        %v1660 = vadd.f32 0.0, %v1659
        %v1661 = vpop.f32.mrb[0].mxu0
        %1662 = vmatprep.mubr.f32.mxu0 0.0
        %1663 = vmatmul.mubr.f32.gmra.mrb[0].mxu0 %v1472
        %v1664 = vpop.f32.mrb[0].mxu0
        %v1665 = vadd.f32 0.0, %v1664
        %v1666 = vpop.f32.mrb[0].mxu0
        %1667 = vmatprep.mubr.f32.mxu0 0.0
        %1668 = vmatmul.mubr.f32.gmra.mrb[0].mxu0 %v1475
        %v1669 = vpop.f32.mrb[0].mxu0
        %v1670 = vadd.f32 0.0, %v1669
        %v1671 = vpop.f32.mrb[0].mxu0
        %1672 = vmatprep.mubr.f32.mxu0 0.0
        %1673 = vmatmul.mubr.f32.gmra.mrb[0].mxu0 %v1478
        %v1674 = vpop.f32.mrb[0].mxu0
        %v1675 = vadd.f32 0.0, %v1674
        %v1676 = vpop.f32.mrb[0].mxu0
        %1677 = vmatprep.mubr.f32.mxu0 0.0
        %1678 = vmatmul.mubr.f32.gmra.mrb[0].mxu0 %v1481
        %v1679 = vpop.f32.mrb[0].mxu0
        %v1680 = vadd.f32 0.0, %v1679
        %v1681 = vpop.f32.mrb[0].mxu0
        %1682 = vmatprep.mubr.f32.mxu0 0.0
        %1683 = vmatmul.mubr.f32.gmra.mrb[0].mxu0 %v1484
        %v1684 = vpop.f32.mrb[0].mxu0
        %v1685 = vadd.f32 0.0, %v1684
        %v1686 = vpop.f32.mrb[0].mxu0
        %1687 = vmatprep.mubr.f32.mxu0 0.0
        %1688 = vmatmul.mubr.f32.gmra.mrb[0].mxu0 %v1487
        %v1689 = vpop.f32.mrb[0].mxu0
        %v1690 = vadd.f32 0.0, %v1689
        %v1691 = vpop.f32.mrb[0].mxu0
        %1692 = vmatprep.mubr.f32.mxu0 0.0
        %1693 = vmatmul.mubr.f32.gmra.mrb[0].mxu0 %v1490
        %v1694 = vpop.f32.mrb[0].mxu0
        %v1695 = vadd.f32 0.0, %v1694
        %v1696 = vpop.f32.mrb[0].mxu0
        %1697 = vmatprep.mubr.f32.mxu0 0.0
        %1698 = vmatmul.mubr.f32.gmra.mrb[0].mxu0 %v1493
        %v1699 = vpop.f32.mrb[0].mxu0
        %v1700 = vadd.f32 0.0, %v1699
        %v1701 = vpop.f32.mrb[0].mxu0
        %1702 = vmatprep.mubr.f32.mxu0 0.0
        %1703 = vmatmul.mubr.f32.gmra.mrb[0].mxu0 %v1496
        %v1704 = vpop.f32.mrb[0].mxu0
        %v1705 = vadd.f32 0.0, %v1704
        %v1706 = vpop.f32.mrb[0].mxu0
        %1707 = vmatprep.mubr.f32.mxu0 0.0
        %1708 = vmatmul.mubr.f32.gmra.mrb[0].mxu0 %v1499
        %v1709 = vpop.f32.mrb[0].mxu0
        %v1710 = vadd.f32 0.0, %v1709
        %v1711 = vpop.f32.mrb[0].mxu0
        %1712 = vmatprep.mubr.f32.mxu0 0.0
        %1713 = vmatmul.mubr.f32.gmra.mrb[0].mxu0 %v1502
        %v1714 = vpop.f32.mrb[0].mxu0
        %v1715 = vadd.f32 0.0, %v1714
        %v1716 = vpop.f32.mrb[0].mxu0
        %1717 = vmatprep.mubr.f32.mxu0 0.0
        %1718 = vmatmul.mubr.f32.gmra.mrb[0].mxu0 %v1505
        %v1719 = vpop.f32.mrb[0].mxu0
        %v1720 = vadd.f32 0.0, %v1719
        %v1721 = vpop.f32.mrb[0].mxu0
        %1722 = vmatprep.mubr.f32.mxu0 0.0
        %1723 = vmatmul.mubr.f32.gmra.mrb[0].mxu0 %v1508
        %v1724 = vpop.f32.mrb[0].mxu0
        %v1725 = vadd.f32 0.0, %v1724
        %v1726 = vpop.f32.mrb[0].mxu0
        %1727 = vmatprep.mubr.f32.mxu0 0.0
        %1728 = vmatmul.mubr.f32.gmra.mrb[0].mxu0 %v1511
        %v1729 = vpop.f32.mrb[0].mxu0
        %v1730 = vadd.f32 0.0, %v1729
        %v1731 = vpop.f32.mrb[0].mxu0
        %1732 = vmatprep.mubr.f32.mxu0 0.0
        %1733 = vmatmul.mubr.f32.gmra.mrb[0].mxu0 %v1514
        %v1734 = vpop.f32.mrb[0].mxu0
        %v1735 = vadd.f32 0.0, %v1734
        %v1736 = vpop.f32.mrb[0].mxu0
        %1737 = vmatprep.mubr.f32.mxu0 0.0
        %1738 = vmatmul.mubr.f32.gmra.mrb[0].mxu0 %v1517
        %v1739 = vpop.f32.mrb[0].mxu0
        %v1740 = vadd.f32 0.0, %v1739
        %v1741 = vpop.f32.mrb[0].mxu0
        %1742 = vmatprep.mubr.f32.mxu0 0.0
        %1743 = vmatmul.mubr.f32.gmra.mrb[0].mxu0 %v1520
        %v1744 = vpop.f32.mrb[0].mxu0
        %v1745 = vadd.f32 0.0, %v1744
        %v1746 = vpop.f32.mrb[0].mxu0
        %1747 = vmatprep.mubr.f32.mxu0 0.0
        %1748 = vmatmul.mubr.f32.gmra.mrb[0].mxu0 %v1523
        %v1749 = vpop.f32.mrb[0].mxu0
        %v1750 = vadd.f32 0.0, %v1749
        %v1751 = vpop.f32.mrb[0].mxu0
        %1752 = vdwg.mxu0
        %v1753 = vadd.f32 %v1363, %v1595
        %v1754 = vadd.f32 %v1364, %v1600
        %v1755 = vadd.f32 %v1365, %v1605
        %v1756 = vadd.f32 %v1366, %v1610
        %v1757 = vadd.f32 %v1367, %v1615
        %v1758 = vadd.f32 %v1368, %v1620
        %v1759 = vadd.f32 %v1369, %v1625
        %v1760 = vadd.f32 %v1370, %v1630
        %v1761 = vadd.f32 %v1371, %v1635
        %v1762 = vadd.f32 %v1372, %v1640
        %v1763 = vadd.f32 %v1373, %v1645
        %v1764 = vadd.f32 %v1374, %v1650
        %v1765 = vadd.f32 %v1375, %v1655
        %v1766 = vadd.f32 %v1376, %v1660
        %v1767 = vadd.f32 %v1377, %v1665
        %v1768 = vadd.f32 %v1378, %v1670
        %v1769 = vadd.f32 %v1379, %v1675
        %v1770 = vadd.f32 %v1380, %v1680
        %v1771 = vadd.f32 %v1381, %v1685
        %v1772 = vadd.f32 %v1382, %v1690
        %v1773 = vadd.f32 %v1383, %v1695
        %v1774 = vadd.f32 %v1384, %v1700
        %v1775 = vadd.f32 %v1385, %v1705
        %v1776 = vadd.f32 %v1386, %v1710
        %v1777 = vadd.f32 %v1387, %v1715
        %v1778 = vadd.f32 %v1388, %v1720
        %v1779 = vadd.f32 %v1389, %v1725
        %v1780 = vadd.f32 %v1390, %v1730
        %v1781 = vadd.f32 %v1391, %v1735
        %v1782 = vadd.f32 %v1392, %v1740
        %v1783 = vadd.f32 %v1393, %v1745
        %v1784 = vadd.f32 %v1394, %v1750
        %v1785 = vld [vmem:[%s214 + $0x1] sm:$0xff]
        %v1786 = vld [vmem:[%s214 + $0x9] sm:$0xff]
        %v1787 = vld [vmem:[%s214 + $0x19] sm:$0xff]
        %v1788 = vld [vmem:[%s214 + $0x21] sm:$0xff]
        %v1789 = vld [vmem:[%s214 + $0x31] sm:$0xff]
        %v1790 = vld [vmem:[%s214 + $0x39] sm:$0xff]
        %v1791 = vld [vmem:[%s214 + $0x49] sm:$0xff]
        %v1792 = vld [vmem:[%s214 + $0x51] sm:$0xff]
        %v1793 = vld [vmem:[%s214 + $0x61] sm:$0xff]
        %v1794 = vld [vmem:[%s214 + $0x69] sm:$0xff]
        %v1795 = vld [vmem:[%s214 + $0x79] sm:$0xff]
        %v1796 = vld [vmem:[%s214 + $0x81] sm:$0xff]
        %v1797 = vld [vmem:[%s214 + $0x91] sm:$0xff]
        %v1798 = vld [vmem:[%s214 + $0x99] sm:$0xff]
        %v1799 = vld [vmem:[%s214 + $0xa9] sm:$0xff]
        %v1800 = vld [vmem:[%s214 + $0xb1] sm:$0xff]
        %v1801 = vld [vmem:[%s214 + $0xc1] sm:$0xff]
        %v1802 = vld [vmem:[%s214 + $0xc9] sm:$0xff]
        %v1803 = vld [vmem:[%s214 + $0xd9] sm:$0xff]
        %v1804 = vld [vmem:[%s214 + $0xe1] sm:$0xff]
        %v1805 = vld [vmem:[%s214 + $0xf1] sm:$0xff]
        %v1806 = vld [vmem:[%s214 + $0xf9] sm:$0xff]
        %v1807 = vld [vmem:[%s214 + $0x109] sm:$0xff]
        %v1808 = vld [vmem:[%s214 + $0x111] sm:$0xff]
        %v1809 = vld [vmem:[%s214 + $0x121] sm:$0xff]
        %v1810 = vld [vmem:[%s214 + $0x129] sm:$0xff]
        %v1811 = vld [vmem:[%s214 + $0x139] sm:$0xff]
        %v1812 = vld [vmem:[%s214 + $0x141] sm:$0xff]
        %v1813 = vld [vmem:[%s214 + $0x151] sm:$0xff]
        %v1814 = vld [vmem:[%s214 + $0x159] sm:$0xff]
        %v1815 = vld [vmem:[%s214 + $0x169] sm:$0xff]
        %v1816 = vld [vmem:[%s214 + $0x171] sm:$0xff]
        %s1817 = scalar_lea.vmem %s1, 16
        %v1818 = vld [vmem:[%s1817] sm:$0xf]
        %v1820 = vsel %vm215, %v1785, 0
        %v1823 = vsel %vm215, %v1786, 0
        %v1826 = vsel %vm215, %v1787, 0
        %v1829 = vsel %vm215, %v1788, 0
        %v1832 = vsel %vm215, %v1789, 0
        %v1835 = vsel %vm215, %v1790, 0
        %v1838 = vsel %vm215, %v1791, 0
        %v1841 = vsel %vm215, %v1792, 0
        %v1844 = vsel %vm215, %v1793, 0
        %v1847 = vsel %vm215, %v1794, 0
        %v1850 = vsel %vm215, %v1795, 0
        %v1853 = vsel %vm215, %v1796, 0
        %v1856 = vsel %vm215, %v1797, 0
        %v1859 = vsel %vm215, %v1798, 0
        %v1862 = vsel %vm215, %v1799, 0
        %v1865 = vsel %vm215, %v1800, 0
        %v1868 = vsel %vm215, %v1801, 0
        %v1871 = vsel %vm215, %v1802, 0
        %v1874 = vsel %vm215, %v1803, 0
        %v1877 = vsel %vm215, %v1804, 0
        %v1880 = vsel %vm215, %v1805, 0
        %v1883 = vsel %vm215, %v1806, 0
        %v1886 = vsel %vm215, %v1807, 0
        %v1889 = vsel %vm215, %v1808, 0
        %v1892 = vsel %vm215, %v1809, 0
        %v1895 = vsel %vm215, %v1810, 0
        %v1898 = vsel %vm215, %v1811, 0
        %v1901 = vsel %vm215, %v1812, 0
        %v1904 = vsel %vm215, %v1813, 0
        %v1907 = vsel %vm215, %v1814, 0
        %v1910 = vsel %vm215, %v1815, 0
        %v1913 = vsel %vm215, %v1816, 0
        %v1916 = vsel %vm452, %v1818, 0
        %1918 = vmatprep.subr.mxu0 0.0
        %1919 = vmatpush1.msra.mxu0 %v1916
        %1920 = vmatprep.subr.mxu0 0.0
        %1921 = vmatpush1.msra.mxu0 0.0
        %1922 = vmatprep.subr.mxu0 0.0
        %1923 = vmatpush1.msra.mxu0 0.0
        %1924 = vmatprep.subr.mxu0 0.0
        %1925 = vmatpush1.msra.mxu0 0.0
        %1926 = vmatprep.subr.mxu0 0.0
        %1927 = vmatpush1.msra.mxu0 0.0
        %1928 = vmatprep.subr.mxu0 0.0
        %1929 = vmatpush1.msra.mxu0 0.0
        %1930 = vmatprep.subr.mxu0 0.0
        %1931 = vmatpush1.msra.mxu0 0.0
        %1932 = vmatprep.subr.mxu0 0.0
        %1933 = vmatpush1.msra.mxu0 0.0
        %1934 = vmatprep.subr.mxu0 0.0
        %1935 = vmatpush1.msra.mxu0 0.0
        %1936 = vmatprep.subr.mxu0 0.0
        %1937 = vmatpush1.msra.mxu0 0.0
        %1938 = vmatprep.subr.mxu0 0.0
        %1939 = vmatpush1.msra.mxu0 0.0
        %1940 = vmatprep.subr.mxu0 0.0
        %1941 = vmatpush1.msra.mxu0 0.0
        %1942 = vmatprep.subr.mxu0 0.0
        %1943 = vmatpush1.msra.mxu0 0.0
        %1944 = vmatprep.subr.mxu0 0.0
        %1945 = vmatpush1.msra.mxu0 0.0
        %1946 = vmatprep.subr.mxu0 0.0
        %1947 = vmatpush1.msra.mxu0 0.0
        %1948 = vmatprep.subr.mxu0 0.0
        %1949 = vmatpush1.msra.mxu0 0.0
        %1950 = vmatprep.subr.mxu0 0.0
        %1951 = vmatpush1.msra.mxu0 0.0
        %1952 = vmatprep.subr.mxu0 0.0
        %1953 = vmatpush1.msra.mxu0 0.0
        %1954 = vmatprep.subr.mxu0 0.0
        %1955 = vmatpush1.msra.mxu0 0.0
        %1956 = vmatprep.subr.mxu0 0.0
        %1957 = vmatpush1.msra.mxu0 0.0
        %1958 = vmatprep.subr.mxu0 0.0
        %1959 = vmatpush1.msra.mxu0 0.0
        %1960 = vmatprep.subr.mxu0 0.0
        %1961 = vmatpush1.msra.mxu0 0.0
        %1962 = vmatprep.subr.mxu0 0.0
        %1963 = vmatpush1.msra.mxu0 0.0
        %1964 = vmatprep.subr.mxu0 0.0
        %1965 = vmatpush1.msra.mxu0 0.0
        %1966 = vmatprep.subr.mxu0 0.0
        %1967 = vmatpush1.msra.mxu0 0.0
        %1968 = vmatprep.subr.mxu0 0.0
        %1969 = vmatpush1.msra.mxu0 0.0
        %1970 = vmatprep.subr.mxu0 0.0
        %1971 = vmatpush1.msra.mxu0 0.0
        %1972 = vmatprep.subr.mxu0 0.0
        %1973 = vmatpush1.msra.mxu0 0.0
        %1974 = vmatprep.subr.mxu0 0.0
        %1975 = vmatpush1.msra.mxu0 0.0
        %1976 = vmatprep.subr.mxu0 0.0
        %1977 = vmatpush1.msra.mxu0 0.0
        %1978 = vmatprep.subr.mxu0 0.0
        %1979 = vmatpush1.msra.mxu0 0.0
        %1980 = vmatprep.subr.mxu0 0.0
        %1981 = vmatpush1.msra.mxu0 0.0
        %1982 = vmatprep.mubr.f32.mxu0 0.0
        %1983 = vmatmul.mubr.f32.gmra.mrb[0].mxu0 %v1820
        %v1984 = vpop.f32.mrb[0].mxu0
        %v1985 = vadd.f32 0.0, %v1984
        %v1986 = vpop.f32.mrb[0].mxu0
        %1987 = vmatprep.mubr.f32.mxu0 0.0
        %1988 = vmatmul.mubr.f32.gmra.mrb[0].mxu0 %v1823
        %v1989 = vpop.f32.mrb[0].mxu0
        %v1990 = vadd.f32 0.0, %v1989
        %v1991 = vpop.f32.mrb[0].mxu0
        %1992 = vmatprep.mubr.f32.mxu0 0.0
        %1993 = vmatmul.mubr.f32.gmra.mrb[0].mxu0 %v1826
        %v1994 = vpop.f32.mrb[0].mxu0
        %v1995 = vadd.f32 0.0, %v1994
        %v1996 = vpop.f32.mrb[0].mxu0
        %1997 = vmatprep.mubr.f32.mxu0 0.0
        %1998 = vmatmul.mubr.f32.gmra.mrb[0].mxu0 %v1829
        %v1999 = vpop.f32.mrb[0].mxu0
        %v2000 = vadd.f32 0.0, %v1999
        %v2001 = vpop.f32.mrb[0].mxu0
        %2002 = vmatprep.mubr.f32.mxu0 0.0
        %2003 = vmatmul.mubr.f32.gmra.mrb[0].mxu0 %v1832
        %v2004 = vpop.f32.mrb[0].mxu0
        %v2005 = vadd.f32 0.0, %v2004
        %v2006 = vpop.f32.mrb[0].mxu0
        %2007 = vmatprep.mubr.f32.mxu0 0.0
        %2008 = vmatmul.mubr.f32.gmra.mrb[0].mxu0 %v1835
        %v2009 = vpop.f32.mrb[0].mxu0
        %v2010 = vadd.f32 0.0, %v2009
        %v2011 = vpop.f32.mrb[0].mxu0
        %2012 = vmatprep.mubr.f32.mxu0 0.0
        %2013 = vmatmul.mubr.f32.gmra.mrb[0].mxu0 %v1838
        %v2014 = vpop.f32.mrb[0].mxu0
        %v2015 = vadd.f32 0.0, %v2014
        %v2016 = vpop.f32.mrb[0].mxu0
        %2017 = vmatprep.mubr.f32.mxu0 0.0
        %2018 = vmatmul.mubr.f32.gmra.mrb[0].mxu0 %v1841
        %v2019 = vpop.f32.mrb[0].mxu0
        %v2020 = vadd.f32 0.0, %v2019
        %v2021 = vpop.f32.mrb[0].mxu0
        %2022 = vmatprep.mubr.f32.mxu0 0.0
        %2023 = vmatmul.mubr.f32.gmra.mrb[0].mxu0 %v1844
        %v2024 = vpop.f32.mrb[0].mxu0
        %v2025 = vadd.f32 0.0, %v2024
        %v2026 = vpop.f32.mrb[0].mxu0
        %2027 = vmatprep.mubr.f32.mxu0 0.0
        %2028 = vmatmul.mubr.f32.gmra.mrb[0].mxu0 %v1847
        %v2029 = vpop.f32.mrb[0].mxu0
        %v2030 = vadd.f32 0.0, %v2029
        %v2031 = vpop.f32.mrb[0].mxu0
        %2032 = vmatprep.mubr.f32.mxu0 0.0
        %2033 = vmatmul.mubr.f32.gmra.mrb[0].mxu0 %v1850
        %v2034 = vpop.f32.mrb[0].mxu0
        %v2035 = vadd.f32 0.0, %v2034
        %v2036 = vpop.f32.mrb[0].mxu0
        %2037 = vmatprep.mubr.f32.mxu0 0.0
        %2038 = vmatmul.mubr.f32.gmra.mrb[0].mxu0 %v1853
        %v2039 = vpop.f32.mrb[0].mxu0
        %v2040 = vadd.f32 0.0, %v2039
        %v2041 = vpop.f32.mrb[0].mxu0
        %2042 = vmatprep.mubr.f32.mxu0 0.0
        %2043 = vmatmul.mubr.f32.gmra.mrb[0].mxu0 %v1856
        %v2044 = vpop.f32.mrb[0].mxu0
        %v2045 = vadd.f32 0.0, %v2044
        %v2046 = vpop.f32.mrb[0].mxu0
        %2047 = vmatprep.mubr.f32.mxu0 0.0
        %2048 = vmatmul.mubr.f32.gmra.mrb[0].mxu0 %v1859
        %v2049 = vpop.f32.mrb[0].mxu0
        %v2050 = vadd.f32 0.0, %v2049
        %v2051 = vpop.f32.mrb[0].mxu0
        %2052 = vmatprep.mubr.f32.mxu0 0.0
        %2053 = vmatmul.mubr.f32.gmra.mrb[0].mxu0 %v1862
        %v2054 = vpop.f32.mrb[0].mxu0
        %v2055 = vadd.f32 0.0, %v2054
        %v2056 = vpop.f32.mrb[0].mxu0
        %2057 = vmatprep.mubr.f32.mxu0 0.0
        %2058 = vmatmul.mubr.f32.gmra.mrb[0].mxu0 %v1865
        %v2059 = vpop.f32.mrb[0].mxu0
        %v2060 = vadd.f32 0.0, %v2059
        %v2061 = vpop.f32.mrb[0].mxu0
        %2062 = vmatprep.mubr.f32.mxu0 0.0
        %2063 = vmatmul.mubr.f32.gmra.mrb[0].mxu0 %v1868
        %v2064 = vpop.f32.mrb[0].mxu0
        %v2065 = vadd.f32 0.0, %v2064
        %v2066 = vpop.f32.mrb[0].mxu0
        %2067 = vmatprep.mubr.f32.mxu0 0.0
        %2068 = vmatmul.mubr.f32.gmra.mrb[0].mxu0 %v1871
        %v2069 = vpop.f32.mrb[0].mxu0
        %v2070 = vadd.f32 0.0, %v2069
        %v2071 = vpop.f32.mrb[0].mxu0
        %2072 = vmatprep.mubr.f32.mxu0 0.0
        %2073 = vmatmul.mubr.f32.gmra.mrb[0].mxu0 %v1874
        %v2074 = vpop.f32.mrb[0].mxu0
        %v2075 = vadd.f32 0.0, %v2074
        %v2076 = vpop.f32.mrb[0].mxu0
        %2077 = vmatprep.mubr.f32.mxu0 0.0
        %2078 = vmatmul.mubr.f32.gmra.mrb[0].mxu0 %v1877
        %v2079 = vpop.f32.mrb[0].mxu0
        %v2080 = vadd.f32 0.0, %v2079
        %v2081 = vpop.f32.mrb[0].mxu0
        %2082 = vmatprep.mubr.f32.mxu0 0.0
        %2083 = vmatmul.mubr.f32.gmra.mrb[0].mxu0 %v1880
        %v2084 = vpop.f32.mrb[0].mxu0
        %v2085 = vadd.f32 0.0, %v2084
        %v2086 = vpop.f32.mrb[0].mxu0
        %2087 = vmatprep.mubr.f32.mxu0 0.0
        %2088 = vmatmul.mubr.f32.gmra.mrb[0].mxu0 %v1883
        %v2089 = vpop.f32.mrb[0].mxu0
        %v2090 = vadd.f32 0.0, %v2089
        %v2091 = vpop.f32.mrb[0].mxu0
        %2092 = vmatprep.mubr.f32.mxu0 0.0
        %2093 = vmatmul.mubr.f32.gmra.mrb[0].mxu0 %v1886
        %v2094 = vpop.f32.mrb[0].mxu0
        %v2095 = vadd.f32 0.0, %v2094
        %v2096 = vpop.f32.mrb[0].mxu0
        %2097 = vmatprep.mubr.f32.mxu0 0.0
        %2098 = vmatmul.mubr.f32.gmra.mrb[0].mxu0 %v1889
        %v2099 = vpop.f32.mrb[0].mxu0
        %v2100 = vadd.f32 0.0, %v2099
        %v2101 = vpop.f32.mrb[0].mxu0
        %2102 = vmatprep.mubr.f32.mxu0 0.0
        %2103 = vmatmul.mubr.f32.gmra.mrb[0].mxu0 %v1892
        %v2104 = vpop.f32.mrb[0].mxu0
        %v2105 = vadd.f32 0.0, %v2104
        %v2106 = vpop.f32.mrb[0].mxu0
        %2107 = vmatprep.mubr.f32.mxu0 0.0
        %2108 = vmatmul.mubr.f32.gmra.mrb[0].mxu0 %v1895
        %v2109 = vpop.f32.mrb[0].mxu0
        %v2110 = vadd.f32 0.0, %v2109
        %v2111 = vpop.f32.mrb[0].mxu0
        %2112 = vmatprep.mubr.f32.mxu0 0.0
        %2113 = vmatmul.mubr.f32.gmra.mrb[0].mxu0 %v1898
        %v2114 = vpop.f32.mrb[0].mxu0
        %v2115 = vadd.f32 0.0, %v2114
        %v2116 = vpop.f32.mrb[0].mxu0
        %2117 = vmatprep.mubr.f32.mxu0 0.0
        %2118 = vmatmul.mubr.f32.gmra.mrb[0].mxu0 %v1901
        %v2119 = vpop.f32.mrb[0].mxu0
        %v2120 = vadd.f32 0.0, %v2119
        %v2121 = vpop.f32.mrb[0].mxu0
        %2122 = vmatprep.mubr.f32.mxu0 0.0
        %2123 = vmatmul.mubr.f32.gmra.mrb[0].mxu0 %v1904
        %v2124 = vpop.f32.mrb[0].mxu0
        %v2125 = vadd.f32 0.0, %v2124
        %v2126 = vpop.f32.mrb[0].mxu0
        %2127 = vmatprep.mubr.f32.mxu0 0.0
        %2128 = vmatmul.mubr.f32.gmra.mrb[0].mxu0 %v1907
        %v2129 = vpop.f32.mrb[0].mxu0
        %v2130 = vadd.f32 0.0, %v2129
        %v2131 = vpop.f32.mrb[0].mxu0
        %2132 = vmatprep.mubr.f32.mxu0 0.0
        %2133 = vmatmul.mubr.f32.gmra.mrb[0].mxu0 %v1910
        %v2134 = vpop.f32.mrb[0].mxu0
        %v2135 = vadd.f32 0.0, %v2134
        %v2136 = vpop.f32.mrb[0].mxu0
        %2137 = vmatprep.mubr.f32.mxu0 0.0
        %2138 = vmatmul.mubr.f32.gmra.mrb[0].mxu0 %v1913
        %v2139 = vpop.f32.mrb[0].mxu0
        %v2140 = vadd.f32 0.0, %v2139
        %v2141 = vpop.f32.mrb[0].mxu0
        %2142 = vdwg.mxu0
        %v2143 = vadd.f32 %v1753, %v1985
        %v2144 = vadd.f32 %v1754, %v1990
        %v2145 = vadd.f32 %v1755, %v1995
        %v2146 = vadd.f32 %v1756, %v2000
        %v2147 = vadd.f32 %v1757, %v2005
        %v2148 = vadd.f32 %v1758, %v2010
        %v2149 = vadd.f32 %v1759, %v2015
        %v2150 = vadd.f32 %v1760, %v2020
        %v2151 = vadd.f32 %v1761, %v2025
        %v2152 = vadd.f32 %v1762, %v2030
        %v2153 = vadd.f32 %v1763, %v2035
        %v2154 = vadd.f32 %v1764, %v2040
        %v2155 = vadd.f32 %v1765, %v2045
        %v2156 = vadd.f32 %v1766, %v2050
        %v2157 = vadd.f32 %v1767, %v2055
        %v2158 = vadd.f32 %v1768, %v2060
        %v2159 = vadd.f32 %v1769, %v2065
        %v2160 = vadd.f32 %v1770, %v2070
        %v2161 = vadd.f32 %v1771, %v2075
        %v2162 = vadd.f32 %v1772, %v2080
        %v2163 = vadd.f32 %v1773, %v2085
        %v2164 = vadd.f32 %v1774, %v2090
        %v2165 = vadd.f32 %v1775, %v2095
        %v2166 = vadd.f32 %v1776, %v2100
        %v2167 = vadd.f32 %v1777, %v2105
        %v2168 = vadd.f32 %v1778, %v2110
        %v2169 = vadd.f32 %v1779, %v2115
        %v2170 = vadd.f32 %v1780, %v2120
        %v2171 = vadd.f32 %v1781, %v2125
        %v2172 = vadd.f32 %v1782, %v2130
        %v2173 = vadd.f32 %v1783, %v2135
        %v2174 = vadd.f32 %v1784, %v2140
        %v2175 = vld [vmem:[%s214 + $0x2] sm:$0xff]
        %v2176 = vld [vmem:[%s214 + $0xa] sm:$0xff]
        %v2177 = vld [vmem:[%s214 + $0x1a] sm:$0xff]
        %v2178 = vld [vmem:[%s214 + $0x22] sm:$0xff]
        %v2179 = vld [vmem:[%s214 + $0x32] sm:$0xff]
        %v2180 = vld [vmem:[%s214 + $0x3a] sm:$0xff]
        %v2181 = vld [vmem:[%s214 + $0x4a] sm:$0xff]
        %v2182 = vld [vmem:[%s214 + $0x52] sm:$0xff]
        %v2183 = vld [vmem:[%s214 + $0x62] sm:$0xff]
        %v2184 = vld [vmem:[%s214 + $0x6a] sm:$0xff]
        %v2185 = vld [vmem:[%s214 + $0x7a] sm:$0xff]
        %v2186 = vld [vmem:[%s214 + $0x82] sm:$0xff]
        %v2187 = vld [vmem:[%s214 + $0x92] sm:$0xff]
        %v2188 = vld [vmem:[%s214 + $0x9a] sm:$0xff]
        %v2189 = vld [vmem:[%s214 + $0xaa] sm:$0xff]
        %v2190 = vld [vmem:[%s214 + $0xb2] sm:$0xff]
        %v2191 = vld [vmem:[%s214 + $0xc2] sm:$0xff]
        %v2192 = vld [vmem:[%s214 + $0xca] sm:$0xff]
        %v2193 = vld [vmem:[%s214 + $0xda] sm:$0xff]
        %v2194 = vld [vmem:[%s214 + $0xe2] sm:$0xff]
        %v2195 = vld [vmem:[%s214 + $0xf2] sm:$0xff]
        %v2196 = vld [vmem:[%s214 + $0xfa] sm:$0xff]
        %v2197 = vld [vmem:[%s214 + $0x10a] sm:$0xff]
        %v2198 = vld [vmem:[%s214 + $0x112] sm:$0xff]
        %v2199 = vld [vmem:[%s214 + $0x122] sm:$0xff]
        %v2200 = vld [vmem:[%s214 + $0x12a] sm:$0xff]
        %v2201 = vld [vmem:[%s214 + $0x13a] sm:$0xff]
        %v2202 = vld [vmem:[%s214 + $0x142] sm:$0xff]
        %v2203 = vld [vmem:[%s214 + $0x152] sm:$0xff]
        %v2204 = vld [vmem:[%s214 + $0x15a] sm:$0xff]
        %v2205 = vld [vmem:[%s214 + $0x16a] sm:$0xff]
        %v2206 = vld [vmem:[%s214 + $0x172] sm:$0xff]
        %s2207 = scalar_lea.vmem %s1, 20
        %v2208 = vld [vmem:[%s2207] sm:$0xf]
        %v2210 = vsel %vm215, %v2175, 0
        %v2213 = vsel %vm215, %v2176, 0
        %v2216 = vsel %vm215, %v2177, 0
        %v2219 = vsel %vm215, %v2178, 0
        %v2222 = vsel %vm215, %v2179, 0
        %v2225 = vsel %vm215, %v2180, 0
        %v2228 = vsel %vm215, %v2181, 0
        %v2231 = vsel %vm215, %v2182, 0
        %v2234 = vsel %vm215, %v2183, 0
        %v2237 = vsel %vm215, %v2184, 0
        %v2240 = vsel %vm215, %v2185, 0
        %v2243 = vsel %vm215, %v2186, 0
        %v2246 = vsel %vm215, %v2187, 0
        %v2249 = vsel %vm215, %v2188, 0
        %v2252 = vsel %vm215, %v2189, 0
        %v2255 = vsel %vm215, %v2190, 0
        %v2258 = vsel %vm215, %v2191, 0
        %v2261 = vsel %vm215, %v2192, 0
        %v2264 = vsel %vm215, %v2193, 0
        %v2267 = vsel %vm215, %v2194, 0
        %v2270 = vsel %vm215, %v2195, 0
        %v2273 = vsel %vm215, %v2196, 0
        %v2276 = vsel %vm215, %v2197, 0
        %v2279 = vsel %vm215, %v2198, 0
        %v2282 = vsel %vm215, %v2199, 0
        %v2285 = vsel %vm215, %v2200, 0
        %v2288 = vsel %vm215, %v2201, 0
        %v2291 = vsel %vm215, %v2202, 0
        %v2294 = vsel %vm215, %v2203, 0
        %v2297 = vsel %vm215, %v2204, 0
        %v2300 = vsel %vm215, %v2205, 0
        %v2303 = vsel %vm215, %v2206, 0
        %v2306 = vsel %vm452, %v2208, 0
        %2308 = vmatprep.subr.mxu0 0.0
        %2309 = vmatpush1.msra.mxu0 %v2306
        %2310 = vmatprep.subr.mxu0 0.0
        %2311 = vmatpush1.msra.mxu0 0.0
        %2312 = vmatprep.subr.mxu0 0.0
        %2313 = vmatpush1.msra.mxu0 0.0
        %2314 = vmatprep.subr.mxu0 0.0
        %2315 = vmatpush1.msra.mxu0 0.0
        %2316 = vmatprep.subr.mxu0 0.0
        %2317 = vmatpush1.msra.mxu0 0.0
        %2318 = vmatprep.subr.mxu0 0.0
        %2319 = vmatpush1.msra.mxu0 0.0
        %2320 = vmatprep.subr.mxu0 0.0
        %2321 = vmatpush1.msra.mxu0 0.0
        %2322 = vmatprep.subr.mxu0 0.0
        %2323 = vmatpush1.msra.mxu0 0.0
        %2324 = vmatprep.subr.mxu0 0.0
        %2325 = vmatpush1.msra.mxu0 0.0
        %2326 = vmatprep.subr.mxu0 0.0
        %2327 = vmatpush1.msra.mxu0 0.0
        %2328 = vmatprep.subr.mxu0 0.0
        %2329 = vmatpush1.msra.mxu0 0.0
        %2330 = vmatprep.subr.mxu0 0.0
        %2331 = vmatpush1.msra.mxu0 0.0
        %2332 = vmatprep.subr.mxu0 0.0
        %2333 = vmatpush1.msra.mxu0 0.0
        %2334 = vmatprep.subr.mxu0 0.0
        %2335 = vmatpush1.msra.mxu0 0.0
        %2336 = vmatprep.subr.mxu0 0.0
        %2337 = vmatpush1.msra.mxu0 0.0
        %2338 = vmatprep.subr.mxu0 0.0
        %2339 = vmatpush1.msra.mxu0 0.0
        %2340 = vmatprep.subr.mxu0 0.0
        %2341 = vmatpush1.msra.mxu0 0.0
        %2342 = vmatprep.subr.mxu0 0.0
        %2343 = vmatpush1.msra.mxu0 0.0
        %2344 = vmatprep.subr.mxu0 0.0
        %2345 = vmatpush1.msra.mxu0 0.0
        %2346 = vmatprep.subr.mxu0 0.0
        %2347 = vmatpush1.msra.mxu0 0.0
        %2348 = vmatprep.subr.mxu0 0.0
        %2349 = vmatpush1.msra.mxu0 0.0
        %2350 = vmatprep.subr.mxu0 0.0
        %2351 = vmatpush1.msra.mxu0 0.0
        %2352 = vmatprep.subr.mxu0 0.0
        %2353 = vmatpush1.msra.mxu0 0.0
        %2354 = vmatprep.subr.mxu0 0.0
        %2355 = vmatpush1.msra.mxu0 0.0
        %2356 = vmatprep.subr.mxu0 0.0
        %2357 = vmatpush1.msra.mxu0 0.0
        %2358 = vmatprep.subr.mxu0 0.0
        %2359 = vmatpush1.msra.mxu0 0.0
        %2360 = vmatprep.subr.mxu0 0.0
        %2361 = vmatpush1.msra.mxu0 0.0
        %2362 = vmatprep.subr.mxu0 0.0
        %2363 = vmatpush1.msra.mxu0 0.0
        %2364 = vmatprep.subr.mxu0 0.0
        %2365 = vmatpush1.msra.mxu0 0.0
        %2366 = vmatprep.subr.mxu0 0.0
        %2367 = vmatpush1.msra.mxu0 0.0
        %2368 = vmatprep.subr.mxu0 0.0
        %2369 = vmatpush1.msra.mxu0 0.0
        %2370 = vmatprep.subr.mxu0 0.0
        %2371 = vmatpush1.msra.mxu0 0.0
        %2372 = vmatprep.mubr.f32.mxu0 0.0
        %2373 = vmatmul.mubr.f32.gmra.mrb[0].mxu0 %v2210
        %v2374 = vpop.f32.mrb[0].mxu0
        %v2375 = vadd.f32 0.0, %v2374
        %v2376 = vpop.f32.mrb[0].mxu0
        %2377 = vmatprep.mubr.f32.mxu0 0.0
        %2378 = vmatmul.mubr.f32.gmra.mrb[0].mxu0 %v2213
        %v2379 = vpop.f32.mrb[0].mxu0
        %v2380 = vadd.f32 0.0, %v2379
        %v2381 = vpop.f32.mrb[0].mxu0
        %2382 = vmatprep.mubr.f32.mxu0 0.0
        %2383 = vmatmul.mubr.f32.gmra.mrb[0].mxu0 %v2216
        %v2384 = vpop.f32.mrb[0].mxu0
        %v2385 = vadd.f32 0.0, %v2384
        %v2386 = vpop.f32.mrb[0].mxu0
        %2387 = vmatprep.mubr.f32.mxu0 0.0
        %2388 = vmatmul.mubr.f32.gmra.mrb[0].mxu0 %v2219
        %v2389 = vpop.f32.mrb[0].mxu0
        %v2390 = vadd.f32 0.0, %v2389
        %v2391 = vpop.f32.mrb[0].mxu0
        %2392 = vmatprep.mubr.f32.mxu0 0.0
        %2393 = vmatmul.mubr.f32.gmra.mrb[0].mxu0 %v2222
        %v2394 = vpop.f32.mrb[0].mxu0
        %v2395 = vadd.f32 0.0, %v2394
        %v2396 = vpop.f32.mrb[0].mxu0
        %2397 = vmatprep.mubr.f32.mxu0 0.0
        %2398 = vmatmul.mubr.f32.gmra.mrb[0].mxu0 %v2225
        %v2399 = vpop.f32.mrb[0].mxu0
        %v2400 = vadd.f32 0.0, %v2399
        %v2401 = vpop.f32.mrb[0].mxu0
        %2402 = vmatprep.mubr.f32.mxu0 0.0
        %2403 = vmatmul.mubr.f32.gmra.mrb[0].mxu0 %v2228
        %v2404 = vpop.f32.mrb[0].mxu0
        %v2405 = vadd.f32 0.0, %v2404
        %v2406 = vpop.f32.mrb[0].mxu0
        %2407 = vmatprep.mubr.f32.mxu0 0.0
        %2408 = vmatmul.mubr.f32.gmra.mrb[0].mxu0 %v2231
        %v2409 = vpop.f32.mrb[0].mxu0
        %v2410 = vadd.f32 0.0, %v2409
        %v2411 = vpop.f32.mrb[0].mxu0
        %2412 = vmatprep.mubr.f32.mxu0 0.0
        %2413 = vmatmul.mubr.f32.gmra.mrb[0].mxu0 %v2234
        %v2414 = vpop.f32.mrb[0].mxu0
        %v2415 = vadd.f32 0.0, %v2414
        %v2416 = vpop.f32.mrb[0].mxu0
        %2417 = vmatprep.mubr.f32.mxu0 0.0
        %2418 = vmatmul.mubr.f32.gmra.mrb[0].mxu0 %v2237
        %v2419 = vpop.f32.mrb[0].mxu0
        %v2420 = vadd.f32 0.0, %v2419
        %v2421 = vpop.f32.mrb[0].mxu0
        %2422 = vmatprep.mubr.f32.mxu0 0.0
        %2423 = vmatmul.mubr.f32.gmra.mrb[0].mxu0 %v2240
        %v2424 = vpop.f32.mrb[0].mxu0
        %v2425 = vadd.f32 0.0, %v2424
        %v2426 = vpop.f32.mrb[0].mxu0
        %2427 = vmatprep.mubr.f32.mxu0 0.0
        %2428 = vmatmul.mubr.f32.gmra.mrb[0].mxu0 %v2243
        %v2429 = vpop.f32.mrb[0].mxu0
        %v2430 = vadd.f32 0.0, %v2429
        %v2431 = vpop.f32.mrb[0].mxu0
        %2432 = vmatprep.mubr.f32.mxu0 0.0
        %2433 = vmatmul.mubr.f32.gmra.mrb[0].mxu0 %v2246
        %v2434 = vpop.f32.mrb[0].mxu0
        %v2435 = vadd.f32 0.0, %v2434
        %v2436 = vpop.f32.mrb[0].mxu0
        %2437 = vmatprep.mubr.f32.mxu0 0.0
        %2438 = vmatmul.mubr.f32.gmra.mrb[0].mxu0 %v2249
        %v2439 = vpop.f32.mrb[0].mxu0
        %v2440 = vadd.f32 0.0, %v2439
        %v2441 = vpop.f32.mrb[0].mxu0
        %2442 = vmatprep.mubr.f32.mxu0 0.0
        %2443 = vmatmul.mubr.f32.gmra.mrb[0].mxu0 %v2252
        %v2444 = vpop.f32.mrb[0].mxu0
        %v2445 = vadd.f32 0.0, %v2444
        %v2446 = vpop.f32.mrb[0].mxu0
        %2447 = vmatprep.mubr.f32.mxu0 0.0
        %2448 = vmatmul.mubr.f32.gmra.mrb[0].mxu0 %v2255
        %v2449 = vpop.f32.mrb[0].mxu0
        %v2450 = vadd.f32 0.0, %v2449
        %v2451 = vpop.f32.mrb[0].mxu0
        %2452 = vmatprep.mubr.f32.mxu0 0.0
        %2453 = vmatmul.mubr.f32.gmra.mrb[0].mxu0 %v2258
        %v2454 = vpop.f32.mrb[0].mxu0
        %v2455 = vadd.f32 0.0, %v2454
        %v2456 = vpop.f32.mrb[0].mxu0
        %2457 = vmatprep.mubr.f32.mxu0 0.0
        %2458 = vmatmul.mubr.f32.gmra.mrb[0].mxu0 %v2261
        %v2459 = vpop.f32.mrb[0].mxu0
        %v2460 = vadd.f32 0.0, %v2459
        %v2461 = vpop.f32.mrb[0].mxu0
        %2462 = vmatprep.mubr.f32.mxu0 0.0
        %2463 = vmatmul.mubr.f32.gmra.mrb[0].mxu0 %v2264
        %v2464 = vpop.f32.mrb[0].mxu0
        %v2465 = vadd.f32 0.0, %v2464
        %v2466 = vpop.f32.mrb[0].mxu0
        %2467 = vmatprep.mubr.f32.mxu0 0.0
        %2468 = vmatmul.mubr.f32.gmra.mrb[0].mxu0 %v2267
        %v2469 = vpop.f32.mrb[0].mxu0
        %v2470 = vadd.f32 0.0, %v2469
        %v2471 = vpop.f32.mrb[0].mxu0
        %2472 = vmatprep.mubr.f32.mxu0 0.0
        %2473 = vmatmul.mubr.f32.gmra.mrb[0].mxu0 %v2270
        %v2474 = vpop.f32.mrb[0].mxu0
        %v2475 = vadd.f32 0.0, %v2474
        %v2476 = vpop.f32.mrb[0].mxu0
        %2477 = vmatprep.mubr.f32.mxu0 0.0
        %2478 = vmatmul.mubr.f32.gmra.mrb[0].mxu0 %v2273
        %v2479 = vpop.f32.mrb[0].mxu0
        %v2480 = vadd.f32 0.0, %v2479
        %v2481 = vpop.f32.mrb[0].mxu0
        %2482 = vmatprep.mubr.f32.mxu0 0.0
        %2483 = vmatmul.mubr.f32.gmra.mrb[0].mxu0 %v2276
        %v2484 = vpop.f32.mrb[0].mxu0
        %v2485 = vadd.f32 0.0, %v2484
        %v2486 = vpop.f32.mrb[0].mxu0
        %2487 = vmatprep.mubr.f32.mxu0 0.0
        %2488 = vmatmul.mubr.f32.gmra.mrb[0].mxu0 %v2279
        %v2489 = vpop.f32.mrb[0].mxu0
        %v2490 = vadd.f32 0.0, %v2489
        %v2491 = vpop.f32.mrb[0].mxu0
        %2492 = vmatprep.mubr.f32.mxu0 0.0
        %2493 = vmatmul.mubr.f32.gmra.mrb[0].mxu0 %v2282
        %v2494 = vpop.f32.mrb[0].mxu0
        %v2495 = vadd.f32 0.0, %v2494
        %v2496 = vpop.f32.mrb[0].mxu0
        %2497 = vmatprep.mubr.f32.mxu0 0.0
        %2498 = vmatmul.mubr.f32.gmra.mrb[0].mxu0 %v2285
        %v2499 = vpop.f32.mrb[0].mxu0
        %v2500 = vadd.f32 0.0, %v2499
        %v2501 = vpop.f32.mrb[0].mxu0
        %2502 = vmatprep.mubr.f32.mxu0 0.0
        %2503 = vmatmul.mubr.f32.gmra.mrb[0].mxu0 %v2288
        %v2504 = vpop.f32.mrb[0].mxu0
        %v2505 = vadd.f32 0.0, %v2504
        %v2506 = vpop.f32.mrb[0].mxu0
        %2507 = vmatprep.mubr.f32.mxu0 0.0
        %2508 = vmatmul.mubr.f32.gmra.mrb[0].mxu0 %v2291
        %v2509 = vpop.f32.mrb[0].mxu0
        %v2510 = vadd.f32 0.0, %v2509
        %v2511 = vpop.f32.mrb[0].mxu0
        %2512 = vmatprep.mubr.f32.mxu0 0.0
        %2513 = vmatmul.mubr.f32.gmra.mrb[0].mxu0 %v2294
        %v2514 = vpop.f32.mrb[0].mxu0
        %v2515 = vadd.f32 0.0, %v2514
        %v2516 = vpop.f32.mrb[0].mxu0
        %2517 = vmatprep.mubr.f32.mxu0 0.0
        %2518 = vmatmul.mubr.f32.gmra.mrb[0].mxu0 %v2297
        %v2519 = vpop.f32.mrb[0].mxu0
        %v2520 = vadd.f32 0.0, %v2519
        %v2521 = vpop.f32.mrb[0].mxu0
        %2522 = vmatprep.mubr.f32.mxu0 0.0
        %2523 = vmatmul.mubr.f32.gmra.mrb[0].mxu0 %v2300
        %v2524 = vpop.f32.mrb[0].mxu0
        %v2525 = vadd.f32 0.0, %v2524
        %v2526 = vpop.f32.mrb[0].mxu0
        %2527 = vmatprep.mubr.f32.mxu0 0.0
        %2528 = vmatmul.mubr.f32.gmra.mrb[0].mxu0 %v2303
        %v2529 = vpop.f32.mrb[0].mxu0
        %v2530 = vadd.f32 0.0, %v2529
        %v2531 = vpop.f32.mrb[0].mxu0
        %2532 = vdwg.mxu0
        %v2533 = vadd.f32 %v2143, %v2375
        %v2534 = vadd.f32 %v2144, %v2380
        %v2535 = vadd.f32 %v2145, %v2385
        %v2536 = vadd.f32 %v2146, %v2390
        %v2537 = vadd.f32 %v2147, %v2395
        %v2538 = vadd.f32 %v2148, %v2400
        %v2539 = vadd.f32 %v2149, %v2405
        %v2540 = vadd.f32 %v2150, %v2410
        %v2541 = vadd.f32 %v2151, %v2415
        %v2542 = vadd.f32 %v2152, %v2420
        %v2543 = vadd.f32 %v2153, %v2425
        %v2544 = vadd.f32 %v2154, %v2430
        %v2545 = vadd.f32 %v2155, %v2435
        %v2546 = vadd.f32 %v2156, %v2440
        %v2547 = vadd.f32 %v2157, %v2445
        %v2548 = vadd.f32 %v2158, %v2450
        %v2549 = vadd.f32 %v2159, %v2455
        %v2550 = vadd.f32 %v2160, %v2460
        %v2551 = vadd.f32 %v2161, %v2465
        %v2552 = vadd.f32 %v2162, %v2470
        %v2553 = vadd.f32 %v2163, %v2475
        %v2554 = vadd.f32 %v2164, %v2480
        %v2555 = vadd.f32 %v2165, %v2485
        %v2556 = vadd.f32 %v2166, %v2490
        %v2557 = vadd.f32 %v2167, %v2495
        %v2558 = vadd.f32 %v2168, %v2500
        %v2559 = vadd.f32 %v2169, %v2505
        %v2560 = vadd.f32 %v2170, %v2510
        %v2561 = vadd.f32 %v2171, %v2515
        %v2562 = vadd.f32 %v2172, %v2520
        %v2563 = vadd.f32 %v2173, %v2525
        %v2564 = vadd.f32 %v2174, %v2530
        %s2565 = scalar_lea.vmem [#allocation2], 48
        %v2566 = vld [vmem:[%s2565] sm:$0xff]
        %v2567 = vld [vmem:[%s2565 + $0x8] sm:$0xff]
        %v2568 = vld [vmem:[%s2565 + $0x18] sm:$0xff]
        %v2569 = vld [vmem:[%s2565 + $0x20] sm:$0xff]
        %v2570 = vld [vmem:[%s2565 + $0x30] sm:$0xff]
        %v2571 = vld [vmem:[%s2565 + $0x38] sm:$0xff]
        %v2572 = vld [vmem:[%s2565 + $0x48] sm:$0xff]
        %v2573 = vld [vmem:[%s2565 + $0x50] sm:$0xff]
        %v2574 = vld [vmem:[%s2565 + $0x60] sm:$0xff]
        %v2575 = vld [vmem:[%s2565 + $0x68] sm:$0xff]
        %v2576 = vld [vmem:[%s2565 + $0x78] sm:$0xff]
        %v2577 = vld [vmem:[%s2565 + $0x80] sm:$0xff]
        %v2578 = vld [vmem:[%s2565 + $0x90] sm:$0xff]
        %v2579 = vld [vmem:[%s2565 + $0x98] sm:$0xff]
        %v2580 = vld [vmem:[%s2565 + $0xa8] sm:$0xff]
        %v2581 = vld [vmem:[%s2565 + $0xb0] sm:$0xff]
        %v2582 = vld [vmem:[%s2565 + $0xc0] sm:$0xff]
        %v2583 = vld [vmem:[%s2565 + $0xc8] sm:$0xff]
        %v2584 = vld [vmem:[%s2565 + $0xd8] sm:$0xff]
        %v2585 = vld [vmem:[%s2565 + $0xe0] sm:$0xff]
        %v2586 = vld [vmem:[%s2565 + $0xf0] sm:$0xff]
        %v2587 = vld [vmem:[%s2565 + $0xf8] sm:$0xff]
        %v2588 = vld [vmem:[%s2565 + $0x108] sm:$0xff]
        %v2589 = vld [vmem:[%s2565 + $0x110] sm:$0xff]
        %v2590 = vld [vmem:[%s2565 + $0x120] sm:$0xff]
        %v2591 = vld [vmem:[%s2565 + $0x128] sm:$0xff]
        %v2592 = vld [vmem:[%s2565 + $0x138] sm:$0xff]
        %v2593 = vld [vmem:[%s2565 + $0x140] sm:$0xff]
        %v2594 = vld [vmem:[%s2565 + $0x150] sm:$0xff]
        %v2595 = vld [vmem:[%s2565 + $0x158] sm:$0xff]
        %v2596 = vld [vmem:[%s2565 + $0x168] sm:$0xff]
        %v2597 = vld [vmem:[%s2565 + $0x170] sm:$0xff]
        %s2598 = scalar_lea.vmem %s1, 24
        %v2599 = vld [vmem:[%s2598] sm:$0xf]
        %v2601 = vsel %vm215, %v2566, 0
        %v2604 = vsel %vm215, %v2567, 0
        %v2607 = vsel %vm215, %v2568, 0
        %v2610 = vsel %vm215, %v2569, 0
        %v2613 = vsel %vm215, %v2570, 0
        %v2616 = vsel %vm215, %v2571, 0
        %v2619 = vsel %vm215, %v2572, 0
        %v2622 = vsel %vm215, %v2573, 0
        %v2625 = vsel %vm215, %v2574, 0
        %v2628 = vsel %vm215, %v2575, 0
        %v2631 = vsel %vm215, %v2576, 0
        %v2634 = vsel %vm215, %v2577, 0
        %v2637 = vsel %vm215, %v2578, 0
        %v2640 = vsel %vm215, %v2579, 0
        %v2643 = vsel %vm215, %v2580, 0
        %v2646 = vsel %vm215, %v2581, 0
        %v2649 = vsel %vm215, %v2582, 0
        %v2652 = vsel %vm215, %v2583, 0
        %v2655 = vsel %vm215, %v2584, 0
        %v2658 = vsel %vm215, %v2585, 0
        %v2661 = vsel %vm215, %v2586, 0
        %v2664 = vsel %vm215, %v2587, 0
        %v2667 = vsel %vm215, %v2588, 0
        %v2670 = vsel %vm215, %v2589, 0
        %v2673 = vsel %vm215, %v2590, 0
        %v2676 = vsel %vm215, %v2591, 0
        %v2679 = vsel %vm215, %v2592, 0
        %v2682 = vsel %vm215, %v2593, 0
        %v2685 = vsel %vm215, %v2594, 0
        %v2688 = vsel %vm215, %v2595, 0
        %v2691 = vsel %vm215, %v2596, 0
        %v2694 = vsel %vm215, %v2597, 0
        %v2697 = vsel %vm452, %v2599, 0
        %2699 = vmatprep.subr.mxu0 0.0
        %2700 = vmatpush1.msra.mxu0 %v2697
        %2701 = vmatprep.subr.mxu0 0.0
        %2702 = vmatpush1.msra.mxu0 0.0
        %2703 = vmatprep.subr.mxu0 0.0
        %2704 = vmatpush1.msra.mxu0 0.0
        %2705 = vmatprep.subr.mxu0 0.0
        %2706 = vmatpush1.msra.mxu0 0.0
        %2707 = vmatprep.subr.mxu0 0.0
        %2708 = vmatpush1.msra.mxu0 0.0
        %2709 = vmatprep.subr.mxu0 0.0
        %2710 = vmatpush1.msra.mxu0 0.0
        %2711 = vmatprep.subr.mxu0 0.0
        %2712 = vmatpush1.msra.mxu0 0.0
        %2713 = vmatprep.subr.mxu0 0.0
        %2714 = vmatpush1.msra.mxu0 0.0
        %2715 = vmatprep.subr.mxu0 0.0
        %2716 = vmatpush1.msra.mxu0 0.0
        %2717 = vmatprep.subr.mxu0 0.0
        %2718 = vmatpush1.msra.mxu0 0.0
        %2719 = vmatprep.subr.mxu0 0.0
        %2720 = vmatpush1.msra.mxu0 0.0
        %2721 = vmatprep.subr.mxu0 0.0
        %2722 = vmatpush1.msra.mxu0 0.0
        %2723 = vmatprep.subr.mxu0 0.0
        %2724 = vmatpush1.msra.mxu0 0.0
        %2725 = vmatprep.subr.mxu0 0.0
        %2726 = vmatpush1.msra.mxu0 0.0
        %2727 = vmatprep.subr.mxu0 0.0
        %2728 = vmatpush1.msra.mxu0 0.0
        %2729 = vmatprep.subr.mxu0 0.0
        %2730 = vmatpush1.msra.mxu0 0.0
        %2731 = vmatprep.subr.mxu0 0.0
        %2732 = vmatpush1.msra.mxu0 0.0
        %2733 = vmatprep.subr.mxu0 0.0
        %2734 = vmatpush1.msra.mxu0 0.0
        %2735 = vmatprep.subr.mxu0 0.0
        %2736 = vmatpush1.msra.mxu0 0.0
        %2737 = vmatprep.subr.mxu0 0.0
        %2738 = vmatpush1.msra.mxu0 0.0
        %2739 = vmatprep.subr.mxu0 0.0
        %2740 = vmatpush1.msra.mxu0 0.0
        %2741 = vmatprep.subr.mxu0 0.0
        %2742 = vmatpush1.msra.mxu0 0.0
        %2743 = vmatprep.subr.mxu0 0.0
        %2744 = vmatpush1.msra.mxu0 0.0
        %2745 = vmatprep.subr.mxu0 0.0
        %2746 = vmatpush1.msra.mxu0 0.0
        %2747 = vmatprep.subr.mxu0 0.0
        %2748 = vmatpush1.msra.mxu0 0.0
        %2749 = vmatprep.subr.mxu0 0.0
        %2750 = vmatpush1.msra.mxu0 0.0
        %2751 = vmatprep.subr.mxu0 0.0
        %2752 = vmatpush1.msra.mxu0 0.0
        %2753 = vmatprep.subr.mxu0 0.0
        %2754 = vmatpush1.msra.mxu0 0.0
        %2755 = vmatprep.subr.mxu0 0.0
        %2756 = vmatpush1.msra.mxu0 0.0
        %2757 = vmatprep.subr.mxu0 0.0
        %2758 = vmatpush1.msra.mxu0 0.0
        %2759 = vmatprep.subr.mxu0 0.0
        %2760 = vmatpush1.msra.mxu0 0.0
        %2761 = vmatprep.subr.mxu0 0.0
        %2762 = vmatpush1.msra.mxu0 0.0
        %2763 = vmatprep.mubr.f32.mxu0 0.0
        %2764 = vmatmul.mubr.f32.gmra.mrb[0].mxu0 %v2601
        %v2765 = vpop.f32.mrb[0].mxu0
        %v2766 = vadd.f32 0.0, %v2765
        %v2767 = vpop.f32.mrb[0].mxu0
        %2768 = vmatprep.mubr.f32.mxu0 0.0
        %2769 = vmatmul.mubr.f32.gmra.mrb[0].mxu0 %v2604
        %v2770 = vpop.f32.mrb[0].mxu0
        %v2771 = vadd.f32 0.0, %v2770
        %v2772 = vpop.f32.mrb[0].mxu0
        %2773 = vmatprep.mubr.f32.mxu0 0.0
        %2774 = vmatmul.mubr.f32.gmra.mrb[0].mxu0 %v2607
        %v2775 = vpop.f32.mrb[0].mxu0
        %v2776 = vadd.f32 0.0, %v2775
        %v2777 = vpop.f32.mrb[0].mxu0
        %2778 = vmatprep.mubr.f32.mxu0 0.0
        %2779 = vmatmul.mubr.f32.gmra.mrb[0].mxu0 %v2610
        %v2780 = vpop.f32.mrb[0].mxu0
        %v2781 = vadd.f32 0.0, %v2780
        %v2782 = vpop.f32.mrb[0].mxu0
        %2783 = vmatprep.mubr.f32.mxu0 0.0
        %2784 = vmatmul.mubr.f32.gmra.mrb[0].mxu0 %v2613
        %v2785 = vpop.f32.mrb[0].mxu0
        %v2786 = vadd.f32 0.0, %v2785
        %v2787 = vpop.f32.mrb[0].mxu0
        %2788 = vmatprep.mubr.f32.mxu0 0.0
        %2789 = vmatmul.mubr.f32.gmra.mrb[0].mxu0 %v2616
        %v2790 = vpop.f32.mrb[0].mxu0
        %v2791 = vadd.f32 0.0, %v2790
        %v2792 = vpop.f32.mrb[0].mxu0
        %2793 = vmatprep.mubr.f32.mxu0 0.0
        %2794 = vmatmul.mubr.f32.gmra.mrb[0].mxu0 %v2619
        %v2795 = vpop.f32.mrb[0].mxu0
        %v2796 = vadd.f32 0.0, %v2795
        %v2797 = vpop.f32.mrb[0].mxu0
        %2798 = vmatprep.mubr.f32.mxu0 0.0
        %2799 = vmatmul.mubr.f32.gmra.mrb[0].mxu0 %v2622
        %v2800 = vpop.f32.mrb[0].mxu0
        %v2801 = vadd.f32 0.0, %v2800
        %v2802 = vpop.f32.mrb[0].mxu0
        %2803 = vmatprep.mubr.f32.mxu0 0.0
        %2804 = vmatmul.mubr.f32.gmra.mrb[0].mxu0 %v2625
        %v2805 = vpop.f32.mrb[0].mxu0
        %v2806 = vadd.f32 0.0, %v2805
        %v2807 = vpop.f32.mrb[0].mxu0
        %2808 = vmatprep.mubr.f32.mxu0 0.0
        %2809 = vmatmul.mubr.f32.gmra.mrb[0].mxu0 %v2628
        %v2810 = vpop.f32.mrb[0].mxu0
        %v2811 = vadd.f32 0.0, %v2810
        %v2812 = vpop.f32.mrb[0].mxu0
        %2813 = vmatprep.mubr.f32.mxu0 0.0
        %2814 = vmatmul.mubr.f32.gmra.mrb[0].mxu0 %v2631
        %v2815 = vpop.f32.mrb[0].mxu0
        %v2816 = vadd.f32 0.0, %v2815
        %v2817 = vpop.f32.mrb[0].mxu0
        %2818 = vmatprep.mubr.f32.mxu0 0.0
        %2819 = vmatmul.mubr.f32.gmra.mrb[0].mxu0 %v2634
        %v2820 = vpop.f32.mrb[0].mxu0
        %v2821 = vadd.f32 0.0, %v2820
        %v2822 = vpop.f32.mrb[0].mxu0
        %2823 = vmatprep.mubr.f32.mxu0 0.0
        %2824 = vmatmul.mubr.f32.gmra.mrb[0].mxu0 %v2637
        %v2825 = vpop.f32.mrb[0].mxu0
        %v2826 = vadd.f32 0.0, %v2825
        %v2827 = vpop.f32.mrb[0].mxu0
        %2828 = vmatprep.mubr.f32.mxu0 0.0
        %2829 = vmatmul.mubr.f32.gmra.mrb[0].mxu0 %v2640
        %v2830 = vpop.f32.mrb[0].mxu0
        %v2831 = vadd.f32 0.0, %v2830
        %v2832 = vpop.f32.mrb[0].mxu0
        %2833 = vmatprep.mubr.f32.mxu0 0.0
        %2834 = vmatmul.mubr.f32.gmra.mrb[0].mxu0 %v2643
        %v2835 = vpop.f32.mrb[0].mxu0
        %v2836 = vadd.f32 0.0, %v2835
        %v2837 = vpop.f32.mrb[0].mxu0
        %2838 = vmatprep.mubr.f32.mxu0 0.0
        %2839 = vmatmul.mubr.f32.gmra.mrb[0].mxu0 %v2646
        %v2840 = vpop.f32.mrb[0].mxu0
        %v2841 = vadd.f32 0.0, %v2840
        %v2842 = vpop.f32.mrb[0].mxu0
        %2843 = vmatprep.mubr.f32.mxu0 0.0
        %2844 = vmatmul.mubr.f32.gmra.mrb[0].mxu0 %v2649
        %v2845 = vpop.f32.mrb[0].mxu0
        %v2846 = vadd.f32 0.0, %v2845
        %v2847 = vpop.f32.mrb[0].mxu0
        %2848 = vmatprep.mubr.f32.mxu0 0.0
        %2849 = vmatmul.mubr.f32.gmra.mrb[0].mxu0 %v2652
        %v2850 = vpop.f32.mrb[0].mxu0
        %v2851 = vadd.f32 0.0, %v2850
        %v2852 = vpop.f32.mrb[0].mxu0
        %2853 = vmatprep.mubr.f32.mxu0 0.0
        %2854 = vmatmul.mubr.f32.gmra.mrb[0].mxu0 %v2655
        %v2855 = vpop.f32.mrb[0].mxu0
        %v2856 = vadd.f32 0.0, %v2855
        %v2857 = vpop.f32.mrb[0].mxu0
        %2858 = vmatprep.mubr.f32.mxu0 0.0
        %2859 = vmatmul.mubr.f32.gmra.mrb[0].mxu0 %v2658
        %v2860 = vpop.f32.mrb[0].mxu0
        %v2861 = vadd.f32 0.0, %v2860
        %v2862 = vpop.f32.mrb[0].mxu0
        %2863 = vmatprep.mubr.f32.mxu0 0.0
        %2864 = vmatmul.mubr.f32.gmra.mrb[0].mxu0 %v2661
        %v2865 = vpop.f32.mrb[0].mxu0
        %v2866 = vadd.f32 0.0, %v2865
        %v2867 = vpop.f32.mrb[0].mxu0
        %2868 = vmatprep.mubr.f32.mxu0 0.0
        %2869 = vmatmul.mubr.f32.gmra.mrb[0].mxu0 %v2664
        %v2870 = vpop.f32.mrb[0].mxu0
        %v2871 = vadd.f32 0.0, %v2870
        %v2872 = vpop.f32.mrb[0].mxu0
        %2873 = vmatprep.mubr.f32.mxu0 0.0
        %2874 = vmatmul.mubr.f32.gmra.mrb[0].mxu0 %v2667
        %v2875 = vpop.f32.mrb[0].mxu0
        %v2876 = vadd.f32 0.0, %v2875
        %v2877 = vpop.f32.mrb[0].mxu0
        %2878 = vmatprep.mubr.f32.mxu0 0.0
        %2879 = vmatmul.mubr.f32.gmra.mrb[0].mxu0 %v2670
        %v2880 = vpop.f32.mrb[0].mxu0
        %v2881 = vadd.f32 0.0, %v2880
        %v2882 = vpop.f32.mrb[0].mxu0
        %2883 = vmatprep.mubr.f32.mxu0 0.0
        %2884 = vmatmul.mubr.f32.gmra.mrb[0].mxu0 %v2673
        %v2885 = vpop.f32.mrb[0].mxu0
        %v2886 = vadd.f32 0.0, %v2885
        %v2887 = vpop.f32.mrb[0].mxu0
        %2888 = vmatprep.mubr.f32.mxu0 0.0
        %2889 = vmatmul.mubr.f32.gmra.mrb[0].mxu0 %v2676
        %v2890 = vpop.f32.mrb[0].mxu0
        %v2891 = vadd.f32 0.0, %v2890
        %v2892 = vpop.f32.mrb[0].mxu0
        %2893 = vmatprep.mubr.f32.mxu0 0.0
        %2894 = vmatmul.mubr.f32.gmra.mrb[0].mxu0 %v2679
        %v2895 = vpop.f32.mrb[0].mxu0
        %v2896 = vadd.f32 0.0, %v2895
        %v2897 = vpop.f32.mrb[0].mxu0
        %2898 = vmatprep.mubr.f32.mxu0 0.0
        %2899 = vmatmul.mubr.f32.gmra.mrb[0].mxu0 %v2682
        %v2900 = vpop.f32.mrb[0].mxu0
        %v2901 = vadd.f32 0.0, %v2900
        %v2902 = vpop.f32.mrb[0].mxu0
        %2903 = vmatprep.mubr.f32.mxu0 0.0
        %2904 = vmatmul.mubr.f32.gmra.mrb[0].mxu0 %v2685
        %v2905 = vpop.f32.mrb[0].mxu0
        %v2906 = vadd.f32 0.0, %v2905
        %v2907 = vpop.f32.mrb[0].mxu0
        %2908 = vmatprep.mubr.f32.mxu0 0.0
        %2909 = vmatmul.mubr.f32.gmra.mrb[0].mxu0 %v2688
        %v2910 = vpop.f32.mrb[0].mxu0
        %v2911 = vadd.f32 0.0, %v2910
        %v2912 = vpop.f32.mrb[0].mxu0
        %2913 = vmatprep.mubr.f32.mxu0 0.0
        %2914 = vmatmul.mubr.f32.gmra.mrb[0].mxu0 %v2691
        %v2915 = vpop.f32.mrb[0].mxu0
        %v2916 = vadd.f32 0.0, %v2915
        %v2917 = vpop.f32.mrb[0].mxu0
        %2918 = vmatprep.mubr.f32.mxu0 0.0
        %2919 = vmatmul.mubr.f32.gmra.mrb[0].mxu0 %v2694
        %v2920 = vpop.f32.mrb[0].mxu0
        %v2921 = vadd.f32 0.0, %v2920
        %v2922 = vpop.f32.mrb[0].mxu0
        %2923 = vdwg.mxu0
        %v2924 = vadd.f32 %v2533, %v2766
        %v2925 = vadd.f32 %v2534, %v2771
        %v2926 = vadd.f32 %v2535, %v2776
        %v2927 = vadd.f32 %v2536, %v2781
        %v2928 = vadd.f32 %v2537, %v2786
        %v2929 = vadd.f32 %v2538, %v2791
        %v2930 = vadd.f32 %v2539, %v2796
        %v2931 = vadd.f32 %v2540, %v2801
        %v2932 = vadd.f32 %v2541, %v2806
        %v2933 = vadd.f32 %v2542, %v2811
        %v2934 = vadd.f32 %v2543, %v2816
        %v2935 = vadd.f32 %v2544, %v2821
        %v2936 = vadd.f32 %v2545, %v2826
        %v2937 = vadd.f32 %v2546, %v2831
        %v2938 = vadd.f32 %v2547, %v2836
        %v2939 = vadd.f32 %v2548, %v2841
        %v2940 = vadd.f32 %v2549, %v2846
        %v2941 = vadd.f32 %v2550, %v2851
        %v2942 = vadd.f32 %v2551, %v2856
        %v2943 = vadd.f32 %v2552, %v2861
        %v2944 = vadd.f32 %v2553, %v2866
        %v2945 = vadd.f32 %v2554, %v2871
        %v2946 = vadd.f32 %v2555, %v2876
        %v2947 = vadd.f32 %v2556, %v2881
        %v2948 = vadd.f32 %v2557, %v2886
        %v2949 = vadd.f32 %v2558, %v2891
        %v2950 = vadd.f32 %v2559, %v2896
        %v2951 = vadd.f32 %v2560, %v2901
        %v2952 = vadd.f32 %v2561, %v2906
        %v2953 = vadd.f32 %v2562, %v2911
        %v2954 = vadd.f32 %v2563, %v2916
        %v2955 = vadd.f32 %v2564, %v2921
        %v2956 = vld [vmem:[%s2565 + $0x1] sm:$0xff]
        %v2957 = vld [vmem:[%s2565 + $0x9] sm:$0xff]
        %v2958 = vld [vmem:[%s2565 + $0x19] sm:$0xff]
        %v2959 = vld [vmem:[%s2565 + $0x21] sm:$0xff]
        %v2960 = vld [vmem:[%s2565 + $0x31] sm:$0xff]
        %v2961 = vld [vmem:[%s2565 + $0x39] sm:$0xff]
        %v2962 = vld [vmem:[%s2565 + $0x49] sm:$0xff]
        %v2963 = vld [vmem:[%s2565 + $0x51] sm:$0xff]
        %v2964 = vld [vmem:[%s2565 + $0x61] sm:$0xff]
        %v2965 = vld [vmem:[%s2565 + $0x69] sm:$0xff]
        %v2966 = vld [vmem:[%s2565 + $0x79] sm:$0xff]
        %v2967 = vld [vmem:[%s2565 + $0x81] sm:$0xff]
        %v2968 = vld [vmem:[%s2565 + $0x91] sm:$0xff]
        %v2969 = vld [vmem:[%s2565 + $0x99] sm:$0xff]
        %v2970 = vld [vmem:[%s2565 + $0xa9] sm:$0xff]
        %v2971 = vld [vmem:[%s2565 + $0xb1] sm:$0xff]
        %v2972 = vld [vmem:[%s2565 + $0xc1] sm:$0xff]
        %v2973 = vld [vmem:[%s2565 + $0xc9] sm:$0xff]
        %v2974 = vld [vmem:[%s2565 + $0xd9] sm:$0xff]
        %v2975 = vld [vmem:[%s2565 + $0xe1] sm:$0xff]
        %v2976 = vld [vmem:[%s2565 + $0xf1] sm:$0xff]
        %v2977 = vld [vmem:[%s2565 + $0xf9] sm:$0xff]
        %v2978 = vld [vmem:[%s2565 + $0x109] sm:$0xff]
        %v2979 = vld [vmem:[%s2565 + $0x111] sm:$0xff]
        %v2980 = vld [vmem:[%s2565 + $0x121] sm:$0xff]
        %v2981 = vld [vmem:[%s2565 + $0x129] sm:$0xff]
        %v2982 = vld [vmem:[%s2565 + $0x139] sm:$0xff]
        %v2983 = vld [vmem:[%s2565 + $0x141] sm:$0xff]
        %v2984 = vld [vmem:[%s2565 + $0x151] sm:$0xff]
        %v2985 = vld [vmem:[%s2565 + $0x159] sm:$0xff]
        %v2986 = vld [vmem:[%s2565 + $0x169] sm:$0xff]
        %v2987 = vld [vmem:[%s2565 + $0x171] sm:$0xff]
        %s2988 = scalar_lea.vmem %s1, 28
        %v2989 = vld [vmem:[%s2988] sm:$0xf]
        %v2991 = vsel %vm215, %v2956, 0
        %v2994 = vsel %vm215, %v2957, 0
        %v2997 = vsel %vm215, %v2958, 0
        %v3000 = vsel %vm215, %v2959, 0
        %v3003 = vsel %vm215, %v2960, 0
        %v3006 = vsel %vm215, %v2961, 0
        %v3009 = vsel %vm215, %v2962, 0
        %v3012 = vsel %vm215, %v2963, 0
        %v3015 = vsel %vm215, %v2964, 0
        %v3018 = vsel %vm215, %v2965, 0
        %v3021 = vsel %vm215, %v2966, 0
        %v3024 = vsel %vm215, %v2967, 0
        %v3027 = vsel %vm215, %v2968, 0
        %v3030 = vsel %vm215, %v2969, 0
        %v3033 = vsel %vm215, %v2970, 0
        %v3036 = vsel %vm215, %v2971, 0
        %v3039 = vsel %vm215, %v2972, 0
        %v3042 = vsel %vm215, %v2973, 0
        %v3045 = vsel %vm215, %v2974, 0
        %v3048 = vsel %vm215, %v2975, 0
        %v3051 = vsel %vm215, %v2976, 0
        %v3054 = vsel %vm215, %v2977, 0
        %v3057 = vsel %vm215, %v2978, 0
        %v3060 = vsel %vm215, %v2979, 0
        %v3063 = vsel %vm215, %v2980, 0
        %v3066 = vsel %vm215, %v2981, 0
        %v3069 = vsel %vm215, %v2982, 0
        %v3072 = vsel %vm215, %v2983, 0
        %v3075 = vsel %vm215, %v2984, 0
        %v3078 = vsel %vm215, %v2985, 0
        %v3081 = vsel %vm215, %v2986, 0
        %v3084 = vsel %vm215, %v2987, 0
        %v3087 = vsel %vm452, %v2989, 0
        %3089 = vmatprep.subr.mxu0 0.0
        %3090 = vmatpush1.msra.mxu0 %v3087
        %3091 = vmatprep.subr.mxu0 0.0
        %3092 = vmatpush1.msra.mxu0 0.0
        %3093 = vmatprep.subr.mxu0 0.0
        %3094 = vmatpush1.msra.mxu0 0.0
        %3095 = vmatprep.subr.mxu0 0.0
        %3096 = vmatpush1.msra.mxu0 0.0
        %3097 = vmatprep.subr.mxu0 0.0
        %3098 = vmatpush1.msra.mxu0 0.0
        %3099 = vmatprep.subr.mxu0 0.0
        %3100 = vmatpush1.msra.mxu0 0.0
        %3101 = vmatprep.subr.mxu0 0.0
        %3102 = vmatpush1.msra.mxu0 0.0
        %3103 = vmatprep.subr.mxu0 0.0
        %3104 = vmatpush1.msra.mxu0 0.0
        %3105 = vmatprep.subr.mxu0 0.0
        %3106 = vmatpush1.msra.mxu0 0.0
        %3107 = vmatprep.subr.mxu0 0.0
        %3108 = vmatpush1.msra.mxu0 0.0
        %3109 = vmatprep.subr.mxu0 0.0
        %3110 = vmatpush1.msra.mxu0 0.0
        %3111 = vmatprep.subr.mxu0 0.0
        %3112 = vmatpush1.msra.mxu0 0.0
        %3113 = vmatprep.subr.mxu0 0.0
        %3114 = vmatpush1.msra.mxu0 0.0
        %3115 = vmatprep.subr.mxu0 0.0
        %3116 = vmatpush1.msra.mxu0 0.0
        %3117 = vmatprep.subr.mxu0 0.0
        %3118 = vmatpush1.msra.mxu0 0.0
        %3119 = vmatprep.subr.mxu0 0.0
        %3120 = vmatpush1.msra.mxu0 0.0
        %3121 = vmatprep.subr.mxu0 0.0
        %3122 = vmatpush1.msra.mxu0 0.0
        %3123 = vmatprep.subr.mxu0 0.0
        %3124 = vmatpush1.msra.mxu0 0.0
        %3125 = vmatprep.subr.mxu0 0.0
        %3126 = vmatpush1.msra.mxu0 0.0
        %3127 = vmatprep.subr.mxu0 0.0
        %3128 = vmatpush1.msra.mxu0 0.0
        %3129 = vmatprep.subr.mxu0 0.0
        %3130 = vmatpush1.msra.mxu0 0.0
        %3131 = vmatprep.subr.mxu0 0.0
        %3132 = vmatpush1.msra.mxu0 0.0
        %3133 = vmatprep.subr.mxu0 0.0
        %3134 = vmatpush1.msra.mxu0 0.0
        %3135 = vmatprep.subr.mxu0 0.0
        %3136 = vmatpush1.msra.mxu0 0.0
        %3137 = vmatprep.subr.mxu0 0.0
        %3138 = vmatpush1.msra.mxu0 0.0
        %3139 = vmatprep.subr.mxu0 0.0
        %3140 = vmatpush1.msra.mxu0 0.0
        %3141 = vmatprep.subr.mxu0 0.0
        %3142 = vmatpush1.msra.mxu0 0.0
        %3143 = vmatprep.subr.mxu0 0.0
        %3144 = vmatpush1.msra.mxu0 0.0
        %3145 = vmatprep.subr.mxu0 0.0
        %3146 = vmatpush1.msra.mxu0 0.0
        %3147 = vmatprep.subr.mxu0 0.0
        %3148 = vmatpush1.msra.mxu0 0.0
        %3149 = vmatprep.subr.mxu0 0.0
        %3150 = vmatpush1.msra.mxu0 0.0
        %3151 = vmatprep.subr.mxu0 0.0
        %3152 = vmatpush1.msra.mxu0 0.0
        %3153 = vmatprep.mubr.f32.mxu0 0.0
        %3154 = vmatmul.mubr.f32.gmra.mrb[0].mxu0 %v2991
        %v3155 = vpop.f32.mrb[0].mxu0
        %v3156 = vadd.f32 0.0, %v3155
        %v3157 = vpop.f32.mrb[0].mxu0
        %3158 = vmatprep.mubr.f32.mxu0 0.0
        %3159 = vmatmul.mubr.f32.gmra.mrb[0].mxu0 %v2994
        %v3160 = vpop.f32.mrb[0].mxu0
        %v3161 = vadd.f32 0.0, %v3160
        %v3162 = vpop.f32.mrb[0].mxu0
        %3163 = vmatprep.mubr.f32.mxu0 0.0
        %3164 = vmatmul.mubr.f32.gmra.mrb[0].mxu0 %v2997
        %v3165 = vpop.f32.mrb[0].mxu0
        %v3166 = vadd.f32 0.0, %v3165
        %v3167 = vpop.f32.mrb[0].mxu0
        %3168 = vmatprep.mubr.f32.mxu0 0.0
        %3169 = vmatmul.mubr.f32.gmra.mrb[0].mxu0 %v3000
        %v3170 = vpop.f32.mrb[0].mxu0
        %v3171 = vadd.f32 0.0, %v3170
        %v3172 = vpop.f32.mrb[0].mxu0
        %3173 = vmatprep.mubr.f32.mxu0 0.0
        %3174 = vmatmul.mubr.f32.gmra.mrb[0].mxu0 %v3003
        %v3175 = vpop.f32.mrb[0].mxu0
        %v3176 = vadd.f32 0.0, %v3175
        %v3177 = vpop.f32.mrb[0].mxu0
        %3178 = vmatprep.mubr.f32.mxu0 0.0
        %3179 = vmatmul.mubr.f32.gmra.mrb[0].mxu0 %v3006
        %v3180 = vpop.f32.mrb[0].mxu0
        %v3181 = vadd.f32 0.0, %v3180
        %v3182 = vpop.f32.mrb[0].mxu0
        %3183 = vmatprep.mubr.f32.mxu0 0.0
        %3184 = vmatmul.mubr.f32.gmra.mrb[0].mxu0 %v3009
        %v3185 = vpop.f32.mrb[0].mxu0
        %v3186 = vadd.f32 0.0, %v3185
        %v3187 = vpop.f32.mrb[0].mxu0
        %3188 = vmatprep.mubr.f32.mxu0 0.0
        %3189 = vmatmul.mubr.f32.gmra.mrb[0].mxu0 %v3012
        %v3190 = vpop.f32.mrb[0].mxu0
        %v3191 = vadd.f32 0.0, %v3190
        %v3192 = vpop.f32.mrb[0].mxu0
        %3193 = vmatprep.mubr.f32.mxu0 0.0
        %3194 = vmatmul.mubr.f32.gmra.mrb[0].mxu0 %v3015
        %v3195 = vpop.f32.mrb[0].mxu0
        %v3196 = vadd.f32 0.0, %v3195
        %v3197 = vpop.f32.mrb[0].mxu0
        %3198 = vmatprep.mubr.f32.mxu0 0.0
        %3199 = vmatmul.mubr.f32.gmra.mrb[0].mxu0 %v3018
        %v3200 = vpop.f32.mrb[0].mxu0
        %v3201 = vadd.f32 0.0, %v3200
        %v3202 = vpop.f32.mrb[0].mxu0
        %3203 = vmatprep.mubr.f32.mxu0 0.0
        %3204 = vmatmul.mubr.f32.gmra.mrb[0].mxu0 %v3021
        %v3205 = vpop.f32.mrb[0].mxu0
        %v3206 = vadd.f32 0.0, %v3205
        %v3207 = vpop.f32.mrb[0].mxu0
        %3208 = vmatprep.mubr.f32.mxu0 0.0
        %3209 = vmatmul.mubr.f32.gmra.mrb[0].mxu0 %v3024
        %v3210 = vpop.f32.mrb[0].mxu0
        %v3211 = vadd.f32 0.0, %v3210
        %v3212 = vpop.f32.mrb[0].mxu0
        %3213 = vmatprep.mubr.f32.mxu0 0.0
        %3214 = vmatmul.mubr.f32.gmra.mrb[0].mxu0 %v3027
        %v3215 = vpop.f32.mrb[0].mxu0
        %v3216 = vadd.f32 0.0, %v3215
        %v3217 = vpop.f32.mrb[0].mxu0
        %3218 = vmatprep.mubr.f32.mxu0 0.0
        %3219 = vmatmul.mubr.f32.gmra.mrb[0].mxu0 %v3030
        %v3220 = vpop.f32.mrb[0].mxu0
        %v3221 = vadd.f32 0.0, %v3220
        %v3222 = vpop.f32.mrb[0].mxu0
        %3223 = vmatprep.mubr.f32.mxu0 0.0
        %3224 = vmatmul.mubr.f32.gmra.mrb[0].mxu0 %v3033
        %v3225 = vpop.f32.mrb[0].mxu0
        %v3226 = vadd.f32 0.0, %v3225
        %v3227 = vpop.f32.mrb[0].mxu0
        %3228 = vmatprep.mubr.f32.mxu0 0.0
        %3229 = vmatmul.mubr.f32.gmra.mrb[0].mxu0 %v3036
        %v3230 = vpop.f32.mrb[0].mxu0
        %v3231 = vadd.f32 0.0, %v3230
        %v3232 = vpop.f32.mrb[0].mxu0
        %3233 = vmatprep.mubr.f32.mxu0 0.0
        %3234 = vmatmul.mubr.f32.gmra.mrb[0].mxu0 %v3039
        %v3235 = vpop.f32.mrb[0].mxu0
        %v3236 = vadd.f32 0.0, %v3235
        %v3237 = vpop.f32.mrb[0].mxu0
        %3238 = vmatprep.mubr.f32.mxu0 0.0
        %3239 = vmatmul.mubr.f32.gmra.mrb[0].mxu0 %v3042
        %v3240 = vpop.f32.mrb[0].mxu0
        %v3241 = vadd.f32 0.0, %v3240
        %v3242 = vpop.f32.mrb[0].mxu0
        %3243 = vmatprep.mubr.f32.mxu0 0.0
        %3244 = vmatmul.mubr.f32.gmra.mrb[0].mxu0 %v3045
        %v3245 = vpop.f32.mrb[0].mxu0
        %v3246 = vadd.f32 0.0, %v3245
        %v3247 = vpop.f32.mrb[0].mxu0
        %3248 = vmatprep.mubr.f32.mxu0 0.0
        %3249 = vmatmul.mubr.f32.gmra.mrb[0].mxu0 %v3048
        %v3250 = vpop.f32.mrb[0].mxu0
        %v3251 = vadd.f32 0.0, %v3250
        %v3252 = vpop.f32.mrb[0].mxu0
        %3253 = vmatprep.mubr.f32.mxu0 0.0
        %3254 = vmatmul.mubr.f32.gmra.mrb[0].mxu0 %v3051
        %v3255 = vpop.f32.mrb[0].mxu0
        %v3256 = vadd.f32 0.0, %v3255
        %v3257 = vpop.f32.mrb[0].mxu0
        %3258 = vmatprep.mubr.f32.mxu0 0.0
        %3259 = vmatmul.mubr.f32.gmra.mrb[0].mxu0 %v3054
        %v3260 = vpop.f32.mrb[0].mxu0
        %v3261 = vadd.f32 0.0, %v3260
        %v3262 = vpop.f32.mrb[0].mxu0
        %3263 = vmatprep.mubr.f32.mxu0 0.0
        %3264 = vmatmul.mubr.f32.gmra.mrb[0].mxu0 %v3057
        %v3265 = vpop.f32.mrb[0].mxu0
        %v3266 = vadd.f32 0.0, %v3265
        %v3267 = vpop.f32.mrb[0].mxu0
        %3268 = vmatprep.mubr.f32.mxu0 0.0
        %3269 = vmatmul.mubr.f32.gmra.mrb[0].mxu0 %v3060
        %v3270 = vpop.f32.mrb[0].mxu0
        %v3271 = vadd.f32 0.0, %v3270
        %v3272 = vpop.f32.mrb[0].mxu0
        %3273 = vmatprep.mubr.f32.mxu0 0.0
        %3274 = vmatmul.mubr.f32.gmra.mrb[0].mxu0 %v3063
        %v3275 = vpop.f32.mrb[0].mxu0
        %v3276 = vadd.f32 0.0, %v3275
        %v3277 = vpop.f32.mrb[0].mxu0
        %3278 = vmatprep.mubr.f32.mxu0 0.0
        %3279 = vmatmul.mubr.f32.gmra.mrb[0].mxu0 %v3066
        %v3280 = vpop.f32.mrb[0].mxu0
        %v3281 = vadd.f32 0.0, %v3280
        %v3282 = vpop.f32.mrb[0].mxu0
        %3283 = vmatprep.mubr.f32.mxu0 0.0
        %3284 = vmatmul.mubr.f32.gmra.mrb[0].mxu0 %v3069
        %v3285 = vpop.f32.mrb[0].mxu0
        %v3286 = vadd.f32 0.0, %v3285
        %v3287 = vpop.f32.mrb[0].mxu0
        %3288 = vmatprep.mubr.f32.mxu0 0.0
        %3289 = vmatmul.mubr.f32.gmra.mrb[0].mxu0 %v3072
        %v3290 = vpop.f32.mrb[0].mxu0
        %v3291 = vadd.f32 0.0, %v3290
        %v3292 = vpop.f32.mrb[0].mxu0
        %3293 = vmatprep.mubr.f32.mxu0 0.0
        %3294 = vmatmul.mubr.f32.gmra.mrb[0].mxu0 %v3075
        %v3295 = vpop.f32.mrb[0].mxu0
        %v3296 = vadd.f32 0.0, %v3295
        %v3297 = vpop.f32.mrb[0].mxu0
        %3298 = vmatprep.mubr.f32.mxu0 0.0
        %3299 = vmatmul.mubr.f32.gmra.mrb[0].mxu0 %v3078
        %v3300 = vpop.f32.mrb[0].mxu0
        %v3301 = vadd.f32 0.0, %v3300
        %v3302 = vpop.f32.mrb[0].mxu0
        %3303 = vmatprep.mubr.f32.mxu0 0.0
        %3304 = vmatmul.mubr.f32.gmra.mrb[0].mxu0 %v3081
        %v3305 = vpop.f32.mrb[0].mxu0
        %v3306 = vadd.f32 0.0, %v3305
        %v3307 = vpop.f32.mrb[0].mxu0
        %3308 = vmatprep.mubr.f32.mxu0 0.0
        %3309 = vmatmul.mubr.f32.gmra.mrb[0].mxu0 %v3084
        %v3310 = vpop.f32.mrb[0].mxu0
        %v3311 = vadd.f32 0.0, %v3310
        %v3312 = vpop.f32.mrb[0].mxu0
        %3313 = vdwg.mxu0
        %v3314 = vadd.f32 %v2924, %v3156
        %v3315 = vadd.f32 %v2925, %v3161
        %v3316 = vadd.f32 %v2926, %v3166
        %v3317 = vadd.f32 %v2927, %v3171
        %v3318 = vadd.f32 %v2928, %v3176
        %v3319 = vadd.f32 %v2929, %v3181
        %v3320 = vadd.f32 %v2930, %v3186
        %v3321 = vadd.f32 %v2931, %v3191
        %v3322 = vadd.f32 %v2932, %v3196
        %v3323 = vadd.f32 %v2933, %v3201
        %v3324 = vadd.f32 %v2934, %v3206
        %v3325 = vadd.f32 %v2935, %v3211
        %v3326 = vadd.f32 %v2936, %v3216
        %v3327 = vadd.f32 %v2937, %v3221
        %v3328 = vadd.f32 %v2938, %v3226
        %v3329 = vadd.f32 %v2939, %v3231
        %v3330 = vadd.f32 %v2940, %v3236
        %v3331 = vadd.f32 %v2941, %v3241
        %v3332 = vadd.f32 %v2942, %v3246
        %v3333 = vadd.f32 %v2943, %v3251
        %v3334 = vadd.f32 %v2944, %v3256
        %v3335 = vadd.f32 %v2945, %v3261
        %v3336 = vadd.f32 %v2946, %v3266
        %v3337 = vadd.f32 %v2947, %v3271
        %v3338 = vadd.f32 %v2948, %v3276
        %v3339 = vadd.f32 %v2949, %v3281
        %v3340 = vadd.f32 %v2950, %v3286
        %v3341 = vadd.f32 %v2951, %v3291
        %v3342 = vadd.f32 %v2952, %v3296
        %v3343 = vadd.f32 %v2953, %v3301
        %v3344 = vadd.f32 %v2954, %v3306
        %v3345 = vadd.f32 %v2955, %v3311
        %v3346 = vld [vmem:[%s2565 + $0x2] sm:$0xff]
        %v3347 = vld [vmem:[%s2565 + $0xa] sm:$0xff]
        %v3348 = vld [vmem:[%s2565 + $0x1a] sm:$0xff]
        %v3349 = vld [vmem:[%s2565 + $0x22] sm:$0xff]
        %v3350 = vld [vmem:[%s2565 + $0x32] sm:$0xff]
        %v3351 = vld [vmem:[%s2565 + $0x3a] sm:$0xff]
        %v3352 = vld [vmem:[%s2565 + $0x4a] sm:$0xff]
        %v3353 = vld [vmem:[%s2565 + $0x52] sm:$0xff]
        %v3354 = vld [vmem:[%s2565 + $0x62] sm:$0xff]
        %v3355 = vld [vmem:[%s2565 + $0x6a] sm:$0xff]
        %v3356 = vld [vmem:[%s2565 + $0x7a] sm:$0xff]
        %v3357 = vld [vmem:[%s2565 + $0x82] sm:$0xff]
        %v3358 = vld [vmem:[%s2565 + $0x92] sm:$0xff]
        %v3359 = vld [vmem:[%s2565 + $0x9a] sm:$0xff]
        %v3360 = vld [vmem:[%s2565 + $0xaa] sm:$0xff]
        %v3361 = vld [vmem:[%s2565 + $0xb2] sm:$0xff]
        %v3362 = vld [vmem:[%s2565 + $0xc2] sm:$0xff]
        %v3363 = vld [vmem:[%s2565 + $0xca] sm:$0xff]
        %v3364 = vld [vmem:[%s2565 + $0xda] sm:$0xff]
        %v3365 = vld [vmem:[%s2565 + $0xe2] sm:$0xff]
        %v3366 = vld [vmem:[%s2565 + $0xf2] sm:$0xff]
        %v3367 = vld [vmem:[%s2565 + $0xfa] sm:$0xff]
        %v3368 = vld [vmem:[%s2565 + $0x10a] sm:$0xff]
        %v3369 = vld [vmem:[%s2565 + $0x112] sm:$0xff]
        %v3370 = vld [vmem:[%s2565 + $0x122] sm:$0xff]
        %v3371 = vld [vmem:[%s2565 + $0x12a] sm:$0xff]
        %v3372 = vld [vmem:[%s2565 + $0x13a] sm:$0xff]
        %v3373 = vld [vmem:[%s2565 + $0x142] sm:$0xff]
        %v3374 = vld [vmem:[%s2565 + $0x152] sm:$0xff]
        %v3375 = vld [vmem:[%s2565 + $0x15a] sm:$0xff]
        %v3376 = vld [vmem:[%s2565 + $0x16a] sm:$0xff]
        %v3377 = vld [vmem:[%s2565 + $0x172] sm:$0xff]
        %s3378 = scalar_lea.vmem %s1, 32
        %v3379 = vld [vmem:[%s3378] sm:$0xf]
        %v3381 = vsel %vm215, %v3346, 0
        %v3384 = vsel %vm215, %v3347, 0
        %v3387 = vsel %vm215, %v3348, 0
        %v3390 = vsel %vm215, %v3349, 0
        %v3393 = vsel %vm215, %v3350, 0
        %v3396 = vsel %vm215, %v3351, 0
        %v3399 = vsel %vm215, %v3352, 0
        %v3402 = vsel %vm215, %v3353, 0
        %v3405 = vsel %vm215, %v3354, 0
        %v3408 = vsel %vm215, %v3355, 0
        %v3411 = vsel %vm215, %v3356, 0
        %v3414 = vsel %vm215, %v3357, 0
        %v3417 = vsel %vm215, %v3358, 0
        %v3420 = vsel %vm215, %v3359, 0
        %v3423 = vsel %vm215, %v3360, 0
        %v3426 = vsel %vm215, %v3361, 0
        %v3429 = vsel %vm215, %v3362, 0
        %v3432 = vsel %vm215, %v3363, 0
        %v3435 = vsel %vm215, %v3364, 0
        %v3438 = vsel %vm215, %v3365, 0
        %v3441 = vsel %vm215, %v3366, 0
        %v3444 = vsel %vm215, %v3367, 0
        %v3447 = vsel %vm215, %v3368, 0
        %v3450 = vsel %vm215, %v3369, 0
        %v3453 = vsel %vm215, %v3370, 0
        %v3456 = vsel %vm215, %v3371, 0
        %v3459 = vsel %vm215, %v3372, 0
        %v3462 = vsel %vm215, %v3373, 0
        %v3465 = vsel %vm215, %v3374, 0
        %v3468 = vsel %vm215, %v3375, 0
        %v3471 = vsel %vm215, %v3376, 0
        %v3474 = vsel %vm215, %v3377, 0
        %v3477 = vsel %vm452, %v3379, 0
        %3479 = vmatprep.subr.mxu0 0.0
        %3480 = vmatpush1.msra.mxu0 %v3477
        %3481 = vmatprep.subr.mxu0 0.0
        %3482 = vmatpush1.msra.mxu0 0.0
        %3483 = vmatprep.subr.mxu0 0.0
        %3484 = vmatpush1.msra.mxu0 0.0
        %3485 = vmatprep.subr.mxu0 0.0
        %3486 = vmatpush1.msra.mxu0 0.0
        %3487 = vmatprep.subr.mxu0 0.0
        %3488 = vmatpush1.msra.mxu0 0.0
        %3489 = vmatprep.subr.mxu0 0.0
        %3490 = vmatpush1.msra.mxu0 0.0
        %3491 = vmatprep.subr.mxu0 0.0
        %3492 = vmatpush1.msra.mxu0 0.0
        %3493 = vmatprep.subr.mxu0 0.0
        %3494 = vmatpush1.msra.mxu0 0.0
        %3495 = vmatprep.subr.mxu0 0.0
        %3496 = vmatpush1.msra.mxu0 0.0
        %3497 = vmatprep.subr.mxu0 0.0
        %3498 = vmatpush1.msra.mxu0 0.0
        %3499 = vmatprep.subr.mxu0 0.0
        %3500 = vmatpush1.msra.mxu0 0.0
        %3501 = vmatprep.subr.mxu0 0.0
        %3502 = vmatpush1.msra.mxu0 0.0
        %3503 = vmatprep.subr.mxu0 0.0
        %3504 = vmatpush1.msra.mxu0 0.0
        %3505 = vmatprep.subr.mxu0 0.0
        %3506 = vmatpush1.msra.mxu0 0.0
        %3507 = vmatprep.subr.mxu0 0.0
        %3508 = vmatpush1.msra.mxu0 0.0
        %3509 = vmatprep.subr.mxu0 0.0
        %3510 = vmatpush1.msra.mxu0 0.0
        %3511 = vmatprep.subr.mxu0 0.0
        %3512 = vmatpush1.msra.mxu0 0.0
        %3513 = vmatprep.subr.mxu0 0.0
        %3514 = vmatpush1.msra.mxu0 0.0
        %3515 = vmatprep.subr.mxu0 0.0
        %3516 = vmatpush1.msra.mxu0 0.0
        %3517 = vmatprep.subr.mxu0 0.0
        %3518 = vmatpush1.msra.mxu0 0.0
        %3519 = vmatprep.subr.mxu0 0.0
        %3520 = vmatpush1.msra.mxu0 0.0
        %3521 = vmatprep.subr.mxu0 0.0
        %3522 = vmatpush1.msra.mxu0 0.0
        %3523 = vmatprep.subr.mxu0 0.0
        %3524 = vmatpush1.msra.mxu0 0.0
        %3525 = vmatprep.subr.mxu0 0.0
        %3526 = vmatpush1.msra.mxu0 0.0
        %3527 = vmatprep.subr.mxu0 0.0
        %3528 = vmatpush1.msra.mxu0 0.0
        %3529 = vmatprep.subr.mxu0 0.0
        %3530 = vmatpush1.msra.mxu0 0.0
        %3531 = vmatprep.subr.mxu0 0.0
        %3532 = vmatpush1.msra.mxu0 0.0
        %3533 = vmatprep.subr.mxu0 0.0
        %3534 = vmatpush1.msra.mxu0 0.0
        %3535 = vmatprep.subr.mxu0 0.0
        %3536 = vmatpush1.msra.mxu0 0.0
        %3537 = vmatprep.subr.mxu0 0.0
        %3538 = vmatpush1.msra.mxu0 0.0
        %3539 = vmatprep.subr.mxu0 0.0
        %3540 = vmatpush1.msra.mxu0 0.0
        %3541 = vmatprep.subr.mxu0 0.0
        %3542 = vmatpush1.msra.mxu0 0.0
        %3543 = vmatprep.mubr.f32.mxu0 0.0
        %3544 = vmatmul.mubr.f32.gmra.mrb[0].mxu0 %v3381
        %v3545 = vpop.f32.mrb[0].mxu0
        %v3546 = vadd.f32 0.0, %v3545
        %v3547 = vpop.f32.mrb[0].mxu0
        %3548 = vmatprep.mubr.f32.mxu0 0.0
        %3549 = vmatmul.mubr.f32.gmra.mrb[0].mxu0 %v3384
        %v3550 = vpop.f32.mrb[0].mxu0
        %v3551 = vadd.f32 0.0, %v3550
        %v3552 = vpop.f32.mrb[0].mxu0
        %3553 = vmatprep.mubr.f32.mxu0 0.0
        %3554 = vmatmul.mubr.f32.gmra.mrb[0].mxu0 %v3387
        %v3555 = vpop.f32.mrb[0].mxu0
        %v3556 = vadd.f32 0.0, %v3555
        %v3557 = vpop.f32.mrb[0].mxu0
        %3558 = vmatprep.mubr.f32.mxu0 0.0
        %3559 = vmatmul.mubr.f32.gmra.mrb[0].mxu0 %v3390
        %v3560 = vpop.f32.mrb[0].mxu0
        %v3561 = vadd.f32 0.0, %v3560
        %v3562 = vpop.f32.mrb[0].mxu0
        %3563 = vmatprep.mubr.f32.mxu0 0.0
        %3564 = vmatmul.mubr.f32.gmra.mrb[0].mxu0 %v3393
        %v3565 = vpop.f32.mrb[0].mxu0
        %v3566 = vadd.f32 0.0, %v3565
        %v3567 = vpop.f32.mrb[0].mxu0
        %3568 = vmatprep.mubr.f32.mxu0 0.0
        %3569 = vmatmul.mubr.f32.gmra.mrb[0].mxu0 %v3396
        %v3570 = vpop.f32.mrb[0].mxu0
        %v3571 = vadd.f32 0.0, %v3570
        %v3572 = vpop.f32.mrb[0].mxu0
        %3573 = vmatprep.mubr.f32.mxu0 0.0
        %3574 = vmatmul.mubr.f32.gmra.mrb[0].mxu0 %v3399
        %v3575 = vpop.f32.mrb[0].mxu0
        %v3576 = vadd.f32 0.0, %v3575
        %v3577 = vpop.f32.mrb[0].mxu0
        %3578 = vmatprep.mubr.f32.mxu0 0.0
        %3579 = vmatmul.mubr.f32.gmra.mrb[0].mxu0 %v3402
        %v3580 = vpop.f32.mrb[0].mxu0
        %v3581 = vadd.f32 0.0, %v3580
        %v3582 = vpop.f32.mrb[0].mxu0
        %3583 = vmatprep.mubr.f32.mxu0 0.0
        %3584 = vmatmul.mubr.f32.gmra.mrb[0].mxu0 %v3405
        %v3585 = vpop.f32.mrb[0].mxu0
        %v3586 = vadd.f32 0.0, %v3585
        %v3587 = vpop.f32.mrb[0].mxu0
        %3588 = vmatprep.mubr.f32.mxu0 0.0
        %3589 = vmatmul.mubr.f32.gmra.mrb[0].mxu0 %v3408
        %v3590 = vpop.f32.mrb[0].mxu0
        %v3591 = vadd.f32 0.0, %v3590
        %v3592 = vpop.f32.mrb[0].mxu0
        %3593 = vmatprep.mubr.f32.mxu0 0.0
        %3594 = vmatmul.mubr.f32.gmra.mrb[0].mxu0 %v3411
        %v3595 = vpop.f32.mrb[0].mxu0
        %v3596 = vadd.f32 0.0, %v3595
        %v3597 = vpop.f32.mrb[0].mxu0
        %3598 = vmatprep.mubr.f32.mxu0 0.0
        %3599 = vmatmul.mubr.f32.gmra.mrb[0].mxu0 %v3414
        %v3600 = vpop.f32.mrb[0].mxu0
        %v3601 = vadd.f32 0.0, %v3600
        %v3602 = vpop.f32.mrb[0].mxu0
        %3603 = vmatprep.mubr.f32.mxu0 0.0
        %3604 = vmatmul.mubr.f32.gmra.mrb[0].mxu0 %v3417
        %v3605 = vpop.f32.mrb[0].mxu0
        %v3606 = vadd.f32 0.0, %v3605
        %v3607 = vpop.f32.mrb[0].mxu0
        %3608 = vmatprep.mubr.f32.mxu0 0.0
        %3609 = vmatmul.mubr.f32.gmra.mrb[0].mxu0 %v3420
        %v3610 = vpop.f32.mrb[0].mxu0
        %v3611 = vadd.f32 0.0, %v3610
        %v3612 = vpop.f32.mrb[0].mxu0
        %3613 = vmatprep.mubr.f32.mxu0 0.0
        %3614 = vmatmul.mubr.f32.gmra.mrb[0].mxu0 %v3423
        %v3615 = vpop.f32.mrb[0].mxu0
        %v3616 = vadd.f32 0.0, %v3615
        %v3617 = vpop.f32.mrb[0].mxu0
        %3618 = vmatprep.mubr.f32.mxu0 0.0
        %3619 = vmatmul.mubr.f32.gmra.mrb[0].mxu0 %v3426
        %v3620 = vpop.f32.mrb[0].mxu0
        %v3621 = vadd.f32 0.0, %v3620
        %v3622 = vpop.f32.mrb[0].mxu0
        %3623 = vmatprep.mubr.f32.mxu0 0.0
        %3624 = vmatmul.mubr.f32.gmra.mrb[0].mxu0 %v3429
        %v3625 = vpop.f32.mrb[0].mxu0
        %v3626 = vadd.f32 0.0, %v3625
        %v3627 = vpop.f32.mrb[0].mxu0
        %3628 = vmatprep.mubr.f32.mxu0 0.0
        %3629 = vmatmul.mubr.f32.gmra.mrb[0].mxu0 %v3432
        %v3630 = vpop.f32.mrb[0].mxu0
        %v3631 = vadd.f32 0.0, %v3630
        %v3632 = vpop.f32.mrb[0].mxu0
        %3633 = vmatprep.mubr.f32.mxu0 0.0
        %3634 = vmatmul.mubr.f32.gmra.mrb[0].mxu0 %v3435
        %v3635 = vpop.f32.mrb[0].mxu0
        %v3636 = vadd.f32 0.0, %v3635
        %v3637 = vpop.f32.mrb[0].mxu0
        %3638 = vmatprep.mubr.f32.mxu0 0.0
        %3639 = vmatmul.mubr.f32.gmra.mrb[0].mxu0 %v3438
        %v3640 = vpop.f32.mrb[0].mxu0
        %v3641 = vadd.f32 0.0, %v3640
        %v3642 = vpop.f32.mrb[0].mxu0
        %3643 = vmatprep.mubr.f32.mxu0 0.0
        %3644 = vmatmul.mubr.f32.gmra.mrb[0].mxu0 %v3441
        %v3645 = vpop.f32.mrb[0].mxu0
        %v3646 = vadd.f32 0.0, %v3645
        %v3647 = vpop.f32.mrb[0].mxu0
        %3648 = vmatprep.mubr.f32.mxu0 0.0
        %3649 = vmatmul.mubr.f32.gmra.mrb[0].mxu0 %v3444
        %v3650 = vpop.f32.mrb[0].mxu0
        %v3651 = vadd.f32 0.0, %v3650
        %v3652 = vpop.f32.mrb[0].mxu0
        %3653 = vmatprep.mubr.f32.mxu0 0.0
        %3654 = vmatmul.mubr.f32.gmra.mrb[0].mxu0 %v3447
        %v3655 = vpop.f32.mrb[0].mxu0
        %v3656 = vadd.f32 0.0, %v3655
        %v3657 = vpop.f32.mrb[0].mxu0
        %3658 = vmatprep.mubr.f32.mxu0 0.0
        %3659 = vmatmul.mubr.f32.gmra.mrb[0].mxu0 %v3450
        %v3660 = vpop.f32.mrb[0].mxu0
        %v3661 = vadd.f32 0.0, %v3660
        %v3662 = vpop.f32.mrb[0].mxu0
        %3663 = vmatprep.mubr.f32.mxu0 0.0
        %3664 = vmatmul.mubr.f32.gmra.mrb[0].mxu0 %v3453
        %v3665 = vpop.f32.mrb[0].mxu0
        %v3666 = vadd.f32 0.0, %v3665
        %v3667 = vpop.f32.mrb[0].mxu0
        %3668 = vmatprep.mubr.f32.mxu0 0.0
        %3669 = vmatmul.mubr.f32.gmra.mrb[0].mxu0 %v3456
        %v3670 = vpop.f32.mrb[0].mxu0
        %v3671 = vadd.f32 0.0, %v3670
        %v3672 = vpop.f32.mrb[0].mxu0
        %3673 = vmatprep.mubr.f32.mxu0 0.0
        %3674 = vmatmul.mubr.f32.gmra.mrb[0].mxu0 %v3459
        %v3675 = vpop.f32.mrb[0].mxu0
        %v3676 = vadd.f32 0.0, %v3675
        %v3677 = vpop.f32.mrb[0].mxu0
        %3678 = vmatprep.mubr.f32.mxu0 0.0
        %3679 = vmatmul.mubr.f32.gmra.mrb[0].mxu0 %v3462
        %v3680 = vpop.f32.mrb[0].mxu0
        %v3681 = vadd.f32 0.0, %v3680
        %v3682 = vpop.f32.mrb[0].mxu0
        %3683 = vmatprep.mubr.f32.mxu0 0.0
        %3684 = vmatmul.mubr.f32.gmra.mrb[0].mxu0 %v3465
        %v3685 = vpop.f32.mrb[0].mxu0
        %v3686 = vadd.f32 0.0, %v3685
        %v3687 = vpop.f32.mrb[0].mxu0
        %3688 = vmatprep.mubr.f32.mxu0 0.0
        %3689 = vmatmul.mubr.f32.gmra.mrb[0].mxu0 %v3468
        %v3690 = vpop.f32.mrb[0].mxu0
        %v3691 = vadd.f32 0.0, %v3690
        %v3692 = vpop.f32.mrb[0].mxu0
        %3693 = vmatprep.mubr.f32.mxu0 0.0
        %3694 = vmatmul.mubr.f32.gmra.mrb[0].mxu0 %v3471
        %v3695 = vpop.f32.mrb[0].mxu0
        %v3696 = vadd.f32 0.0, %v3695
        %v3697 = vpop.f32.mrb[0].mxu0
        %3698 = vmatprep.mubr.f32.mxu0 0.0
        %3699 = vmatmul.mubr.f32.gmra.mrb[0].mxu0 %v3474
        %v3700 = vpop.f32.mrb[0].mxu0
        %v3701 = vadd.f32 0.0, %v3700
        %v3702 = vpop.f32.mrb[0].mxu0
        %3703 = vdwg.mxu0
        %v3704 = vadd.f32 %v3314, %v3546
        %v3705 = vadd.f32 %v3315, %v3551
        %v3706 = vadd.f32 %v3316, %v3556
        %v3707 = vadd.f32 %v3317, %v3561
        %v3708 = vadd.f32 %v3318, %v3566
        %v3709 = vadd.f32 %v3319, %v3571
        %v3710 = vadd.f32 %v3320, %v3576
        %v3711 = vadd.f32 %v3321, %v3581
        %v3712 = vadd.f32 %v3322, %v3586
        %v3713 = vadd.f32 %v3323, %v3591
        %v3714 = vadd.f32 %v3324, %v3596
        %v3715 = vadd.f32 %v3325, %v3601
        %v3716 = vadd.f32 %v3326, %v3606
        %v3717 = vadd.f32 %v3327, %v3611
        %v3718 = vadd.f32 %v3328, %v3616
        %v3719 = vadd.f32 %v3329, %v3621
        %v3720 = vadd.f32 %v3330, %v3626
        %v3721 = vadd.f32 %v3331, %v3631
        %v3722 = vadd.f32 %v3332, %v3636
        %v3723 = vadd.f32 %v3333, %v3641
        %v3724 = vadd.f32 %v3334, %v3646
        %v3725 = vadd.f32 %v3335, %v3651
        %v3726 = vadd.f32 %v3336, %v3656
        %v3727 = vadd.f32 %v3337, %v3661
        %v3728 = vadd.f32 %v3338, %v3666
        %v3729 = vadd.f32 %v3339, %v3671
        %v3730 = vadd.f32 %v3340, %v3676
        %v3731 = vadd.f32 %v3341, %v3681
        %v3732 = vadd.f32 %v3342, %v3686
        %v3733 = vadd.f32 %v3343, %v3691
        %v3734 = vadd.f32 %v3344, %v3696
        %v3735 = vadd.f32 %v3345, %v3701
        %vm3736 = vcmask 64512
        %3737 = vst.msk [vmem:[%s181] sm:$0xff] %vm3736, %v3704
        %3738 = vst.msk [vmem:[%s181 + $0x8] sm:$0xff] %vm3736, %v3705
        %3739 = vst.msk [vmem:[%s181 + $0x10] sm:$0xff] %vm3736, %v3706
        %3740 = vst.msk [vmem:[%s181 + $0x18] sm:$0xff] %vm3736, %v3707
        %3741 = vst.msk [vmem:[%s181 + $0x20] sm:$0xff] %vm3736, %v3708
        %3742 = vst.msk [vmem:[%s181 + $0x28] sm:$0xff] %vm3736, %v3709
        %3743 = vst.msk [vmem:[%s181 + $0x30] sm:$0xff] %vm3736, %v3710
        %3744 = vst.msk [vmem:[%s181 + $0x38] sm:$0xff] %vm3736, %v3711
        %3745 = vst.msk [vmem:[%s181 + $0x40] sm:$0xff] %vm3736, %v3712
        %3746 = vst.msk [vmem:[%s181 + $0x48] sm:$0xff] %vm3736, %v3713
        %3747 = vst.msk [vmem:[%s181 + $0x50] sm:$0xff] %vm3736, %v3714
        %3748 = vst.msk [vmem:[%s181 + $0x58] sm:$0xff] %vm3736, %v3715
        %3749 = vst.msk [vmem:[%s181 + $0x60] sm:$0xff] %vm3736, %v3716
        %3750 = vst.msk [vmem:[%s181 + $0x68] sm:$0xff] %vm3736, %v3717
        %3751 = vst.msk [vmem:[%s181 + $0x70] sm:$0xff] %vm3736, %v3718
        %3752 = vst.msk [vmem:[%s181 + $0x78] sm:$0xff] %vm3736, %v3719
        %3753 = vst.msk [vmem:[%s181 + $0x80] sm:$0xff] %vm3736, %v3720
        %3754 = vst.msk [vmem:[%s181 + $0x88] sm:$0xff] %vm3736, %v3721
        %3755 = vst.msk [vmem:[%s181 + $0x90] sm:$0xff] %vm3736, %v3722
        %3756 = vst.msk [vmem:[%s181 + $0x98] sm:$0xff] %vm3736, %v3723
        %3757 = vst.msk [vmem:[%s181 + $0xa0] sm:$0xff] %vm3736, %v3724
        %3758 = vst.msk [vmem:[%s181 + $0xa8] sm:$0xff] %vm3736, %v3725
        %3759 = vst.msk [vmem:[%s181 + $0xb0] sm:$0xff] %vm3736, %v3726
        %3760 = vst.msk [vmem:[%s181 + $0xb8] sm:$0xff] %vm3736, %v3727
        %3761 = vst.msk [vmem:[%s181 + $0xc0] sm:$0xff] %vm3736, %v3728
        %3762 = vst.msk [vmem:[%s181 + $0xc8] sm:$0xff] %vm3736, %v3729
        %3763 = vst.msk [vmem:[%s181 + $0xd0] sm:$0xff] %vm3736, %v3730
        %3764 = vst.msk [vmem:[%s181 + $0xd8] sm:$0xff] %vm3736, %v3731
        %3765 = vst.msk [vmem:[%s181 + $0xe0] sm:$0xff] %vm3736, %v3732
        %3766 = vst.msk [vmem:[%s181 + $0xe8] sm:$0xff] %vm3736, %v3733
        %3767 = vst.msk [vmem:[%s181 + $0xf0] sm:$0xff] %vm3736, %v3734
        %3768 = vst.msk [vmem:[%s181 + $0xf8] sm:$0xff] %vm3736, %v3735
        %v3769 = vsel %vm3736, %v3704, 0.0
        %v3770 = vsel %vm3736, %v3705, 0.0
        %v3771 = vadd.f32 %v3769, %v3770
        %v3772 = vsel %vm3736, %v3706, 0.0
        %v3773 = vadd.f32 %v3771, %v3772
        %v3774 = vsel %vm3736, %v3707, 0.0
        %v3775 = vadd.f32 %v3773, %v3774
        %v3776 = vsel %vm3736, %v3708, 0.0
        %v3777 = vadd.f32 %v3775, %v3776
        %v3778 = vsel %vm3736, %v3709, 0.0
        %v3779 = vadd.f32 %v3777, %v3778
        %v3780 = vsel %vm3736, %v3710, 0.0
        %v3781 = vadd.f32 %v3779, %v3780
        %v3782 = vsel %vm3736, %v3711, 0.0
        %v3783 = vadd.f32 %v3781, %v3782
        %v3784 = vsel %vm3736, %v3712, 0.0
        %v3785 = vadd.f32 %v3783, %v3784
        %v3786 = vsel %vm3736, %v3713, 0.0
        %v3787 = vadd.f32 %v3785, %v3786
        %v3788 = vsel %vm3736, %v3714, 0.0
        %v3789 = vadd.f32 %v3787, %v3788
        %v3790 = vsel %vm3736, %v3715, 0.0
        %v3791 = vadd.f32 %v3789, %v3790
        %v3792 = vsel %vm3736, %v3716, 0.0
        %v3793 = vadd.f32 %v3791, %v3792
        %v3794 = vsel %vm3736, %v3717, 0.0
        %v3795 = vadd.f32 %v3793, %v3794
        %v3796 = vsel %vm3736, %v3718, 0.0
        %v3797 = vadd.f32 %v3795, %v3796
        %v3798 = vsel %vm3736, %v3719, 0.0
        %v3799 = vadd.f32 %v3797, %v3798
        %v3800 = vsel %vm3736, %v3720, 0.0
        %v3801 = vadd.f32 %v3799, %v3800
        %v3802 = vsel %vm3736, %v3721, 0.0
        %v3803 = vadd.f32 %v3801, %v3802
        %v3804 = vsel %vm3736, %v3722, 0.0
        %v3805 = vadd.f32 %v3803, %v3804
        %v3806 = vsel %vm3736, %v3723, 0.0
        %v3807 = vadd.f32 %v3805, %v3806
        %v3808 = vsel %vm3736, %v3724, 0.0
        %v3809 = vadd.f32 %v3807, %v3808
        %v3810 = vsel %vm3736, %v3725, 0.0
        %v3811 = vadd.f32 %v3809, %v3810
        %v3812 = vsel %vm3736, %v3726, 0.0
        %v3813 = vadd.f32 %v3811, %v3812
        %v3814 = vsel %vm3736, %v3727, 0.0
        %v3815 = vadd.f32 %v3813, %v3814
        %v3816 = vsel %vm3736, %v3728, 0.0
        %v3817 = vadd.f32 %v3815, %v3816
        %v3818 = vsel %vm3736, %v3729, 0.0
        %v3819 = vadd.f32 %v3817, %v3818
        %v3820 = vsel %vm3736, %v3730, 0.0
        %v3821 = vadd.f32 %v3819, %v3820
        %v3822 = vsel %vm3736, %v3731, 0.0
        %v3823 = vadd.f32 %v3821, %v3822
        %v3824 = vsel %vm3736, %v3732, 0.0
        %v3825 = vadd.f32 %v3823, %v3824
        %v3826 = vsel %vm3736, %v3733, 0.0
        %v3827 = vadd.f32 %v3825, %v3826
        %v3828 = vsel %vm3736, %v3734, 0.0
        %v3829 = vadd.f32 %v3827, %v3828
        %v3830 = vsel %vm3736, %v3735, 0.0
        %v3831 = vadd.f32 %v3829, %v3830
        %v3832 = vrot.slane %v3831, 4
        %v3833 = vadd.f32 %v3831, %v3832
        %v3834 = vrot.slane %v3833, 2
        %v3835 = vadd.f32 %v3833, %v3834
        %v3836 = vrot.slane %v3835, 1
        %v3837 = vadd.f32 %v3835, %v3836
        %vm3838 = vcmask 57344
        %3839 = vst.msk [vmem:[%s171] sm:$0x1] %vm3838, %v3837
        %v3840 = vmul.f32 %v3704, %v3704
        %v3841 = vmul.f32 %v3705, %v3705
        %v3842 = vmul.f32 %v3706, %v3706
        %v3843 = vmul.f32 %v3707, %v3707
        %v3844 = vmul.f32 %v3708, %v3708
        %v3845 = vmul.f32 %v3709, %v3709
        %v3846 = vmul.f32 %v3710, %v3710
        %v3847 = vmul.f32 %v3711, %v3711
        %v3848 = vmul.f32 %v3712, %v3712
        %v3849 = vmul.f32 %v3713, %v3713
        %v3850 = vmul.f32 %v3714, %v3714
        %v3851 = vmul.f32 %v3715, %v3715
        %v3852 = vmul.f32 %v3716, %v3716
        %v3853 = vmul.f32 %v3717, %v3717
        %v3854 = vmul.f32 %v3718, %v3718
        %v3855 = vmul.f32 %v3719, %v3719
        %v3856 = vmul.f32 %v3720, %v3720
        %v3857 = vmul.f32 %v3721, %v3721
        %v3858 = vmul.f32 %v3722, %v3722
        %v3859 = vmul.f32 %v3723, %v3723
        %v3860 = vmul.f32 %v3724, %v3724
        %v3861 = vmul.f32 %v3725, %v3725
        %v3862 = vmul.f32 %v3726, %v3726
        %v3863 = vmul.f32 %v3727, %v3727
        %v3864 = vmul.f32 %v3728, %v3728
        %v3865 = vmul.f32 %v3729, %v3729
        %v3866 = vmul.f32 %v3730, %v3730
        %v3867 = vmul.f32 %v3731, %v3731
        %v3868 = vmul.f32 %v3732, %v3732
        %v3869 = vmul.f32 %v3733, %v3733
        %v3870 = vmul.f32 %v3734, %v3734
        %v3871 = vmul.f32 %v3735, %v3735
        %v3872 = vsel %vm3736, %v3840, 0.0
        %v3873 = vsel %vm3736, %v3841, 0.0
        %v3874 = vadd.f32 %v3872, %v3873
        %v3875 = vsel %vm3736, %v3842, 0.0
        %v3876 = vadd.f32 %v3874, %v3875
        %v3877 = vsel %vm3736, %v3843, 0.0
        %v3878 = vadd.f32 %v3876, %v3877
        %v3879 = vsel %vm3736, %v3844, 0.0
        %v3880 = vadd.f32 %v3878, %v3879
        %v3881 = vsel %vm3736, %v3845, 0.0
        %v3882 = vadd.f32 %v3880, %v3881
        %v3883 = vsel %vm3736, %v3846, 0.0
        %v3884 = vadd.f32 %v3882, %v3883
        %v3885 = vsel %vm3736, %v3847, 0.0
        %v3886 = vadd.f32 %v3884, %v3885
        %v3887 = vsel %vm3736, %v3848, 0.0
        %v3888 = vadd.f32 %v3886, %v3887
        %v3889 = vsel %vm3736, %v3849, 0.0
        %v3890 = vadd.f32 %v3888, %v3889
        %v3891 = vsel %vm3736, %v3850, 0.0
        %v3892 = vadd.f32 %v3890, %v3891
        %v3893 = vsel %vm3736, %v3851, 0.0
        %v3894 = vadd.f32 %v3892, %v3893
        %v3895 = vsel %vm3736, %v3852, 0.0
        %v3896 = vadd.f32 %v3894, %v3895
        %v3897 = vsel %vm3736, %v3853, 0.0
        %v3898 = vadd.f32 %v3896, %v3897
        %v3899 = vsel %vm3736, %v3854, 0.0
        %v3900 = vadd.f32 %v3898, %v3899
        %v3901 = vsel %vm3736, %v3855, 0.0
        %v3902 = vadd.f32 %v3900, %v3901
        %v3903 = vsel %vm3736, %v3856, 0.0
        %v3904 = vadd.f32 %v3902, %v3903
        %v3905 = vsel %vm3736, %v3857, 0.0
        %v3906 = vadd.f32 %v3904, %v3905
        %v3907 = vsel %vm3736, %v3858, 0.0
        %v3908 = vadd.f32 %v3906, %v3907
        %v3909 = vsel %vm3736, %v3859, 0.0
        %v3910 = vadd.f32 %v3908, %v3909
        %v3911 = vsel %vm3736, %v3860, 0.0
        %v3912 = vadd.f32 %v3910, %v3911
        %v3913 = vsel %vm3736, %v3861, 0.0
        %v3914 = vadd.f32 %v3912, %v3913
        %v3915 = vsel %vm3736, %v3862, 0.0
        %v3916 = vadd.f32 %v3914, %v3915
        %v3917 = vsel %vm3736, %v3863, 0.0
        %v3918 = vadd.f32 %v3916, %v3917
        %v3919 = vsel %vm3736, %v3864, 0.0
        %v3920 = vadd.f32 %v3918, %v3919
        %v3921 = vsel %vm3736, %v3865, 0.0
        %v3922 = vadd.f32 %v3920, %v3921
        %v3923 = vsel %vm3736, %v3866, 0.0
        %v3924 = vadd.f32 %v3922, %v3923
        %v3925 = vsel %vm3736, %v3867, 0.0
        %v3926 = vadd.f32 %v3924, %v3925
        %v3927 = vsel %vm3736, %v3868, 0.0
        %v3928 = vadd.f32 %v3926, %v3927
        %v3929 = vsel %vm3736, %v3869, 0.0
        %v3930 = vadd.f32 %v3928, %v3929
        %v3931 = vsel %vm3736, %v3870, 0.0
        %v3932 = vadd.f32 %v3930, %v3931
        %v3933 = vsel %vm3736, %v3871, 0.0
        %v3934 = vadd.f32 %v3932, %v3933
        %v3935 = vrot.slane %v3934, 4
        %v3936 = vadd.f32 %v3934, %v3935
        %v3937 = vrot.slane %v3936, 2
        %v3938 = vadd.f32 %v3936, %v3937
        %v3939 = vrot.slane %v3938, 1
        %v3940 = vadd.f32 %v3938, %v3939
        %3941 = vst.msk [vmem:[%s171 + $0x1] sm:$0x1] %vm3838, %v3940
        %p3942 = scmp.lt.s32.totalorder %s18, 1
        %s3943 = scalar_select %p3942, %s18, 1
        %s3944 = smul.addr %s3943, 32
        %s3945 = smul.addr %s3944, 8
        %s3946 = scalar_lea.vmem %s2, %s3945
        %s3947 = sand.u32 %s99, 1
        %s3948 = scalar_lea.sflag [#allocation4], %s3947
        %s3949 = sand.u32 %s99, 1
        %s3950 = smul.addr %s3949, 2
        %s3951 = scalar_lea.vmem [#allocation3], %s3950
        // Predicated region
        $region29: #{tpu_custom_call.1} parent=27 // pred_check
          %p3952 = pneg %p83
        $region30: #{tpu_custom_call.1} parent=27 // pred_check_branch
          %3954 = sbr.rel (%p3952) target = $region32
        $region31: #{tpu_custom_call.1} parent=27 // pred_region
          _
        $region32: #{tpu_custom_call.1} parent=27 // pred_fallthru
          _
        // Predicated region
        $region33: #{tpu_custom_call.1} parent=27 // pred_check
          %p3955 = pneg %p109
        $region34: #{tpu_custom_call.1} parent=27 // pred_check_branch
          %3957 = sbr.rel (%p3955) target = $region36
        $region35: #{tpu_custom_call.1} parent=27 // pred_region
          %s3959 = ssub.s32 32, 32
          %3960 = vsyncadd %s3948, %s3959
          %s3961 = smul.addr %s18, 32
          %s3962 = scalar_lea.hbm %s3, %s3961
          %s3964 = sshll.u32 %s3951, 4
          %s3965 = int_to_ptr.vmem [resolvable:$true] %s3964
          %3967 = dma.vmem_to_hbm [thread:$0]  %s3965, 32, %s3962, %s3948
        $region36: #{tpu_custom_call.1} parent=27 // pred_fallthru
          _
      $region28: #{tpu_custom_call.1} parent=5 // pred_fallthru
        _
      %p3968 = scmp.le.s32.totalorder 2, %s13
      // Predicated region
      $region37: #{tpu_custom_call.1} parent=5 // pred_check
        %p3969 = pneg %p3968
      $region38: #{tpu_custom_call.1} parent=5 // pred_check_branch
        %3971 = sbr.rel (%p3969) target = $region40
      $region39: #{tpu_custom_call.1} parent=5 // pred_region
        %s3972 = ssub.s32 %s13, 2
        // Predicated region
        $region41: #{tpu_custom_call.1} parent=39 // pred_check
          %p3973 = pneg %p89
        $region42: #{tpu_custom_call.1} parent=39 // pred_check_branch
          %3975 = sbr.rel (%p3973) target = $region44
        $region43: #{tpu_custom_call.1} parent=39 // pred_region
          %p3976 = scmp.lt.s32.totalorder %s19, 1
          %s3977 = scalar_select %p3976, %s19, 1
          %s3978 = smul.addr %s3977, 32
          %s3979 = smul.addr %s3978, 8
          %s3980 = scalar_lea.vmem %s2, %s3979
        $region44: #{tpu_custom_call.1} parent=39 // pred_fallthru
          _
        // Predicated region
        $region45: #{tpu_custom_call.1} parent=39 // pred_check
          %p3981 = pneg %p115
        $region46: #{tpu_custom_call.1} parent=39 // pred_check_branch
          %3983 = sbr.rel (%p3981) target = $region48
        $region47: #{tpu_custom_call.1} parent=39 // pred_region
          %s3984 = sand.u32 %s100, 1
          %s3985 = scalar_lea.sflag [#allocation4], %s3984
          %s3986 = sand.u32 %s100, 1
          %s3987 = smul.addr %s3986, 2
          %s3988 = scalar_lea.vmem [#allocation3], %s3987
          %3989 = dma.done %s3985, 32
        $region48: #{tpu_custom_call.1} parent=39 // pred_fallthru
          _
      $region40: #{tpu_custom_call.1} parent=5 // pred_fallthru
        _
    $region6: #{tpu_custom_call.1} parent=1 // loop_footer
      %s17 = sadd.s32 1, %s13
    $region7: #{tpu_custom_call.1} parent=1 // loop_footer_branch
      %12 = sbr.rel target = $region3
    $region8: #{tpu_custom_call.1} parent=1 // loop_exit
      _
    %3990 = vsyncpa [#allocation4], 1
    %s3991 = scalar_lea.sflag [#allocation4], 1
    %3992 = vsyncpa %s3991, 1

</llo_original>
